<compile_context>
chip_gen: v7x
topology: tpu7x:2x2x1
jax: 0.10.0
libtpu: 0.0.40
codegen_flags: <defaults>
</compile_context>

<pallas_src>
import functools

import numpy as np
import jax
import jax.numpy as jnp
from jax.experimental import pallas as pl
from jax.experimental.pallas import tpu as pltpu


# ------------------------------ fused kernel --------------------------------

def _fused_kernel(bp_ref, ctx_ref, bw_ref, badd_ref, wqkv_ref, projw_ref,
                  rsel_e_ref, rsel_o_ref, msel_ref, aw_ref, awt_ref, bup_ref,
                  y_ref, attn_ref, *,
                  num_heads, head_dim, num_patches, embed_dim, out_dim,
                  img_w, scale):
    nh, hd, N, E = num_heads, head_dim, num_patches, embed_dim

    # --- patch + context embedding (conv-as-matmul, bias + pos folded) ------
    # bp_ref[0]: (2N, Kimg+Kctx) rows already ordered [even tokens ; odd tokens]
    tokens = jnp.dot(bp_ref[0], bw_ref[...],
                     preferred_element_type=jnp.float32) + badd_ref[...]     # (2N, E)

    # --- qkv projection; quirky reshape -> static column slices -------------
    p_all = jnp.dot(tokens, wqkv_ref[...],
                    preferred_element_type=jnp.float32)                      # (2N, 3E)
    p_even = p_all[0:N, :]                      # projections of tokens 0,2,4,...
    p_odd = p_all[N:2 * N, :]                   # projections of tokens 1,3,5,...
    q_all = p_even[:, 0:2 * E] * scale          # q for all heads   (N, nh*hd)
    k_even = p_even[:, 2 * E:3 * E]             # k for heads 0..nh/2-1
    k_odd = p_odd[:, 0:E]                       # k for heads nh/2..nh-1
    v_all = p_odd[:, E:3 * E]                   # v for all heads   (N, nh*hd)

    projw = projw_ref[...]                      # (E, out_dim)

    xo_e = jnp.zeros((N, out_dim), jnp.float32)   # proj(out) of even tokens
    xo_o = jnp.zeros((N, out_dim), jnp.float32)   # proj(out) of odd tokens

    # --- 8-head attention, unrolled (all data already in registers/VMEM) ----
    for h in range(nh):
        qh = q_all[:, h * hd:(h + 1) * hd]                                   # (N, hd)
        if h < nh // 2:
            kh = k_even[:, h * hd:(h + 1) * hd]
        else:
            kh = k_odd[:, (h - nh // 2) * hd:(h - nh // 2 + 1) * hd]
        vh = v_all[:, h * hd:(h + 1) * hd]

        s = jax.lax.dot_general(qh, kh, (((1,), (1,)), ((), ())),
                                preferred_element_type=jnp.float32)          # (N, N)
        s = s - jnp.max(s, axis=-1, keepdims=True)
        e = jnp.exp(s)
        p = e * pl.reciprocal(jnp.sum(e, axis=-1, keepdims=True), approx=True)

        # lane-offset partial store of this head's attention map
        attn_ref[0, :, h * N:(h + 1) * N] = p

        o_h = jnp.dot(p, vh, preferred_element_type=jnp.float32)             # (N, hd)
        hp = h % (nh // 2)
        contrib = jnp.dot(o_h, projw[hp * hd:(hp + 1) * hd, :],
                          preferred_element_type=jnp.float32)                # (N, out_dim)
        if h < nh // 2:
            xo_e = xo_e + contrib
        else:
            xo_o = xo_o + contrib

    # --- token -> image reshape as 0/1-selection matmuls --------------------
    # t_mat[r, :] = proj(out) of the token that owns image row r (r = c*H + h)
    t_mat = (jnp.dot(rsel_e_ref[...], xo_e, preferred_element_type=jnp.float32)
             + jnp.dot(rsel_o_ref[...], xo_o,
                       preferred_element_type=jnp.float32))                  # (R, out_dim)
    msel = msel_ref[...]                                                     # (R, g)
    g = out_dim // img_w
    ximg = msel[:, 0:1] * t_mat[:, 0:img_w]
    for a in range(1, g):
        ximg = ximg + msel[:, a:a + 1] * t_mat[:, a * img_w:(a + 1) * img_w]  # (R, W)

    # --- 1x1 conv + bilinear x2 upsample (pre-folded matmuls), sigmoid, gate -
    r1 = jnp.dot(aw_ref[...], ximg, preferred_element_type=jnp.float32)      # (Cc*2H, W)
    up = jnp.dot(r1, awt_ref[...],
                 preferred_element_type=jnp.float32) + bup_ref[...]          # (Cc*2H, 2W)
    z = jnp.exp(-jnp.abs(up))
    inv = pl.reciprocal(1.0 + z, approx=True)
    sig = jnp.where(up >= 0, inv, z * inv)                                   # stable sigmoid
    y_ref[0] = sig * ctx_ref[0]


# ------------------------------- JAX glue -----------------------------------

def bilinear_matrix(in_size, out_size):
    """Row-interp matrix reproducing nn.Upsample(bilinear, align_corners=True)."""
    o = np.arange(out_size, dtype=np.float64)
    src = o * (in_size - 1) / (out_size - 1)
    i0 = np.clip(np.floor(src).astype(np.int64), 0, in_size - 2)
    frac = (src - i0).astype(np.float32)
    A = np.zeros((out_size, in_size), dtype=np.float32)
    A[np.arange(out_size), i0] = 1.0 - frac
    A[np.arange(out_size), i0 + 1] = frac
    return A


def patchify(x, p):
    """NCHW -> (B, num_patches, C*p*p), patch row-major over (i, j), inner (c,ph,pw)."""
    B, C, H, W = x.shape
    Hp, Wp = H // p, W // p
    x = x.reshape(B, C, Hp, p, Wp, p).transpose(0, 2, 4, 1, 3, 5)
    return x.reshape(B, Hp * Wp, C * p * p)


def init_params(key, *, embed_dim, in_chans, context_chans, patch_size,
                num_patches, out_dim):
    ks = jax.random.split(key, 11)
    s = 0.05
    pz = patch_size
    return {
        "pe_w": jax.random.normal(ks[0], (embed_dim, in_chans, pz, pz), jnp.float32) * s,
        "pe_b": jax.random.normal(ks[1], (embed_dim,), jnp.float32) * s,
        "pe_pos": jax.random.normal(ks[2], (1, num_patches, embed_dim), jnp.float32) * s,
        "ce_w": jax.random.normal(ks[3], (embed_dim, context_chans, pz, pz), jnp.float32) * s,
        "ce_b": jax.random.normal(ks[4], (embed_dim,), jnp.float32) * s,
        "ce_pos": jax.random.normal(ks[5], (1, num_patches, embed_dim), jnp.float32) * s,
        "qkv_w": jax.random.normal(ks[6], (3 * embed_dim, embed_dim), jnp.float32) * s,
        "proj_w": jax.random.normal(ks[7], (out_dim, embed_dim), jnp.float32) * s,
        "proj_b": jax.random.normal(ks[8], (out_dim,), jnp.float32) * s,
        "up_w": jax.random.normal(ks[9], (context_chans, context_chans, 1, 1), jnp.float32) * s,
        "up_b": jax.random.normal(ks[10], (context_chans,), jnp.float32) * s,
    }


def cross_attention_block_forward(params, img, context, *, embed_dim, num_heads,
                                  patch_size):
    B, Cin, H, W = img.shape
    _, Cc, Hc, Wc = context.shape
    pz = patch_size
    E = embed_dim
    nh = num_heads
    N = (H // pz) * (W // pz)                     # num_patches
    hd = 2 * E // nh                              # effective per-head dim (module quirk)
    out_dim = H * W * Cc // (N * 2)
    scale = float((E // nh) ** (-0.5))            # module uses C//nh, not 2C//nh
    g = out_dim // W
    R = Cc * H
    assert out_dim == g * W and R == 2 * N * g and N % 2 == 0
    # NOTE: pad_to_patch is a no-op (H,W divisible by patch); dropout p=0 -> identity.

    # ---- layout glue: patch extraction, maxpool, even/odd token packing ----
    patches_img = patchify(img, pz)                                       # (B,N,Kimg)
    ctx_pooled = context.reshape(B, Cc, Hc // 2, 2, Wc // 2, 2).max(axis=(3, 5))
    patches_ctx = patchify(ctx_pooled, pz)                                # (B,N,Kctx)
    Kimg, Kctx = patches_img.shape[-1], patches_ctx.shape[-1]

    img_aug = jnp.concatenate(
        [patches_img, jnp.zeros((B, N, Kctx), jnp.float32)], axis=-1)
    ctx_aug = jnp.concatenate(
        [jnp.zeros((B, N, Kimg), jnp.float32), patches_ctx], axis=-1)
    even = jnp.concatenate([img_aug[:, 0::2], ctx_aug[:, 0::2]], axis=1)
    odd = jnp.concatenate([img_aug[:, 1::2], ctx_aug[:, 1::2]], axis=1)
    big_patches = jnp.concatenate([even, odd], axis=1)                    # (B,2N,Kimg+Kctx)

    # ---- fold parameters into a few tiny kernel operands -------------------
    w_pe = params["pe_w"].reshape(E, Kimg).T
    w_ce = params["ce_w"].reshape(E, Kctx).T
    big_w = jnp.concatenate([w_pe, w_ce], axis=0)                         # (Kimg+Kctx, E)

    add_pe = params["pe_b"][None, :] + params["pe_pos"][0]                # (N, E)
    add_ce = params["ce_b"][None, :] + params["ce_pos"][0]
    big_add = jnp.concatenate(
        [jnp.concatenate([add_pe[0::2], add_ce[0::2]], axis=0),
         jnp.concatenate([add_pe[1::2], add_ce[1::2]], axis=0)], axis=0)  # (2N, E)

    wqkv_t = params["qkv_w"].T                                            # (E, 3E)
    proj_w_t = params["proj_w"].T                                         # (E, out_dim)

    # token -> image selection (r = c*H + h ; owning token t = r // g)
    rsel_e = np.zeros((R, N), np.float32)
    rsel_o = np.zeros((R, N), np.float32)
    msel = np.zeros((R, g), np.float32)
    for r in range(R):
        t = r // g
        if t % 2 == 0:
            rsel_e[r, t // 2] = 1.0
        else:
            rsel_o[r, t // 2] = 1.0
        msel[r, r % g] = 1.0

    # fold 1x1 conv + bilinear row/col interpolation + all remaining biases
    a_h = bilinear_matrix(H, 2 * H)                                       # (2H, H)
    a_w = bilinear_matrix(W, 2 * W)                                       # (2W, W)
    wk = jnp.kron(params["up_w"].reshape(Cc, Cc),
                  jnp.eye(H, dtype=jnp.float32))                          # (R, R)
    ablk = jnp.asarray(np.kron(np.eye(Cc, dtype=np.float32), a_h))        # (Cc*2H, R)
    aw_comb = ablk @ wk                                                   # (Cc*2H, R)
    b_img = jnp.tile(params["proj_b"].reshape(g, W), (2 * N, 1))          # (R, W)
    total_bias = wk @ b_img + jnp.repeat(params["up_b"], H)[:, None]      # (R, W)
    awt = jnp.asarray(a_w.T)                                              # (W, 2W)
    bias_up = ablk @ total_bias @ awt                                     # (Cc*2H, 2W)

    ctx_slab = context.reshape(B, Cc * Hc, Wc)                            # (B, Cc*2H, 2W)

    # ---- the single fused Pallas call --------------------------------------
    kern = functools.partial(_fused_kernel, num_heads=nh, head_dim=hd,
                             num_patches=N, embed_dim=E, out_dim=out_dim,
                             img_w=W, scale=scale)
    batch_map = lambda i: (i, 0, 0)
    shared_map = lambda i: (0, 0)

    y_slab, attn_slab = pl.pallas_call(
        kern,
        out_shape=(jax.ShapeDtypeStruct((B, Cc * Hc, Wc), jnp.float32),
                   jax.ShapeDtypeStruct((B, N, nh * N), jnp.float32)),
        grid=(B,),
        in_specs=[
            pl.BlockSpec((1, 2 * N, Kimg + Kctx), batch_map),   # packed patches
            pl.BlockSpec((1, Cc * Hc, Wc), batch_map),          # context slab
            pl.BlockSpec((Kimg + Kctx, E), shared_map),         # big_w
            pl.BlockSpec((2 * N, E), shared_map),               # big_add
            pl.BlockSpec((E, 3 * E), shared_map),               # qkv_w.T
            pl.BlockSpec((E, out_dim), shared_map),             # proj_w.T
            pl.BlockSpec((R, N), shared_map),                   # rsel_e
            pl.BlockSpec((R, N), shared_map),                   # rsel_o
            pl.BlockSpec((R, g), shared_map),                   # msel
            pl.BlockSpec((Cc * Hc, R), shared_map),             # aw_comb
            pl.BlockSpec((W, 2 * W), shared_map),               # awt
            pl.BlockSpec((Cc * Hc, Wc), shared_map),            # bias_up
        ],
        out_specs=(pl.BlockSpec((1, Cc * Hc, Wc), batch_map),
                   pl.BlockSpec((1, N, nh * N), batch_map)),
        compiler_params=pltpu.CompilerParams(dimension_semantics=("parallel",)),
    )(big_patches, ctx_slab, big_w, big_add, wqkv_t, proj_w_t,
      jnp.asarray(rsel_e), jnp.asarray(rsel_o), jnp.asarray(msel),
      aw_comb, awt, bias_up)

    y = y_slab.reshape(B, Cc, Hc, Wc)
    attn = attn_slab.reshape(B, N, nh, N).transpose(0, 2, 1, 3)
    return y, attn


# ------------------------ pure-JAX reference (checking) ----------------------

def reference_forward(params, img, context, *, embed_dim, num_heads, patch_size):
    B, C, H, W = img.shape
    _, Cc, Hc, Wc = context.shape
    pz = patch_size
    patches = patchify(img, pz)
    N = patches.shape[1]
    x = patches @ params["pe_w"].reshape(embed_dim, -1).T + params["pe_b"]
    x = x + params["pe_pos"]
    ctx_pooled = context.reshape(B, Cc, Hc // 2, 2, Wc // 2, 2).max(axis=(3, 5))
    cpatches = patchify(ctx_pooled, pz)
    ce = cpatches @ params["ce_w"].reshape(embed_dim, -1).T + params["ce_b"]
    ce = ce + params["ce_pos"]
    nh, Ce = num_heads, embed_dim
    hd2 = 2 * Ce // nh
    scale = (Ce // nh) ** (-0.5)
    xc = jnp.concatenate([x, ce], axis=1)
    qkv = (xc @ params["qkv_w"].T).reshape(B, N, 3, nh, hd2).transpose(2, 0, 3, 1, 4)
    q, k, v = qkv[0], qkv[1], qkv[2]
    attn = jax.nn.softmax(jnp.einsum("bhnd,bhmd->bhnm", q, k) * scale, axis=-1)
    out = jnp.einsum("bhnm,bhmd->bhnd", attn, v)
    xo = out.transpose(0, 2, 1, 3).reshape(B, 2 * N, Ce)
    xo = xo @ params["proj_w"].T + params["proj_b"][None, None, :]
    x_img = xo.reshape(B, Cc, H, W)
    conv = (jnp.einsum("oc,bchw->bohw", params["up_w"].reshape(Cc, Cc), x_img)
            + params["up_b"][None, :, None, None])
    a_h = jnp.asarray(bilinear_matrix(H, 2 * H))
    a_w = jnp.asarray(bilinear_matrix(W, 2 * W))
    up = jnp.einsum("oh,bchw,pw->bcop", a_h, conv, a_w)
    y = jax.nn.sigmoid(up) * context
    return y, attn


# ---------------------------------- main -------------------------------------

if __name__ == "__main__":
    B = 2
    in_chans = 3
    context_chans = 3
    H = W = 8                    # img_size
    Hc = Wc = 16                 # context at 2x resolution (maxpool(2) -> img size)
    patch_size = 4
    embed_dim = 32
    num_heads = 8
    num_patches = (H // patch_size) * (W // patch_size)
    out_dim = H * W * context_chans // (num_patches * 2)

    key = jax.random.PRNGKey(0)
    k_img, k_ctx, k_par = jax.random.split(key, 3)
    img = jax.random.normal(k_img, (B, in_chans, H, W), jnp.float32)
    context = jax.random.normal(k_ctx, (B, context_chans, Hc, Wc), jnp.float32)
    params = init_params(k_par, embed_dim=embed_dim, in_chans=in_chans,
                         context_chans=context_chans, patch_size=patch_size,
                         num_patches=num_patches, out_dim=out_dim)

    fwd = jax.jit(functools.partial(cross_attention_block_forward,
                                    embed_dim=embed_dim, num_heads=num_heads,
                                    patch_size=patch_size))
    y, attn = fwd(params, img, context)
    (y, attn) = jax.block_until_ready((y, attn))

    assert y.shape == (B, context_chans, Hc, Wc)
    assert attn.shape == (B, num_heads, num_patches, num_patches)

    y_ref, attn_ref = reference_forward(
        params, img, context, embed_dim=embed_dim, num_heads=num_heads,
        patch_size=patch_size)
    np.testing.assert_allclose(np.asarray(attn), np.asarray(attn_ref),
                               rtol=2e-2, atol=2e-2)
    np.testing.assert_allclose(np.asarray(y), np.asarray(y_ref),
                               rtol=2e-2, atol=2e-2)
    print("KERNEL_OK")
</pallas_src>

<mosaic_0001>
module attributes {stable_mosaic.version = 11 : i64} {
  func.func @_fused_kernel(%arg0: i32, %arg1: memref<1x8x96xf32, #tpu.memory_space<vmem>>, %arg2: memref<1x48x16xf32, #tpu.memory_space<vmem>>, %arg3: memref<96x32xf32, #tpu.memory_space<vmem>>, %arg4: memref<8x32xf32, #tpu.memory_space<vmem>>, %arg5: memref<32x96xf32, #tpu.memory_space<vmem>>, %arg6: memref<32x24xf32, #tpu.memory_space<vmem>>, %arg7: memref<24x4xf32, #tpu.memory_space<vmem>>, %arg8: memref<24x4xf32, #tpu.memory_space<vmem>>, %arg9: memref<24x3xf32, #tpu.memory_space<vmem>>, %arg10: memref<48x24xf32, #tpu.memory_space<vmem>>, %arg11: memref<8x16xf32, #tpu.memory_space<vmem>>, %arg12: memref<48x16xf32, #tpu.memory_space<vmem>>, %arg13: memref<1x48x16xf32, #tpu.memory_space<vmem>>, %arg14: memref<1x4x32xf32, #tpu.memory_space<vmem>>) attributes {dimension_semantics = [#tpu.dimension_semantics<parallel>], iteration_bounds = array<i64: 2>, scalar_prefetch = 0 : i64, scratch_operands = 0 : i64, tpu.core_type = #tpu.core_type<tc>, window_params = [{transform_indices = @transform_0, window_bounds = array<i64: 1, 8, 96>}, {transform_indices = @transform_1, window_bounds = array<i64: 1, 48, 16>}, {pipeline_mode = #tpu.pipeline_mode<synchronous>, transform_indices = @transform_2, window_bounds = array<i64: 96, 32>}, {pipeline_mode = #tpu.pipeline_mode<synchronous>, transform_indices = @transform_3, window_bounds = array<i64: 8, 32>}, {pipeline_mode = #tpu.pipeline_mode<synchronous>, transform_indices = @transform_4, window_bounds = array<i64: 32, 96>}, {pipeline_mode = #tpu.pipeline_mode<synchronous>, transform_indices = @transform_5, window_bounds = array<i64: 32, 24>}, {pipeline_mode = #tpu.pipeline_mode<synchronous>, transform_indices = @transform_6, window_bounds = array<i64: 24, 4>}, {pipeline_mode = #tpu.pipeline_mode<synchronous>, transform_indices = @transform_7, window_bounds = array<i64: 24, 4>}, {pipeline_mode = #tpu.pipeline_mode<synchronous>, transform_indices = @transform_8, window_bounds = array<i64: 24, 3>}, {pipeline_mode = #tpu.pipeline_mode<synchronous>, transform_indices = @transform_9, window_bounds = array<i64: 48, 24>}, {pipeline_mode = #tpu.pipeline_mode<synchronous>, transform_indices = @transform_10, window_bounds = array<i64: 8, 16>}, {pipeline_mode = #tpu.pipeline_mode<synchronous>, transform_indices = @transform_11, window_bounds = array<i64: 48, 16>}, {transform_indices = @transform_12, window_bounds = array<i64: 1, 48, 16>}, {transform_indices = @transform_13, window_bounds = array<i64: 1, 4, 32>}]} {
    %c0 = arith.constant 0 : index
    %c0_0 = arith.constant 0 : index
    %c0_1 = arith.constant 0 : index
    %0 = vector.load %arg1[%c0, %c0_0, %c0_1] : memref<1x8x96xf32, #tpu.memory_space<vmem>>, vector<1x8x96xf32>
    %1 = vector.shape_cast %0 : vector<1x8x96xf32> to vector<8x96xf32>
    %c0_2 = arith.constant 0 : index
    %c0_3 = arith.constant 0 : index
    %2 = vector.load %arg3[%c0_2, %c0_3] : memref<96x32xf32, #tpu.memory_space<vmem>>, vector<96x32xf32>
    %cst = arith.constant dense<0.000000e+00> : vector<8x32xf32>
    %3 = tpu.matmul %1, %2, %cst {dimension_numbers = #tpu.dot_dimension_numbers<[1], [0], [0], [1], [0, 0, 1, 1], [], []>} : vector<8x96xf32>, vector<96x32xf32>, vector<8x32xf32> -> vector<8x32xf32>
    %c0_4 = arith.constant 0 : index
    %c0_5 = arith.constant 0 : index
    %4 = vector.load %arg4[%c0_4, %c0_5] : memref<8x32xf32, #tpu.memory_space<vmem>>, vector<8x32xf32>
    %5 = arith.addf %3, %4 : vector<8x32xf32>
    %c0_6 = arith.constant 0 : index
    %c0_7 = arith.constant 0 : index
    %6 = vector.load %arg5[%c0_6, %c0_7] : memref<32x96xf32, #tpu.memory_space<vmem>>, vector<32x96xf32>
    %cst_8 = arith.constant dense<0.000000e+00> : vector<8x96xf32>
    %7 = tpu.matmul %5, %6, %cst_8 {dimension_numbers = #tpu.dot_dimension_numbers<[1], [0], [0], [1], [0, 0, 1, 1], [], []>} : vector<8x32xf32>, vector<32x96xf32>, vector<8x96xf32> -> vector<8x96xf32>
    %8 = vector.extract_strided_slice %7 {offsets = [0, 0], sizes = [4, 96], strides = [1, 1]} : vector<8x96xf32> to vector<4x96xf32>
    %9 = vector.extract_strided_slice %7 {offsets = [4, 0], sizes = [4, 96], strides = [1, 1]} : vector<8x96xf32> to vector<4x96xf32>
    %10 = vector.extract_strided_slice %8 {offsets = [0, 0], sizes = [4, 64], strides = [1, 1]} : vector<4x96xf32> to vector<4x64xf32>
    %cst_9 = arith.constant 5.000000e-01 : f32
    %11 = vector.broadcast %cst_9 : f32 to vector<4x64xf32>
    %12 = arith.mulf %10, %11 : vector<4x64xf32>
    %13 = vector.extract_strided_slice %8 {offsets = [0, 64], sizes = [4, 32], strides = [1, 1]} : vector<4x96xf32> to vector<4x32xf32>
    %14 = vector.extract_strided_slice %9 {offsets = [0, 0], sizes = [4, 32], strides = [1, 1]} : vector<4x96xf32> to vector<4x32xf32>
    %15 = vector.extract_strided_slice %9 {offsets = [0, 32], sizes = [4, 64], strides = [1, 1]} : vector<4x96xf32> to vector<4x64xf32>
    %c0_10 = arith.constant 0 : index
    %c0_11 = arith.constant 0 : index
    %16 = vector.load %arg6[%c0_10, %c0_11] : memref<32x24xf32, #tpu.memory_space<vmem>>, vector<32x24xf32>
    %cst_12 = arith.constant 0.000000e+00 : f32
    %17 = vector.broadcast %cst_12 : f32 to vector<4x24xf32>
    %cst_13 = arith.constant 0.000000e+00 : f32
    %18 = vector.broadcast %cst_13 : f32 to vector<4x24xf32>
    %19 = vector.extract_strided_slice %12 {offsets = [0, 0], sizes = [4, 8], strides = [1, 1]} : vector<4x64xf32> to vector<4x8xf32>
    %20 = vector.extract_strided_slice %13 {offsets = [0, 0], sizes = [4, 8], strides = [1, 1]} : vector<4x32xf32> to vector<4x8xf32>
    %21 = vector.extract_strided_slice %15 {offsets = [0, 0], sizes = [4, 8], strides = [1, 1]} : vector<4x64xf32> to vector<4x8xf32>
    %cst_14 = arith.constant dense<0.000000e+00> : vector<4x4xf32>
    %22 = tpu.matmul %19, %20, %cst_14 {dimension_numbers = #tpu.dot_dimension_numbers<[1], [1], [0], [0], [0, 0, 1, 0], [], []>} : vector<4x8xf32>, vector<4x8xf32>, vector<4x4xf32> -> vector<4x4xf32>
    %cst_15 = arith.constant dense<0xFF800000> : vector<4xf32>
    %23 = vector.multi_reduction <maximumf>, %22, %cst_15 [1] : vector<4x4xf32> to vector<4xf32>
    %24 = vector.shape_cast %23 : vector<4xf32> to vector<4x1xf32>
    %25 = vector.broadcast %24 : vector<4x1xf32> to vector<4x4xf32>
    %26 = arith.subf %22, %25 : vector<4x4xf32>
    %27 = math.exp %26 : vector<4x4xf32>
    %cst_16 = arith.constant dense<0.000000e+00> : vector<4xf32>
    %28 = vector.multi_reduction <add>, %27, %cst_16 [1] : vector<4x4xf32> to vector<4xf32>
    %29 = vector.shape_cast %28 : vector<4xf32> to vector<4x1xf32>
    %30 = tpu.reciprocal %29 {approx = true} : vector<4x1xf32> -> vector<4x1xf32>
    %31 = vector.broadcast %30 : vector<4x1xf32> to vector<4x4xf32>
    %32 = arith.mulf %27, %31 : vector<4x4xf32>
    %c0_17 = arith.constant 0 : index
    %c0_18 = arith.constant 0 : index
    %c0_19 = arith.constant 0 : index
    %33 = vector.load %arg14[%c0_17, %c0_18, %c0_19] : memref<1x4x32xf32, #tpu.memory_space<vmem>>, vector<1x4x4xf32>
    %34 = vector.shape_cast %33 : vector<1x4x4xf32> to vector<4x4xf32>
    %35 = vector.shape_cast %32 : vector<4x4xf32> to vector<1x4x4xf32>
    tpu.vector_store %arg14[%c0_17, %c0_18, %c0_19], %35 {strides = array<i32>} : memref<1x4x32xf32, #tpu.memory_space<vmem>>, vector<1x4x4xf32>,
    %cst_20 = arith.constant dense<0.000000e+00> : vector<4x8xf32>
    %36 = tpu.matmul %32, %21, %cst_20 {dimension_numbers = #tpu.dot_dimension_numbers<[1], [0], [0], [1], [0, 0, 1, 1], [], []>} : vector<4x4xf32>, vector<4x8xf32>, vector<4x8xf32> -> vector<4x8xf32>
    %37 = vector.extract_strided_slice %16 {offsets = [0, 0], sizes = [8, 24], strides = [1, 1]} : vector<32x24xf32> to vector<8x24xf32>
    %cst_21 = arith.constant dense<0.000000e+00> : vector<4x24xf32>
    %38 = tpu.matmul %36, %37, %cst_21 {dimension_numbers = #tpu.dot_dimension_numbers<[1], [0], [0], [1], [0, 0, 1, 1], [], []>} : vector<4x8xf32>, vector<8x24xf32>, vector<4x24xf32> -> vector<4x24xf32>
    %39 = arith.addf %17, %38 : vector<4x24xf32>
    %40 = vector.extract_strided_slice %12 {offsets = [0, 8], sizes = [4, 8], strides = [1, 1]} : vector<4x64xf32> to vector<4x8xf32>
    %41 = vector.extract_strided_slice %13 {offsets = [0, 8], sizes = [4, 8], strides = [1, 1]} : vector<4x32xf32> to vector<4x8xf32>
    %42 = vector.extract_strided_slice %15 {offsets = [0, 8], sizes = [4, 8], strides = [1, 1]} : vector<4x64xf32> to vector<4x8xf32>
    %cst_22 = arith.constant dense<0.000000e+00> : vector<4x4xf32>
    %43 = tpu.matmul %40, %41, %cst_22 {dimension_numbers = #tpu.dot_dimension_numbers<[1], [1], [0], [0], [0, 0, 1, 0], [], []>} : vector<4x8xf32>, vector<4x8xf32>, vector<4x4xf32> -> vector<4x4xf32>
    %cst_23 = arith.constant dense<0xFF800000> : vector<4xf32>
    %44 = vector.multi_reduction <maximumf>, %43, %cst_23 [1] : vector<4x4xf32> to vector<4xf32>
    %45 = vector.shape_cast %44 : vector<4xf32> to vector<4x1xf32>
    %46 = vector.broadcast %45 : vector<4x1xf32> to vector<4x4xf32>
    %47 = arith.subf %43, %46 : vector<4x4xf32>
    %48 = math.exp %47 : vector<4x4xf32>
    %cst_24 = arith.constant dense<0.000000e+00> : vector<4xf32>
    %49 = vector.multi_reduction <add>, %48, %cst_24 [1] : vector<4x4xf32> to vector<4xf32>
    %50 = vector.shape_cast %49 : vector<4xf32> to vector<4x1xf32>
    %51 = tpu.reciprocal %50 {approx = true} : vector<4x1xf32> -> vector<4x1xf32>
    %52 = vector.broadcast %51 : vector<4x1xf32> to vector<4x4xf32>
    %53 = arith.mulf %48, %52 : vector<4x4xf32>
    %c0_25 = arith.constant 0 : index
    %c0_26 = arith.constant 0 : index
    %c4 = arith.constant 4 : index
    %54 = vector.load %arg14[%c0_25, %c0_26, %c4] : memref<1x4x32xf32, #tpu.memory_space<vmem>>, vector<1x4x4xf32>
    %55 = vector.shape_cast %54 : vector<1x4x4xf32> to vector<4x4xf32>
    %56 = vector.shape_cast %53 : vector<4x4xf32> to vector<1x4x4xf32>
    tpu.vector_store %arg14[%c0_25, %c0_26, %c4], %56 {strides = array<i32>} : memref<1x4x32xf32, #tpu.memory_space<vmem>>, vector<1x4x4xf32>,
    %cst_27 = arith.constant dense<0.000000e+00> : vector<4x8xf32>
    %57 = tpu.matmul %53, %42, %cst_27 {dimension_numbers = #tpu.dot_dimension_numbers<[1], [0], [0], [1], [0, 0, 1, 1], [], []>} : vector<4x4xf32>, vector<4x8xf32>, vector<4x8xf32> -> vector<4x8xf32>
    %58 = vector.extract_strided_slice %16 {offsets = [8, 0], sizes = [8, 24], strides = [1, 1]} : vector<32x24xf32> to vector<8x24xf32>
    %cst_28 = arith.constant dense<0.000000e+00> : vector<4x24xf32>
    %59 = tpu.matmul %57, %58, %cst_28 {dimension_numbers = #tpu.dot_dimension_numbers<[1], [0], [0], [1], [0, 0, 1, 1], [], []>} : vector<4x8xf32>, vector<8x24xf32>, vector<4x24xf32> -> vector<4x24xf32>
    %60 = arith.addf %39, %59 : vector<4x24xf32>
    %61 = vector.extract_strided_slice %12 {offsets = [0, 16], sizes = [4, 8], strides = [1, 1]} : vector<4x64xf32> to vector<4x8xf32>
    %62 = vector.extract_strided_slice %13 {offsets = [0, 16], sizes = [4, 8], strides = [1, 1]} : vector<4x32xf32> to vector<4x8xf32>
    %63 = vector.extract_strided_slice %15 {offsets = [0, 16], sizes = [4, 8], strides = [1, 1]} : vector<4x64xf32> to vector<4x8xf32>
    %cst_29 = arith.constant dense<0.000000e+00> : vector<4x4xf32>
    %64 = tpu.matmul %61, %62, %cst_29 {dimension_numbers = #tpu.dot_dimension_numbers<[1], [1], [0], [0], [0, 0, 1, 0], [], []>} : vector<4x8xf32>, vector<4x8xf32>, vector<4x4xf32> -> vector<4x4xf32>
    %cst_30 = arith.constant dense<0xFF800000> : vector<4xf32>
    %65 = vector.multi_reduction <maximumf>, %64, %cst_30 [1] : vector<4x4xf32> to vector<4xf32>
    %66 = vector.shape_cast %65 : vector<4xf32> to vector<4x1xf32>
    %67 = vector.broadcast %66 : vector<4x1xf32> to vector<4x4xf32>
    %68 = arith.subf %64, %67 : vector<4x4xf32>
    %69 = math.exp %68 : vector<4x4xf32>
    %cst_31 = arith.constant dense<0.000000e+00> : vector<4xf32>
    %70 = vector.multi_reduction <add>, %69, %cst_31 [1] : vector<4x4xf32> to vector<4xf32>
    %71 = vector.shape_cast %70 : vector<4xf32> to vector<4x1xf32>
    %72 = tpu.reciprocal %71 {approx = true} : vector<4x1xf32> -> vector<4x1xf32>
    %73 = vector.broadcast %72 : vector<4x1xf32> to vector<4x4xf32>
    %74 = arith.mulf %69, %73 : vector<4x4xf32>
    %c0_32 = arith.constant 0 : index
    %c0_33 = arith.constant 0 : index
    %c8 = arith.constant 8 : index
    %75 = vector.load %arg14[%c0_32, %c0_33, %c8] : memref<1x4x32xf32, #tpu.memory_space<vmem>>, vector<1x4x4xf32>
    %76 = vector.shape_cast %75 : vector<1x4x4xf32> to vector<4x4xf32>
    %77 = vector.shape_cast %74 : vector<4x4xf32> to vector<1x4x4xf32>
    tpu.vector_store %arg14[%c0_32, %c0_33, %c8], %77 {strides = array<i32>} : memref<1x4x32xf32, #tpu.memory_space<vmem>>, vector<1x4x4xf32>,
    %cst_34 = arith.constant dense<0.000000e+00> : vector<4x8xf32>
    %78 = tpu.matmul %74, %63, %cst_34 {dimension_numbers = #tpu.dot_dimension_numbers<[1], [0], [0], [1], [0, 0, 1, 1], [], []>} : vector<4x4xf32>, vector<4x8xf32>, vector<4x8xf32> -> vector<4x8xf32>
    %79 = vector.extract_strided_slice %16 {offsets = [16, 0], sizes = [8, 24], strides = [1, 1]} : vector<32x24xf32> to vector<8x24xf32>
    %cst_35 = arith.constant dense<0.000000e+00> : vector<4x24xf32>
    %80 = tpu.matmul %78, %79, %cst_35 {dimension_numbers = #tpu.dot_dimension_numbers<[1], [0], [0], [1], [0, 0, 1, 1], [], []>} : vector<4x8xf32>, vector<8x24xf32>, vector<4x24xf32> -> vector<4x24xf32>
    %81 = arith.addf %60, %80 : vector<4x24xf32>
    %82 = vector.extract_strided_slice %12 {offsets = [0, 24], sizes = [4, 8], strides = [1, 1]} : vector<4x64xf32> to vector<4x8xf32>
    %83 = vector.extract_strided_slice %13 {offsets = [0, 24], sizes = [4, 8], strides = [1, 1]} : vector<4x32xf32> to vector<4x8xf32>
    %84 = vector.extract_strided_slice %15 {offsets = [0, 24], sizes = [4, 8], strides = [1, 1]} : vector<4x64xf32> to vector<4x8xf32>
    %cst_36 = arith.constant dense<0.000000e+00> : vector<4x4xf32>
    %85 = tpu.matmul %82, %83, %cst_36 {dimension_numbers = #tpu.dot_dimension_numbers<[1], [1], [0], [0], [0, 0, 1, 0], [], []>} : vector<4x8xf32>, vector<4x8xf32>, vector<4x4xf32> -> vector<4x4xf32>
    %cst_37 = arith.constant dense<0xFF800000> : vector<4xf32>
    %86 = vector.multi_reduction <maximumf>, %85, %cst_37 [1] : vector<4x4xf32> to vector<4xf32>
    %87 = vector.shape_cast %86 : vector<4xf32> to vector<4x1xf32>
    %88 = vector.broadcast %87 : vector<4x1xf32> to vector<4x4xf32>
    %89 = arith.subf %85, %88 : vector<4x4xf32>
    %90 = math.exp %89 : vector<4x4xf32>
    %cst_38 = arith.constant dense<0.000000e+00> : vector<4xf32>
    %91 = vector.multi_reduction <add>, %90, %cst_38 [1] : vector<4x4xf32> to vector<4xf32>
    %92 = vector.shape_cast %91 : vector<4xf32> to vector<4x1xf32>
    %93 = tpu.reciprocal %92 {approx = true} : vector<4x1xf32> -> vector<4x1xf32>
    %94 = vector.broadcast %93 : vector<4x1xf32> to vector<4x4xf32>
    %95 = arith.mulf %90, %94 : vector<4x4xf32>
    %c0_39 = arith.constant 0 : index
    %c0_40 = arith.constant 0 : index
    %c12 = arith.constant 12 : index
    %96 = vector.load %arg14[%c0_39, %c0_40, %c12] : memref<1x4x32xf32, #tpu.memory_space<vmem>>, vector<1x4x4xf32>
    %97 = vector.shape_cast %96 : vector<1x4x4xf32> to vector<4x4xf32>
    %98 = vector.shape_cast %95 : vector<4x4xf32> to vector<1x4x4xf32>
    tpu.vector_store %arg14[%c0_39, %c0_40, %c12], %98 {strides = array<i32>} : memref<1x4x32xf32, #tpu.memory_space<vmem>>, vector<1x4x4xf32>,
    %cst_41 = arith.constant dense<0.000000e+00> : vector<4x8xf32>
    %99 = tpu.matmul %95, %84, %cst_41 {dimension_numbers = #tpu.dot_dimension_numbers<[1], [0], [0], [1], [0, 0, 1, 1], [], []>} : vector<4x4xf32>, vector<4x8xf32>, vector<4x8xf32> -> vector<4x8xf32>
    %100 = vector.extract_strided_slice %16 {offsets = [24, 0], sizes = [8, 24], strides = [1, 1]} : vector<32x24xf32> to vector<8x24xf32>
    %cst_42 = arith.constant dense<0.000000e+00> : vector<4x24xf32>
    %101 = tpu.matmul %99, %100, %cst_42 {dimension_numbers = #tpu.dot_dimension_numbers<[1], [0], [0], [1], [0, 0, 1, 1], [], []>} : vector<4x8xf32>, vector<8x24xf32>, vector<4x24xf32> -> vector<4x24xf32>
    %102 = arith.addf %81, %101 : vector<4x24xf32>
    %103 = vector.extract_strided_slice %12 {offsets = [0, 32], sizes = [4, 8], strides = [1, 1]} : vector<4x64xf32> to vector<4x8xf32>
    %104 = vector.extract_strided_slice %14 {offsets = [0, 0], sizes = [4, 8], strides = [1, 1]} : vector<4x32xf32> to vector<4x8xf32>
    %105 = vector.extract_strided_slice %15 {offsets = [0, 32], sizes = [4, 8], strides = [1, 1]} : vector<4x64xf32> to vector<4x8xf32>
    %cst_43 = arith.constant dense<0.000000e+00> : vector<4x4xf32>
    %106 = tpu.matmul %103, %104, %cst_43 {dimension_numbers = #tpu.dot_dimension_numbers<[1], [1], [0], [0], [0, 0, 1, 0], [], []>} : vector<4x8xf32>, vector<4x8xf32>, vector<4x4xf32> -> vector<4x4xf32>
    %cst_44 = arith.constant dense<0xFF800000> : vector<4xf32>
    %107 = vector.multi_reduction <maximumf>, %106, %cst_44 [1] : vector<4x4xf32> to vector<4xf32>
    %108 = vector.shape_cast %107 : vector<4xf32> to vector<4x1xf32>
    %109 = vector.broadcast %108 : vector<4x1xf32> to vector<4x4xf32>
    %110 = arith.subf %106, %109 : vector<4x4xf32>
    %111 = math.exp %110 : vector<4x4xf32>
    %cst_45 = arith.constant dense<0.000000e+00> : vector<4xf32>
    %112 = vector.multi_reduction <add>, %111, %cst_45 [1] : vector<4x4xf32> to vector<4xf32>
    %113 = vector.shape_cast %112 : vector<4xf32> to vector<4x1xf32>
    %114 = tpu.reciprocal %113 {approx = true} : vector<4x1xf32> -> vector<4x1xf32>
    %115 = vector.broadcast %114 : vector<4x1xf32> to vector<4x4xf32>
    %116 = arith.mulf %111, %115 : vector<4x4xf32>
    %c0_46 = arith.constant 0 : index
    %c0_47 = arith.constant 0 : index
    %c16 = arith.constant 16 : index
    %117 = vector.load %arg14[%c0_46, %c0_47, %c16] : memref<1x4x32xf32, #tpu.memory_space<vmem>>, vector<1x4x4xf32>
    %118 = vector.shape_cast %117 : vector<1x4x4xf32> to vector<4x4xf32>
    %119 = vector.shape_cast %116 : vector<4x4xf32> to vector<1x4x4xf32>
    tpu.vector_store %arg14[%c0_46, %c0_47, %c16], %119 {strides = array<i32>} : memref<1x4x32xf32, #tpu.memory_space<vmem>>, vector<1x4x4xf32>,
    %cst_48 = arith.constant dense<0.000000e+00> : vector<4x8xf32>
    %120 = tpu.matmul %116, %105, %cst_48 {dimension_numbers = #tpu.dot_dimension_numbers<[1], [0], [0], [1], [0, 0, 1, 1], [], []>} : vector<4x4xf32>, vector<4x8xf32>, vector<4x8xf32> -> vector<4x8xf32>
    %121 = vector.extract_strided_slice %16 {offsets = [0, 0], sizes = [8, 24], strides = [1, 1]} : vector<32x24xf32> to vector<8x24xf32>
    %cst_49 = arith.constant dense<0.000000e+00> : vector<4x24xf32>
    %122 = tpu.matmul %120, %121, %cst_49 {dimension_numbers = #tpu.dot_dimension_numbers<[1], [0], [0], [1], [0, 0, 1, 1], [], []>} : vector<4x8xf32>, vector<8x24xf32>, vector<4x24xf32> -> vector<4x24xf32>
    %123 = arith.addf %18, %122 : vector<4x24xf32>
    %124 = vector.extract_strided_slice %12 {offsets = [0, 40], sizes = [4, 8], strides = [1, 1]} : vector<4x64xf32> to vector<4x8xf32>
    %125 = vector.extract_strided_slice %14 {offsets = [0, 8], sizes = [4, 8], strides = [1, 1]} : vector<4x32xf32> to vector<4x8xf32>
    %126 = vector.extract_strided_slice %15 {offsets = [0, 40], sizes = [4, 8], strides = [1, 1]} : vector<4x64xf32> to vector<4x8xf32>
    %cst_50 = arith.constant dense<0.000000e+00> : vector<4x4xf32>
    %127 = tpu.matmul %124, %125, %cst_50 {dimension_numbers = #tpu.dot_dimension_numbers<[1], [1], [0], [0], [0, 0, 1, 0], [], []>} : vector<4x8xf32>, vector<4x8xf32>, vector<4x4xf32> -> vector<4x4xf32>
    %cst_51 = arith.constant dense<0xFF800000> : vector<4xf32>
    %128 = vector.multi_reduction <maximumf>, %127, %cst_51 [1] : vector<4x4xf32> to vector<4xf32>
    %129 = vector.shape_cast %128 : vector<4xf32> to vector<4x1xf32>
    %130 = vector.broadcast %129 : vector<4x1xf32> to vector<4x4xf32>
    %131 = arith.subf %127, %130 : vector<4x4xf32>
    %132 = math.exp %131 : vector<4x4xf32>
    %cst_52 = arith.constant dense<0.000000e+00> : vector<4xf32>
    %133 = vector.multi_reduction <add>, %132, %cst_52 [1] : vector<4x4xf32> to vector<4xf32>
    %134 = vector.shape_cast %133 : vector<4xf32> to vector<4x1xf32>
    %135 = tpu.reciprocal %134 {approx = true} : vector<4x1xf32> -> vector<4x1xf32>
    %136 = vector.broadcast %135 : vector<4x1xf32> to vector<4x4xf32>
    %137 = arith.mulf %132, %136 : vector<4x4xf32>
    %c0_53 = arith.constant 0 : index
    %c0_54 = arith.constant 0 : index
    %c20 = arith.constant 20 : index
    %138 = vector.load %arg14[%c0_53, %c0_54, %c20] : memref<1x4x32xf32, #tpu.memory_space<vmem>>, vector<1x4x4xf32>
    %139 = vector.shape_cast %138 : vector<1x4x4xf32> to vector<4x4xf32>
    %140 = vector.shape_cast %137 : vector<4x4xf32> to vector<1x4x4xf32>
    tpu.vector_store %arg14[%c0_53, %c0_54, %c20], %140 {strides = array<i32>} : memref<1x4x32xf32, #tpu.memory_space<vmem>>, vector<1x4x4xf32>,
    %cst_55 = arith.constant dense<0.000000e+00> : vector<4x8xf32>
    %141 = tpu.matmul %137, %126, %cst_55 {dimension_numbers = #tpu.dot_dimension_numbers<[1], [0], [0], [1], [0, 0, 1, 1], [], []>} : vector<4x4xf32>, vector<4x8xf32>, vector<4x8xf32> -> vector<4x8xf32>
    %142 = vector.extract_strided_slice %16 {offsets = [8, 0], sizes = [8, 24], strides = [1, 1]} : vector<32x24xf32> to vector<8x24xf32>
    %cst_56 = arith.constant dense<0.000000e+00> : vector<4x24xf32>
    %143 = tpu.matmul %141, %142, %cst_56 {dimension_numbers = #tpu.dot_dimension_numbers<[1], [0], [0], [1], [0, 0, 1, 1], [], []>} : vector<4x8xf32>, vector<8x24xf32>, vector<4x24xf32> -> vector<4x24xf32>
    %144 = arith.addf %123, %143 : vector<4x24xf32>
    %145 = vector.extract_strided_slice %12 {offsets = [0, 48], sizes = [4, 8], strides = [1, 1]} : vector<4x64xf32> to vector<4x8xf32>
    %146 = vector.extract_strided_slice %14 {offsets = [0, 16], sizes = [4, 8], strides = [1, 1]} : vector<4x32xf32> to vector<4x8xf32>
    %147 = vector.extract_strided_slice %15 {offsets = [0, 48], sizes = [4, 8], strides = [1, 1]} : vector<4x64xf32> to vector<4x8xf32>
    %cst_57 = arith.constant dense<0.000000e+00> : vector<4x4xf32>
    %148 = tpu.matmul %145, %146, %cst_57 {dimension_numbers = #tpu.dot_dimension_numbers<[1], [1], [0], [0], [0, 0, 1, 0], [], []>} : vector<4x8xf32>, vector<4x8xf32>, vector<4x4xf32> -> vector<4x4xf32>
    %cst_58 = arith.constant dense<0xFF800000> : vector<4xf32>
    %149 = vector.multi_reduction <maximumf>, %148, %cst_58 [1] : vector<4x4xf32> to vector<4xf32>
    %150 = vector.shape_cast %149 : vector<4xf32> to vector<4x1xf32>
    %151 = vector.broadcast %150 : vector<4x1xf32> to vector<4x4xf32>
    %152 = arith.subf %148, %151 : vector<4x4xf32>
    %153 = math.exp %152 : vector<4x4xf32>
    %cst_59 = arith.constant dense<0.000000e+00> : vector<4xf32>
    %154 = vector.multi_reduction <add>, %153, %cst_59 [1] : vector<4x4xf32> to vector<4xf32>
    %155 = vector.shape_cast %154 : vector<4xf32> to vector<4x1xf32>
    %156 = tpu.reciprocal %155 {approx = true} : vector<4x1xf32> -> vector<4x1xf32>
    %157 = vector.broadcast %156 : vector<4x1xf32> to vector<4x4xf32>
    %158 = arith.mulf %153, %157 : vector<4x4xf32>
    %c0_60 = arith.constant 0 : index
    %c0_61 = arith.constant 0 : index
    %c24 = arith.constant 24 : index
    %159 = vector.load %arg14[%c0_60, %c0_61, %c24] : memref<1x4x32xf32, #tpu.memory_space<vmem>>, vector<1x4x4xf32>
    %160 = vector.shape_cast %159 : vector<1x4x4xf32> to vector<4x4xf32>
    %161 = vector.shape_cast %158 : vector<4x4xf32> to vector<1x4x4xf32>
    tpu.vector_store %arg14[%c0_60, %c0_61, %c24], %161 {strides = array<i32>} : memref<1x4x32xf32, #tpu.memory_space<vmem>>, vector<1x4x4xf32>,
    %cst_62 = arith.constant dense<0.000000e+00> : vector<4x8xf32>
    %162 = tpu.matmul %158, %147, %cst_62 {dimension_numbers = #tpu.dot_dimension_numbers<[1], [0], [0], [1], [0, 0, 1, 1], [], []>} : vector<4x4xf32>, vector<4x8xf32>, vector<4x8xf32> -> vector<4x8xf32>
    %163 = vector.extract_strided_slice %16 {offsets = [16, 0], sizes = [8, 24], strides = [1, 1]} : vector<32x24xf32> to vector<8x24xf32>
    %cst_63 = arith.constant dense<0.000000e+00> : vector<4x24xf32>
    %164 = tpu.matmul %162, %163, %cst_63 {dimension_numbers = #tpu.dot_dimension_numbers<[1], [0], [0], [1], [0, 0, 1, 1], [], []>} : vector<4x8xf32>, vector<8x24xf32>, vector<4x24xf32> -> vector<4x24xf32>
    %165 = arith.addf %144, %164 : vector<4x24xf32>
    %166 = vector.extract_strided_slice %12 {offsets = [0, 56], sizes = [4, 8], strides = [1, 1]} : vector<4x64xf32> to vector<4x8xf32>
    %167 = vector.extract_strided_slice %14 {offsets = [0, 24], sizes = [4, 8], strides = [1, 1]} : vector<4x32xf32> to vector<4x8xf32>
    %168 = vector.extract_strided_slice %15 {offsets = [0, 56], sizes = [4, 8], strides = [1, 1]} : vector<4x64xf32> to vector<4x8xf32>
    %cst_64 = arith.constant dense<0.000000e+00> : vector<4x4xf32>
    %169 = tpu.matmul %166, %167, %cst_64 {dimension_numbers = #tpu.dot_dimension_numbers<[1], [1], [0], [0], [0, 0, 1, 0], [], []>} : vector<4x8xf32>, vector<4x8xf32>, vector<4x4xf32> -> vector<4x4xf32>
    %cst_65 = arith.constant dense<0xFF800000> : vector<4xf32>
    %170 = vector.multi_reduction <maximumf>, %169, %cst_65 [1] : vector<4x4xf32> to vector<4xf32>
    %171 = vector.shape_cast %170 : vector<4xf32> to vector<4x1xf32>
    %172 = vector.broadcast %171 : vector<4x1xf32> to vector<4x4xf32>
    %173 = arith.subf %169, %172 : vector<4x4xf32>
    %174 = math.exp %173 : vector<4x4xf32>
    %cst_66 = arith.constant dense<0.000000e+00> : vector<4xf32>
    %175 = vector.multi_reduction <add>, %174, %cst_66 [1] : vector<4x4xf32> to vector<4xf32>
    %176 = vector.shape_cast %175 : vector<4xf32> to vector<4x1xf32>
    %177 = tpu.reciprocal %176 {approx = true} : vector<4x1xf32> -> vector<4x1xf32>
    %178 = vector.broadcast %177 : vector<4x1xf32> to vector<4x4xf32>
    %179 = arith.mulf %174, %178 : vector<4x4xf32>
    %c0_67 = arith.constant 0 : index
    %c0_68 = arith.constant 0 : index
    %c28 = arith.constant 28 : index
    %180 = vector.load %arg14[%c0_67, %c0_68, %c28] : memref<1x4x32xf32, #tpu.memory_space<vmem>>, vector<1x4x4xf32>
    %181 = vector.shape_cast %180 : vector<1x4x4xf32> to vector<4x4xf32>
    %182 = vector.shape_cast %179 : vector<4x4xf32> to vector<1x4x4xf32>
    tpu.vector_store %arg14[%c0_67, %c0_68, %c28], %182 {strides = array<i32>} : memref<1x4x32xf32, #tpu.memory_space<vmem>>, vector<1x4x4xf32>,
    %cst_69 = arith.constant dense<0.000000e+00> : vector<4x8xf32>
    %183 = tpu.matmul %179, %168, %cst_69 {dimension_numbers = #tpu.dot_dimension_numbers<[1], [0], [0], [1], [0, 0, 1, 1], [], []>} : vector<4x4xf32>, vector<4x8xf32>, vector<4x8xf32> -> vector<4x8xf32>
    %184 = vector.extract_strided_slice %16 {offsets = [24, 0], sizes = [8, 24], strides = [1, 1]} : vector<32x24xf32> to vector<8x24xf32>
    %cst_70 = arith.constant dense<0.000000e+00> : vector<4x24xf32>
    %185 = tpu.matmul %183, %184, %cst_70 {dimension_numbers = #tpu.dot_dimension_numbers<[1], [0], [0], [1], [0, 0, 1, 1], [], []>} : vector<4x8xf32>, vector<8x24xf32>, vector<4x24xf32> -> vector<4x24xf32>
    %186 = arith.addf %165, %185 : vector<4x24xf32>
    %c0_71 = arith.constant 0 : index
    %c0_72 = arith.constant 0 : index
    %187 = vector.load %arg7[%c0_71, %c0_72] : memref<24x4xf32, #tpu.memory_space<vmem>>, vector<24x4xf32>
    %cst_73 = arith.constant dense<0.000000e+00> : vector<24x24xf32>
    %188 = tpu.matmul %187, %102, %cst_73 {dimension_numbers = #tpu.dot_dimension_numbers<[1], [0], [0], [1], [0, 0, 1, 1], [], []>} : vector<24x4xf32>, vector<4x24xf32>, vector<24x24xf32> -> vector<24x24xf32>
    %c0_74 = arith.constant 0 : index
    %c0_75 = arith.constant 0 : index
    %189 = vector.load %arg8[%c0_74, %c0_75] : memref<24x4xf32, #tpu.memory_space<vmem>>, vector<24x4xf32>
    %cst_76 = arith.constant dense<0.000000e+00> : vector<24x24xf32>
    %190 = tpu.matmul %189, %186, %cst_76 {dimension_numbers = #tpu.dot_dimension_numbers<[1], [0], [0], [1], [0, 0, 1, 1], [], []>} : vector<24x4xf32>, vector<4x24xf32>, vector<24x24xf32> -> vector<24x24xf32>
    %191 = arith.addf %188, %190 : vector<24x24xf32>
    %c0_77 = arith.constant 0 : index
    %c0_78 = arith.constant 0 : index
    %192 = vector.load %arg9[%c0_77, %c0_78] : memref<24x3xf32, #tpu.memory_space<vmem>>, vector<24x3xf32>
    %193 = vector.extract_strided_slice %192 {offsets = [0, 0], sizes = [24, 1], strides = [1, 1]} : vector<24x3xf32> to vector<24x1xf32>
    %194 = vector.extract_strided_slice %191 {offsets = [0, 0], sizes = [24, 8], strides = [1, 1]} : vector<24x24xf32> to vector<24x8xf32>
    %195 = vector.broadcast %193 : vector<24x1xf32> to vector<24x8xf32>
    %196 = arith.mulf %195, %194 : vector<24x8xf32>
    %197 = vector.extract_strided_slice %192 {offsets = [0, 1], sizes = [24, 1], strides = [1, 1]} : vector<24x3xf32> to vector<24x1xf32>
    %198 = vector.extract_strided_slice %191 {offsets = [0, 8], sizes = [24, 8], strides = [1, 1]} : vector<24x24xf32> to vector<24x8xf32>
    %199 = vector.broadcast %197 : vector<24x1xf32> to vector<24x8xf32>
    %200 = arith.mulf %199, %198 : vector<24x8xf32>
    %201 = arith.addf %196, %200 : vector<24x8xf32>
    %202 = vector.extract_strided_slice %192 {offsets = [0, 2], sizes = [24, 1], strides = [1, 1]} : vector<24x3xf32> to vector<24x1xf32>
    %203 = vector.extract_strided_slice %191 {offsets = [0, 16], sizes = [24, 8], strides = [1, 1]} : vector<24x24xf32> to vector<24x8xf32>
    %204 = vector.broadcast %202 : vector<24x1xf32> to vector<24x8xf32>
    %205 = arith.mulf %204, %203 : vector<24x8xf32>
    %206 = arith.addf %201, %205 : vector<24x8xf32>
    %c0_79 = arith.constant 0 : index
    %c0_80 = arith.constant 0 : index
    %207 = vector.load %arg10[%c0_79, %c0_80] : memref<48x24xf32, #tpu.memory_space<vmem>>, vector<48x24xf32>
    %cst_81 = arith.constant dense<0.000000e+00> : vector<48x8xf32>
    %208 = tpu.matmul %207, %206, %cst_81 {dimension_numbers = #tpu.dot_dimension_numbers<[1], [0], [0], [1], [0, 0, 1, 1], [], []>} : vector<48x24xf32>, vector<24x8xf32>, vector<48x8xf32> -> vector<48x8xf32>
    %c0_82 = arith.constant 0 : index
    %c0_83 = arith.constant 0 : index
    %209 = vector.load %arg11[%c0_82, %c0_83] : memref<8x16xf32, #tpu.memory_space<vmem>>, vector<8x16xf32>
    %cst_84 = arith.constant dense<0.000000e+00> : vector<48x16xf32>
    %210 = tpu.matmul %208, %209, %cst_84 {dimension_numbers = #tpu.dot_dimension_numbers<[1], [0], [0], [1], [0, 0, 1, 1], [], []>} : vector<48x8xf32>, vector<8x16xf32>, vector<48x16xf32> -> vector<48x16xf32>
    %c0_85 = arith.constant 0 : index
    %c0_86 = arith.constant 0 : index
    %211 = vector.load %arg12[%c0_85, %c0_86] : memref<48x16xf32, #tpu.memory_space<vmem>>, vector<48x16xf32>
    %212 = arith.addf %210, %211 : vector<48x16xf32>
    %213 = math.absf %212 : vector<48x16xf32>
    %cst_87 = arith.constant 0.000000e+00 : f32
    %214 = vector.broadcast %cst_87 : f32 to vector<48x16xf32>
    %215 = arith.subf %214, %213 : vector<48x16xf32>
    %216 = math.exp %215 : vector<48x16xf32>
    %cst_88 = arith.constant 1.000000e+00 : f32
    %217 = vector.broadcast %cst_88 : f32 to vector<48x16xf32>
    %218 = arith.addf %217, %216 : vector<48x16xf32>
    %219 = tpu.reciprocal %218 {approx = true} : vector<48x16xf32> -> vector<48x16xf32>
    %cst_89 = arith.constant 0.000000e+00 : f32
    %220 = vector.broadcast %cst_89 : f32 to vector<48x16xf32>
    %221 = arith.cmpf oge, %212, %220 : vector<48x16xf32>
    %222 = arith.mulf %216, %219 : vector<48x16xf32>
    %223 = arith.select %221, %219, %222 : vector<48x16xi1>, vector<48x16xf32>
    %c0_90 = arith.constant 0 : index
    %c0_91 = arith.constant 0 : index
    %c0_92 = arith.constant 0 : index
    %224 = vector.load %arg2[%c0_90, %c0_91, %c0_92] : memref<1x48x16xf32, #tpu.memory_space<vmem>>, vector<1x48x16xf32>
    %225 = vector.shape_cast %224 : vector<1x48x16xf32> to vector<48x16xf32>
    %226 = arith.mulf %223, %225 : vector<48x16xf32>
    %c0_93 = arith.constant 0 : index
    %c0_94 = arith.constant 0 : index
    %c0_95 = arith.constant 0 : index
    %227 = vector.load %arg13[%c0_93, %c0_94, %c0_95] : memref<1x48x16xf32, #tpu.memory_space<vmem>>, vector<1x48x16xf32>
    %228 = vector.shape_cast %227 : vector<1x48x16xf32> to vector<48x16xf32>
    %229 = vector.shape_cast %226 : vector<48x16xf32> to vector<1x48x16xf32>
    tpu.vector_store %arg13[%c0_93, %c0_94, %c0_95], %229 {strides = array<i32>} : memref<1x48x16xf32, #tpu.memory_space<vmem>>, vector<1x48x16xf32>,
    return
  }
  func.func @transform_0(%arg0: i32) -> (i32, i32, i32) {
    %c0_i32 = arith.constant 0 : i32
    %c0_i32_0 = arith.constant 0 : i32
    %c0_i32_1 = arith.constant 0 : i32
    return %arg0, %c0_i32, %c0_i32_0 : i32, i32, i32
  }
  func.func @transform_1(%arg0: i32) -> (i32, i32, i32) {
    %c0_i32 = arith.constant 0 : i32
    %c0_i32_0 = arith.constant 0 : i32
    %c0_i32_1 = arith.constant 0 : i32
    return %arg0, %c0_i32, %c0_i32_0 : i32, i32, i32
  }
  func.func @transform_2(%arg0: i32) -> (i32, i32) {
    %c0_i32 = arith.constant 0 : i32
    %c0_i32_0 = arith.constant 0 : i32
    %c0_i32_1 = arith.constant 0 : i32
    return %c0_i32, %c0_i32_0 : i32, i32
  }
  func.func @transform_3(%arg0: i32) -> (i32, i32) {
    %c0_i32 = arith.constant 0 : i32
    %c0_i32_0 = arith.constant 0 : i32
    %c0_i32_1 = arith.constant 0 : i32
    return %c0_i32, %c0_i32_0 : i32, i32
  }
  func.func @transform_4(%arg0: i32) -> (i32, i32) {
    %c0_i32 = arith.constant 0 : i32
    %c0_i32_0 = arith.constant 0 : i32
    %c0_i32_1 = arith.constant 0 : i32
    return %c0_i32, %c0_i32_0 : i32, i32
  }
  func.func @transform_5(%arg0: i32) -> (i32, i32) {
    %c0_i32 = arith.constant 0 : i32
    %c0_i32_0 = arith.constant 0 : i32
    %c0_i32_1 = arith.constant 0 : i32
    return %c0_i32, %c0_i32_0 : i32, i32
  }
  func.func @transform_6(%arg0: i32) -> (i32, i32) {
    %c0_i32 = arith.constant 0 : i32
    %c0_i32_0 = arith.constant 0 : i32
    %c0_i32_1 = arith.constant 0 : i32
    return %c0_i32, %c0_i32_0 : i32, i32
  }
  func.func @transform_7(%arg0: i32) -> (i32, i32) {
    %c0_i32 = arith.constant 0 : i32
    %c0_i32_0 = arith.constant 0 : i32
    %c0_i32_1 = arith.constant 0 : i32
    return %c0_i32, %c0_i32_0 : i32, i32
  }
  func.func @transform_8(%arg0: i32) -> (i32, i32) {
    %c0_i32 = arith.constant 0 : i32
    %c0_i32_0 = arith.constant 0 : i32
    %c0_i32_1 = arith.constant 0 : i32
    return %c0_i32, %c0_i32_0 : i32, i32
  }
  func.func @transform_9(%arg0: i32) -> (i32, i32) {
    %c0_i32 = arith.constant 0 : i32
    %c0_i32_0 = arith.constant 0 : i32
    %c0_i32_1 = arith.constant 0 : i32
    return %c0_i32, %c0_i32_0 : i32, i32
  }
  func.func @transform_10(%arg0: i32) -> (i32, i32) {
    %c0_i32 = arith.constant 0 : i32
    %c0_i32_0 = arith.constant 0 : i32
    %c0_i32_1 = arith.constant 0 : i32
    return %c0_i32, %c0_i32_0 : i32, i32
  }
  func.func @transform_11(%arg0: i32) -> (i32, i32) {
    %c0_i32 = arith.constant 0 : i32
    %c0_i32_0 = arith.constant 0 : i32
    %c0_i32_1 = arith.constant 0 : i32
    return %c0_i32, %c0_i32_0 : i32, i32
  }
  func.func @transform_12(%arg0: i32) -> (i32, i32, i32) {
    %c0_i32 = arith.constant 0 : i32
    %c0_i32_0 = arith.constant 0 : i32
    %c0_i32_1 = arith.constant 0 : i32
    return %arg0, %c0_i32, %c0_i32_0 : i32, i32, i32
  }
  func.func @transform_13(%arg0: i32) -> (i32, i32, i32) {
    %c0_i32 = arith.constant 0 : i32
    %c0_i32_0 = arith.constant 0 : i32
    %c0_i32_1 = arith.constant 0 : i32
    return %arg0, %c0_i32, %c0_i32_0 : i32, i32, i32
  }
}

</mosaic_0001>

<llo_original>
// kernel: tile.7
$region0: #{tile.7}
  %s0 = inlined_call_operand.vmem [shape: bf16[8,3,8], index: 0, kind: input, shape index: {}]
  %s1 = inlined_call_operand.vmem [shape: bf16[24,8], index: 1, kind: output, shape index: {}]
  $region1: #{tile.7} parent=0
    #allocation0 [shape = 'u8[12288]{0}', space=vmem, size = 0x3000, scoped, tag = 'scoped mem for output reshape']
    #allocation1 [shape = 'u8[32768]{0}', space=vmem, size = 0x8000, scoped, tag = 'scoped mem for input reshape']
    %s3 = smul.u32 2, 2
    %s4 = sshllo.u32 0, %s3
    %s5 = smul.addr 2, 7
    %s6 = scalar_lea.vmem %s0, %s5
    %s7 = sshrl.u32 %s4, 1
    %s8 = sor.u32 %s4, %s7
    %s9 = sand.u32 %s8, 85
    %s10 = sshrl.u32 %s9, 1
    %s11 = sor.u32 %s9, %s10
    %s12 = sand.u32 51, %s11
    %s13 = sshrl.u32 %s12, 2
    %s14 = sor.u32 %s12, %s13
    %s15 = sand.u32 15, %s14
    %v16 = vld [vmem:[%s6] sm:%s15]
    %v17 = vunpack.c.l.bf16 %v16
    %v18 = vunpack.c.h.bf16 %v16
    %s19 = scalar_lea.vmem [#allocation1], 56
    %20 = vst [vmem:[%s19] sm:%s4] %v17
    %s21 = smul.addr 2, 6
    %s22 = scalar_lea.vmem %s0, %s21
    %s23 = sshrl.u32 %s4, 1
    %s24 = sor.u32 %s4, %s23
    %s25 = sand.u32 %s24, 85
    %s26 = sshrl.u32 %s25, 1
    %s27 = sor.u32 %s25, %s26
    %s28 = sand.u32 51, %s27
    %s29 = sshrl.u32 %s28, 2
    %s30 = sor.u32 %s28, %s29
    %s31 = sand.u32 15, %s30
    %v32 = vld [vmem:[%s22] sm:%s31]
    %v33 = vunpack.c.l.bf16 %v32
    %v34 = vunpack.c.h.bf16 %v32
    %s35 = scalar_lea.vmem [#allocation1], 48
    %36 = vst [vmem:[%s35] sm:%s4] %v33
    %s37 = smul.addr 2, 5
    %s38 = scalar_lea.vmem %s0, %s37
    %s39 = sshrl.u32 %s4, 1
    %s40 = sor.u32 %s4, %s39
    %s41 = sand.u32 %s40, 85
    %s42 = sshrl.u32 %s41, 1
    %s43 = sor.u32 %s41, %s42
    %s44 = sand.u32 51, %s43
    %s45 = sshrl.u32 %s44, 2
    %s46 = sor.u32 %s44, %s45
    %s47 = sand.u32 15, %s46
    %v48 = vld [vmem:[%s38] sm:%s47]
    %v49 = vunpack.c.l.bf16 %v48
    %v50 = vunpack.c.h.bf16 %v48
    %s51 = scalar_lea.vmem [#allocation1], 40
    %52 = vst [vmem:[%s51] sm:%s4] %v49
    %s53 = smul.addr 2, 4
    %s54 = scalar_lea.vmem %s0, %s53
    %s55 = sshrl.u32 %s4, 1
    %s56 = sor.u32 %s4, %s55
    %s57 = sand.u32 %s56, 85
    %s58 = sshrl.u32 %s57, 1
    %s59 = sor.u32 %s57, %s58
    %s60 = sand.u32 51, %s59
    %s61 = sshrl.u32 %s60, 2
    %s62 = sor.u32 %s60, %s61
    %s63 = sand.u32 15, %s62
    %v64 = vld [vmem:[%s54] sm:%s63]
    %v65 = vunpack.c.l.bf16 %v64
    %v66 = vunpack.c.h.bf16 %v64
    %s67 = scalar_lea.vmem [#allocation1], 32
    %68 = vst [vmem:[%s67] sm:%s4] %v65
    %s69 = smul.addr 2, 3
    %s70 = scalar_lea.vmem %s0, %s69
    %s71 = sshrl.u32 %s4, 1
    %s72 = sor.u32 %s4, %s71
    %s73 = sand.u32 %s72, 85
    %s74 = sshrl.u32 %s73, 1
    %s75 = sor.u32 %s73, %s74
    %s76 = sand.u32 51, %s75
    %s77 = sshrl.u32 %s76, 2
    %s78 = sor.u32 %s76, %s77
    %s79 = sand.u32 15, %s78
    %v80 = vld [vmem:[%s70] sm:%s79]
    %v81 = vunpack.c.l.bf16 %v80
    %v82 = vunpack.c.h.bf16 %v80
    %s83 = scalar_lea.vmem [#allocation1], 24
    %84 = vst [vmem:[%s83] sm:%s4] %v81
    %s85 = smul.addr 2, 2
    %s86 = scalar_lea.vmem %s0, %s85
    %s87 = sshrl.u32 %s4, 1
    %s88 = sor.u32 %s4, %s87
    %s89 = sand.u32 %s88, 85
    %s90 = sshrl.u32 %s89, 1
    %s91 = sor.u32 %s89, %s90
    %s92 = sand.u32 51, %s91
    %s93 = sshrl.u32 %s92, 2
    %s94 = sor.u32 %s92, %s93
    %s95 = sand.u32 15, %s94
    %v96 = vld [vmem:[%s86] sm:%s95]
    %v97 = vunpack.c.l.bf16 %v96
    %v98 = vunpack.c.h.bf16 %v96
    %s99 = scalar_lea.vmem [#allocation1], 16
    %100 = vst [vmem:[%s99] sm:%s4] %v97
    %s101 = scalar_lea.vmem %s0, 2
    %s102 = sshrl.u32 %s4, 1
    %s103 = sor.u32 %s4, %s102
    %s104 = sand.u32 %s103, 85
    %s105 = sshrl.u32 %s104, 1
    %s106 = sor.u32 %s104, %s105
    %s107 = sand.u32 51, %s106
    %s108 = sshrl.u32 %s107, 2
    %s109 = sor.u32 %s107, %s108
    %s110 = sand.u32 15, %s109
    %v111 = vld [vmem:[%s101] sm:%s110]
    %v112 = vunpack.c.l.bf16 %v111
    %v113 = vunpack.c.h.bf16 %v111
    %s114 = scalar_lea.vmem [#allocation1], 8
    %115 = vst [vmem:[%s114] sm:%s4] %v112
    %s116 = sshrl.u32 %s4, 1
    %s117 = sor.u32 %s4, %s116
    %s118 = sand.u32 %s117, 85
    %s119 = sshrl.u32 %s118, 1
    %s120 = sor.u32 %s118, %s119
    %s121 = sand.u32 51, %s120
    %s122 = sshrl.u32 %s121, 2
    %s123 = sor.u32 %s121, %s122
    %s124 = sand.u32 15, %s123
    %v125 = vld [vmem:[%s0] sm:%s124]
    %v126 = vunpack.c.l.bf16 %v125
    %v127 = vunpack.c.h.bf16 %v125
    %128 = vst [vmem:[#allocation1] sm:%s4] %v126
    %v129 = vld [vmem:[#allocation1] sm:$0x7]
    %vm130 = vcmask 64512
    %131 = vst.msk [vmem:[#allocation0] sm:$0x7] %vm130, %v129
    %s132 = scalar_lea.vmem [#allocation1], 8
    %v133 = vld [vmem:[%s132] sm:$0x7]
    %vm134 = vcmask 64512
    %s135 = scalar_lea.vmem [#allocation0], 3
    %136 = vst.msk [vmem:[%s135] sm:$0x7] %vm134, %v133
    %s137 = scalar_lea.vmem [#allocation1], 16
    %v138 = vld [vmem:[%s137] sm:$0x7]
    %vm139 = vcmask 64512
    %s140 = scalar_lea.vmem [#allocation0], 6
    %141 = vst.msk [vmem:[%s140] sm:$0x7] %vm139, %v138
    %s142 = scalar_lea.vmem [#allocation1], 24
    %v143 = vld [vmem:[%s142] sm:$0x7]
    %vm144 = vcmask 64512
    %s145 = scalar_lea.vmem [#allocation0], 9
    %146 = vst.msk [vmem:[%s145] sm:$0x7] %vm144, %v143
    %s147 = scalar_lea.vmem [#allocation1], 32
    %v148 = vld [vmem:[%s147] sm:$0x7]
    %vm149 = vcmask 64512
    %s150 = scalar_lea.vmem [#allocation0], 12
    %151 = vst.msk [vmem:[%s150] sm:$0x7] %vm149, %v148
    %s152 = scalar_lea.vmem [#allocation1], 40
    %v153 = vld [vmem:[%s152] sm:$0x7]
    %vm154 = vcmask 64512
    %s155 = scalar_lea.vmem [#allocation0], 15
    %156 = vst.msk [vmem:[%s155] sm:$0x7] %vm154, %v153
    %s157 = scalar_lea.vmem [#allocation1], 48
    %v158 = vld [vmem:[%s157] sm:$0x7]
    %vm159 = vcmask 64512
    %s160 = scalar_lea.vmem [#allocation0], 18
    %161 = vst.msk [vmem:[%s160] sm:$0x7] %vm159, %v158
    %s162 = scalar_lea.vmem [#allocation1], 56
    %v163 = vld [vmem:[%s162] sm:$0x7]
    %vm164 = vcmask 64512
    %s165 = scalar_lea.vmem [#allocation0], 21
    %166 = vst.msk [vmem:[%s165] sm:$0x7] %vm164, %v163
    %s168 = smul.u32 4, 2
    %s169 = sshllo.u32 0, %s168
    %s170 = sshrl.u32 %s168, 1
    %v171 = vld [vmem:[#allocation0] sm:%s169]
    %v172 = vpack.c.bf16 0.0, %v171
    %s173 = sshllo.u32 0, %s170
    %174 = vst [vmem:[%s1] sm:%s173] %v172
    %s175 = scalar_lea.vmem [#allocation0], 8
    %v176 = vld [vmem:[%s175] sm:%s169]
    %v177 = vpack.c.bf16 0.0, %v176
    %s178 = sshllo.u32 0, %s170
    %s179 = scalar_lea.vmem %s1, 4
    %180 = vst [vmem:[%s179] sm:%s178] %v177
    %s181 = scalar_lea.vmem [#allocation0], 16
    %v182 = vld [vmem:[%s181] sm:%s169]
    %v183 = vpack.c.bf16 0.0, %v182
    %s184 = sshllo.u32 0, %s170
    %s185 = smul.addr 4, 2
    %s186 = scalar_lea.vmem %s1, %s185
    %187 = vst [vmem:[%s186] sm:%s184] %v183

// kernel: cross_attention_block_forward.1
$region0: #{cross_attention_block_forward.1}
  #allocation0 [shape = 'u32[]', space=smem, size = 0x4, offset = 0x4, fixed_abs, tag = 'smem constant byte address 0x4 - core index']
  #allocation1 [shape = 'u32[144,128]{1,0:T(1,128)}', space=vmem, size = 0x12000, scoped, tag = 'internal scratch']
  %s0 = inlined_call_operand.vmem [shape: f32[2,8,96], index: 0, kind: input, shape index: {}]
  %s1 = inlined_call_operand.vmem [shape: f32[2,48,16], index: 1, kind: input, shape index: {}]
  %s2 = inlined_call_operand.vmem [shape: f32[96,32], index: 2, kind: input, shape index: {}]
  %s3 = inlined_call_operand.vmem [shape: f32[8,32], index: 3, kind: input, shape index: {}]
  %s4 = inlined_call_operand.vmem [shape: f32[32,96], index: 4, kind: input, shape index: {}]
  %s5 = inlined_call_operand.vmem [shape: f32[32,24], index: 5, kind: input, shape index: {}]
  %s6 = inlined_call_operand.vmem [shape: f32[24,4], index: 6, kind: input, shape index: {}]
  %s7 = inlined_call_operand.vmem [shape: f32[24,4], index: 7, kind: input, shape index: {}]
  %s8 = inlined_call_operand.vmem [shape: f32[24,3], index: 8, kind: input, shape index: {}]
  %s9 = inlined_call_operand.vmem [shape: f32[48,24], index: 9, kind: input, shape index: {}]
  %s10 = inlined_call_operand.vmem [shape: f32[8,16], index: 10, kind: input, shape index: {}]
  %s11 = inlined_call_operand.vmem [shape: f32[48,16], index: 11, kind: input, shape index: {}]
  %s12 = inlined_call_operand.hbm [shape: f32[2,48,16], index: 12, kind: output, shape index: {0}]
  %s13 = inlined_call_operand.vmem [shape: f32[2,4,32], index: 13, kind: output, shape index: {1}]
  %14 = xla_tuple %s12, %s13
  %s15 = sld [smem:[#allocation0]]
  $region89: #{cross_attention_block_forward.1} parent=0
    _
  %s17 = ssub.s32 1, %s15
  %s18 = scalar_select 0, %s17, %s15
  $region1: #{cross_attention_block_forward.1} parent=0
    #allocation2 [shape = 'u8[49152]{0}', space=vmem, size = 0xc000, scoped, tag = 'output window, operand 0']
    #allocation3 [shape = 's32[2]{0}', space=sflag, size = 0x8, scoped, tag = 'scoped memory for cross_attention_block_forward.1']
    %19 = vsyncpa [#allocation3], 0
    %s20 = scalar_lea.sflag [#allocation3], 1
    %21 = vsyncpa %s20, 0
    loop: start=0, step=1, limit=4
    $region2: #{cross_attention_block_forward.1} parent=1 // loop_pre_header
      _
    $region3: #{cross_attention_block_forward.1} parent=1 // loop_header
      %s23 = sphi 0, %s27
      %p24 = scmp.ge.s32.totalorder %s23, 4
      %s33 = sphi 0, %s35
      %s36 = sphi 0, %s33
      %s37 = sphi 0, %s36
      %s53 = sphi 0, %s37
      %s59 = sphi 0, %s61
      %s62 = sphi 0, %s59
      %s63 = sphi 0, %s62
      %s79 = sphi 0, %s63
      %s83 = sphi 0, %s83
      %s85 = sphi 0, %s83
      %s86 = sphi 0, %s85
      %s100 = sphi 0, %s86
      %s104 = sphi 0, %s104
      %s106 = sphi 0, %s104
      %s107 = sphi 0, %s106
      %s121 = sphi 0, %s107
      %s125 = sphi 0, %s125
      %s127 = sphi 0, %s125
      %s128 = sphi 0, %s127
      %s142 = sphi 0, %s128
      %s146 = sphi 0, %s146
      %s148 = sphi 0, %s146
      %s149 = sphi 0, %s148
      %s163 = sphi 0, %s149
      %s167 = sphi 0, %s167
      %s169 = sphi 0, %s167
      %s170 = sphi 0, %s169
      %s184 = sphi 0, %s170
      %s188 = sphi 0, %s188
      %s190 = sphi 0, %s188
      %s191 = sphi 0, %s190
      %s205 = sphi 0, %s191
      %s209 = sphi 0, %s209
      %s211 = sphi 0, %s209
      %s212 = sphi 0, %s211
      %s226 = sphi 0, %s212
      %s230 = sphi 0, %s230
      %s232 = sphi 0, %s230
      %s233 = sphi 0, %s232
      %s247 = sphi 0, %s233
      %s251 = sphi 0, %s251
      %s253 = sphi 0, %s251
      %s254 = sphi 0, %s253
      %s268 = sphi 0, %s254
      %s272 = sphi 0, %s272
      %s274 = sphi 0, %s272
      %s275 = sphi 0, %s274
      %s289 = sphi 0, %s275
      %s295 = sphi 0, %s297
      %s298 = sphi 0, %s295
      %s299 = sphi 0, %s298
      %s315 = sphi 0, %s299
      %s321 = sphi 0, %s323
      %s324 = sphi 0, %s321
      %s325 = sphi 0, %s324
      %s341 = sphi 0, %s325
    $region4: #{cross_attention_block_forward.1} parent=1 // loop_header_branch
      %26 = sbr.rel (%p24) target = $region8
    $region5: #{cross_attention_block_forward.1} parent=1 // loop_body
      %s28 = ssub.s32 %s23, 1
      %s29 = ssub.s32 %s23, 2
      %s30 = sadd.s32 %s23, 1
      %s31 = ssub.s32 %s23, %s30
      %p32 = scmp.eq.s32.totalorder %s31, 0
      %s34 = sadd.s32 %s33, 1
      %s35 = scalar_select %p32, %s33, %s34
      %p38 = pneg %p32
      %p39 = scmp.eq.s32.totalorder %s23, 1
      %p40 = por %p38, %p39
      %p41 = scmp.ne.s32.totalorder %s33, %s36
      %p42 = scmp.eq.s32.totalorder %s23, 0
      %p43 = por %p41, %p42
      %p44 = scmp.ne.s32.totalorder %s33, %s36
      %p45 = scmp.eq.s32.totalorder %s28, 1
      %p46 = por %p44, %p45
      %p47 = scmp.ne.s32.totalorder %s36, %s37
      %p48 = scmp.eq.s32.totalorder %s28, 0
      %p49 = por %p47, %p48
      %p50 = scmp.ne.s32.totalorder %s36, %s37
      %p51 = scmp.eq.s32.totalorder %s29, 1
      %p52 = por %p50, %p51
      %p54 = scmp.ne.s32.totalorder %s37, %s53
      %p55 = scmp.eq.s32.totalorder %s29, 0
      %p56 = por %p54, %p55
      %s57 = ssub.s32 %s23, %s30
      %p58 = scmp.eq.s32.totalorder %s57, 0
      %s60 = sadd.s32 %s59, 1
      %s61 = scalar_select %p58, %s59, %s60
      %p64 = pneg %p58
      %p65 = scmp.eq.s32.totalorder %s23, 1
      %p66 = por %p64, %p65
      %p67 = scmp.ne.s32.totalorder %s59, %s62
      %p68 = scmp.eq.s32.totalorder %s23, 0
      %p69 = por %p67, %p68
      %p70 = scmp.ne.s32.totalorder %s59, %s62
      %p71 = scmp.eq.s32.totalorder %s28, 1
      %p72 = por %p70, %p71
      %p73 = scmp.ne.s32.totalorder %s62, %s63
      %p74 = scmp.eq.s32.totalorder %s28, 0
      %p75 = por %p73, %p74
      %p76 = scmp.ne.s32.totalorder %s62, %s63
      %p77 = scmp.eq.s32.totalorder %s29, 1
      %p78 = por %p76, %p77
      %p80 = scmp.ne.s32.totalorder %s63, %s79
      %p81 = scmp.eq.s32.totalorder %s29, 0
      %p82 = por %p80, %p81
      %s84 = sadd.s32 %s83, 1
      %p87 = scmp.eq.s32.totalorder %s23, 1
      %p88 = scmp.ne.s32.totalorder %s83, %s85
      %p89 = scmp.eq.s32.totalorder %s23, 0
      %p90 = por %p88, %p89
      %p91 = scmp.ne.s32.totalorder %s83, %s85
      %p92 = scmp.eq.s32.totalorder %s28, 1
      %p93 = por %p91, %p92
      %p94 = scmp.ne.s32.totalorder %s85, %s86
      %p95 = scmp.eq.s32.totalorder %s28, 0
      %p96 = por %p94, %p95
      %p97 = scmp.ne.s32.totalorder %s85, %s86
      %p98 = scmp.eq.s32.totalorder %s29, 1
      %p99 = por %p97, %p98
      %p101 = scmp.ne.s32.totalorder %s86, %s100
      %p102 = scmp.eq.s32.totalorder %s29, 0
      %p103 = por %p101, %p102
      %s105 = sadd.s32 %s104, 1
      %p108 = scmp.eq.s32.totalorder %s23, 1
      %p109 = scmp.ne.s32.totalorder %s104, %s106
      %p110 = scmp.eq.s32.totalorder %s23, 0
      %p111 = por %p109, %p110
      %p112 = scmp.ne.s32.totalorder %s104, %s106
      %p113 = scmp.eq.s32.totalorder %s28, 1
      %p114 = por %p112, %p113
      %p115 = scmp.ne.s32.totalorder %s106, %s107
      %p116 = scmp.eq.s32.totalorder %s28, 0
      %p117 = por %p115, %p116
      %p118 = scmp.ne.s32.totalorder %s106, %s107
      %p119 = scmp.eq.s32.totalorder %s29, 1
      %p120 = por %p118, %p119
      %p122 = scmp.ne.s32.totalorder %s107, %s121
      %p123 = scmp.eq.s32.totalorder %s29, 0
      %p124 = por %p122, %p123
      %s126 = sadd.s32 %s125, 1
      %p129 = scmp.eq.s32.totalorder %s23, 1
      %p130 = scmp.ne.s32.totalorder %s125, %s127
      %p131 = scmp.eq.s32.totalorder %s23, 0
      %p132 = por %p130, %p131
      %p133 = scmp.ne.s32.totalorder %s125, %s127
      %p134 = scmp.eq.s32.totalorder %s28, 1
      %p135 = por %p133, %p134
      %p136 = scmp.ne.s32.totalorder %s127, %s128
      %p137 = scmp.eq.s32.totalorder %s28, 0
      %p138 = por %p136, %p137
      %p139 = scmp.ne.s32.totalorder %s127, %s128
      %p140 = scmp.eq.s32.totalorder %s29, 1
      %p141 = por %p139, %p140
      %p143 = scmp.ne.s32.totalorder %s128, %s142
      %p144 = scmp.eq.s32.totalorder %s29, 0
      %p145 = por %p143, %p144
      %s147 = sadd.s32 %s146, 1
      %p150 = scmp.eq.s32.totalorder %s23, 1
      %p151 = scmp.ne.s32.totalorder %s146, %s148
      %p152 = scmp.eq.s32.totalorder %s23, 0
      %p153 = por %p151, %p152
      %p154 = scmp.ne.s32.totalorder %s146, %s148
      %p155 = scmp.eq.s32.totalorder %s28, 1
      %p156 = por %p154, %p155
      %p157 = scmp.ne.s32.totalorder %s148, %s149
      %p158 = scmp.eq.s32.totalorder %s28, 0
      %p159 = por %p157, %p158
      %p160 = scmp.ne.s32.totalorder %s148, %s149
      %p161 = scmp.eq.s32.totalorder %s29, 1
      %p162 = por %p160, %p161
      %p164 = scmp.ne.s32.totalorder %s149, %s163
      %p165 = scmp.eq.s32.totalorder %s29, 0
      %p166 = por %p164, %p165
      %s168 = sadd.s32 %s167, 1
      %p171 = scmp.eq.s32.totalorder %s23, 1
      %p172 = scmp.ne.s32.totalorder %s167, %s169
      %p173 = scmp.eq.s32.totalorder %s23, 0
      %p174 = por %p172, %p173
      %p175 = scmp.ne.s32.totalorder %s167, %s169
      %p176 = scmp.eq.s32.totalorder %s28, 1
      %p177 = por %p175, %p176
      %p178 = scmp.ne.s32.totalorder %s169, %s170
      %p179 = scmp.eq.s32.totalorder %s28, 0
      %p180 = por %p178, %p179
      %p181 = scmp.ne.s32.totalorder %s169, %s170
      %p182 = scmp.eq.s32.totalorder %s29, 1
      %p183 = por %p181, %p182
      %p185 = scmp.ne.s32.totalorder %s170, %s184
      %p186 = scmp.eq.s32.totalorder %s29, 0
      %p187 = por %p185, %p186
      %s189 = sadd.s32 %s188, 1
      %p192 = scmp.eq.s32.totalorder %s23, 1
      %p193 = scmp.ne.s32.totalorder %s188, %s190
      %p194 = scmp.eq.s32.totalorder %s23, 0
      %p195 = por %p193, %p194
      %p196 = scmp.ne.s32.totalorder %s188, %s190
      %p197 = scmp.eq.s32.totalorder %s28, 1
      %p198 = por %p196, %p197
      %p199 = scmp.ne.s32.totalorder %s190, %s191
      %p200 = scmp.eq.s32.totalorder %s28, 0
      %p201 = por %p199, %p200
      %p202 = scmp.ne.s32.totalorder %s190, %s191
      %p203 = scmp.eq.s32.totalorder %s29, 1
      %p204 = por %p202, %p203
      %p206 = scmp.ne.s32.totalorder %s191, %s205
      %p207 = scmp.eq.s32.totalorder %s29, 0
      %p208 = por %p206, %p207
      %s210 = sadd.s32 %s209, 1
      %p213 = scmp.eq.s32.totalorder %s23, 1
      %p214 = scmp.ne.s32.totalorder %s209, %s211
      %p215 = scmp.eq.s32.totalorder %s23, 0
      %p216 = por %p214, %p215
      %p217 = scmp.ne.s32.totalorder %s209, %s211
      %p218 = scmp.eq.s32.totalorder %s28, 1
      %p219 = por %p217, %p218
      %p220 = scmp.ne.s32.totalorder %s211, %s212
      %p221 = scmp.eq.s32.totalorder %s28, 0
      %p222 = por %p220, %p221
      %p223 = scmp.ne.s32.totalorder %s211, %s212
      %p224 = scmp.eq.s32.totalorder %s29, 1
      %p225 = por %p223, %p224
      %p227 = scmp.ne.s32.totalorder %s212, %s226
      %p228 = scmp.eq.s32.totalorder %s29, 0
      %p229 = por %p227, %p228
      %s231 = sadd.s32 %s230, 1
      %p234 = scmp.eq.s32.totalorder %s23, 1
      %p235 = scmp.ne.s32.totalorder %s230, %s232
      %p236 = scmp.eq.s32.totalorder %s23, 0
      %p237 = por %p235, %p236
      %p238 = scmp.ne.s32.totalorder %s230, %s232
      %p239 = scmp.eq.s32.totalorder %s28, 1
      %p240 = por %p238, %p239
      %p241 = scmp.ne.s32.totalorder %s232, %s233
      %p242 = scmp.eq.s32.totalorder %s28, 0
      %p243 = por %p241, %p242
      %p244 = scmp.ne.s32.totalorder %s232, %s233
      %p245 = scmp.eq.s32.totalorder %s29, 1
      %p246 = por %p244, %p245
      %p248 = scmp.ne.s32.totalorder %s233, %s247
      %p249 = scmp.eq.s32.totalorder %s29, 0
      %p250 = por %p248, %p249
      %s252 = sadd.s32 %s251, 1
      %p255 = scmp.eq.s32.totalorder %s23, 1
      %p256 = scmp.ne.s32.totalorder %s251, %s253
      %p257 = scmp.eq.s32.totalorder %s23, 0
      %p258 = por %p256, %p257
      %p259 = scmp.ne.s32.totalorder %s251, %s253
      %p260 = scmp.eq.s32.totalorder %s28, 1
      %p261 = por %p259, %p260
      %p262 = scmp.ne.s32.totalorder %s253, %s254
      %p263 = scmp.eq.s32.totalorder %s28, 0
      %p264 = por %p262, %p263
      %p265 = scmp.ne.s32.totalorder %s253, %s254
      %p266 = scmp.eq.s32.totalorder %s29, 1
      %p267 = por %p265, %p266
      %p269 = scmp.ne.s32.totalorder %s254, %s268
      %p270 = scmp.eq.s32.totalorder %s29, 0
      %p271 = por %p269, %p270
      %s273 = sadd.s32 %s272, 1
      %p276 = scmp.eq.s32.totalorder %s23, 1
      %p277 = scmp.ne.s32.totalorder %s272, %s274
      %p278 = scmp.eq.s32.totalorder %s23, 0
      %p279 = por %p277, %p278
      %p280 = scmp.ne.s32.totalorder %s272, %s274
      %p281 = scmp.eq.s32.totalorder %s28, 1
      %p282 = por %p280, %p281
      %p283 = scmp.ne.s32.totalorder %s274, %s275
      %p284 = scmp.eq.s32.totalorder %s28, 0
      %p285 = por %p283, %p284
      %p286 = scmp.ne.s32.totalorder %s274, %s275
      %p287 = scmp.eq.s32.totalorder %s29, 1
      %p288 = por %p286, %p287
      %p290 = scmp.ne.s32.totalorder %s275, %s289
      %p291 = scmp.eq.s32.totalorder %s29, 0
      %p292 = por %p290, %p291
      %s293 = ssub.s32 %s23, %s30
      %p294 = scmp.eq.s32.totalorder %s293, 0
      %s296 = sadd.s32 %s295, 1
      %s297 = scalar_select %p294, %s295, %s296
      %p300 = pneg %p294
      %p301 = scmp.eq.s32.totalorder %s23, 1
      %p302 = por %p300, %p301
      %p303 = scmp.ne.s32.totalorder %s295, %s298
      %p304 = scmp.eq.s32.totalorder %s23, 0
      %p305 = por %p303, %p304
      %p306 = scmp.ne.s32.totalorder %s295, %s298
      %p307 = scmp.eq.s32.totalorder %s28, 1
      %p308 = por %p306, %p307
      %p309 = scmp.ne.s32.totalorder %s298, %s299
      %p310 = scmp.eq.s32.totalorder %s28, 0
      %p311 = por %p309, %p310
      %p312 = scmp.ne.s32.totalorder %s298, %s299
      %p313 = scmp.eq.s32.totalorder %s29, 1
      %p314 = por %p312, %p313
      %p316 = scmp.ne.s32.totalorder %s299, %s315
      %p317 = scmp.eq.s32.totalorder %s29, 0
      %p318 = por %p316, %p317
      %s319 = ssub.s32 %s23, %s30
      %p320 = scmp.eq.s32.totalorder %s319, 0
      %s322 = sadd.s32 %s321, 1
      %s323 = scalar_select %p320, %s321, %s322
      %p326 = pneg %p320
      %p327 = scmp.eq.s32.totalorder %s23, 1
      %p328 = por %p326, %p327
      %p329 = scmp.ne.s32.totalorder %s321, %s324
      %p330 = scmp.eq.s32.totalorder %s23, 0
      %p331 = por %p329, %p330
      %p332 = scmp.ne.s32.totalorder %s321, %s324
      %p333 = scmp.eq.s32.totalorder %s28, 1
      %p334 = por %p332, %p333
      %p335 = scmp.ne.s32.totalorder %s324, %s325
      %p336 = scmp.eq.s32.totalorder %s28, 0
      %p337 = por %p335, %p336
      %p338 = scmp.ne.s32.totalorder %s324, %s325
      %p339 = scmp.eq.s32.totalorder %s29, 1
      %p340 = por %p338, %p339
      %p342 = scmp.ne.s32.totalorder %s325, %s341
      %p343 = scmp.eq.s32.totalorder %s29, 0
      %p344 = por %p342, %p343
      %p345 = scmp.le.s32.totalorder 1, %s23
      %p346 = scmp.lt.s32.totalorder %s23, 3
      %p347 = pnand %p345, %p346
      %p348 = pneg %p347
      // Predicated region
      $region9: #{cross_attention_block_forward.1} parent=5 // pred_check
        _
      $region10: #{cross_attention_block_forward.1} parent=5 // pred_check_branch
        %350 = sbr.rel (%p347) target = $region12
      $region11: #{cross_attention_block_forward.1} parent=5 // pred_region
        %s351 = ssub.s32 %s23, 1
        // Predicated region
        $region13: #{cross_attention_block_forward.1} parent=11 // pred_check
          %p352 = pneg %p96
        $region14: #{cross_attention_block_forward.1} parent=11 // pred_check_branch
          %354 = sbr.rel (%p352) target = $region16
        $region15: #{cross_attention_block_forward.1} parent=11 // pred_region
          _
        $region16: #{cross_attention_block_forward.1} parent=11 // pred_fallthru
          _
        // Predicated region
        $region17: #{cross_attention_block_forward.1} parent=11 // pred_check
          %p355 = pneg %p117
        $region18: #{cross_attention_block_forward.1} parent=11 // pred_check_branch
          %357 = sbr.rel (%p355) target = $region20
        $region19: #{cross_attention_block_forward.1} parent=11 // pred_region
          _
        $region20: #{cross_attention_block_forward.1} parent=11 // pred_fallthru
          _
        // Predicated region
        $region21: #{cross_attention_block_forward.1} parent=11 // pred_check
          %p358 = pneg %p138
        $region22: #{cross_attention_block_forward.1} parent=11 // pred_check_branch
          %360 = sbr.rel (%p358) target = $region24
        $region23: #{cross_attention_block_forward.1} parent=11 // pred_region
          _
        $region24: #{cross_attention_block_forward.1} parent=11 // pred_fallthru
          _
        // Predicated region
        $region25: #{cross_attention_block_forward.1} parent=11 // pred_check
          %p361 = pneg %p159
        $region26: #{cross_attention_block_forward.1} parent=11 // pred_check_branch
          %363 = sbr.rel (%p361) target = $region28
        $region27: #{cross_attention_block_forward.1} parent=11 // pred_region
          _
        $region28: #{cross_attention_block_forward.1} parent=11 // pred_fallthru
          _
        // Predicated region
        $region29: #{cross_attention_block_forward.1} parent=11 // pred_check
          %p364 = pneg %p180
        $region30: #{cross_attention_block_forward.1} parent=11 // pred_check_branch
          %366 = sbr.rel (%p364) target = $region32
        $region31: #{cross_attention_block_forward.1} parent=11 // pred_region
          _
        $region32: #{cross_attention_block_forward.1} parent=11 // pred_fallthru
          _
        // Predicated region
        $region33: #{cross_attention_block_forward.1} parent=11 // pred_check
          %p367 = pneg %p201
        $region34: #{cross_attention_block_forward.1} parent=11 // pred_check_branch
          %369 = sbr.rel (%p367) target = $region36
        $region35: #{cross_attention_block_forward.1} parent=11 // pred_region
          _
        $region36: #{cross_attention_block_forward.1} parent=11 // pred_fallthru
          _
        // Predicated region
        $region37: #{cross_attention_block_forward.1} parent=11 // pred_check
          %p370 = pneg %p222
        $region38: #{cross_attention_block_forward.1} parent=11 // pred_check_branch
          %372 = sbr.rel (%p370) target = $region40
        $region39: #{cross_attention_block_forward.1} parent=11 // pred_region
          _
        $region40: #{cross_attention_block_forward.1} parent=11 // pred_fallthru
          _
        // Predicated region
        $region41: #{cross_attention_block_forward.1} parent=11 // pred_check
          %p373 = pneg %p243
        $region42: #{cross_attention_block_forward.1} parent=11 // pred_check_branch
          %375 = sbr.rel (%p373) target = $region44
        $region43: #{cross_attention_block_forward.1} parent=11 // pred_region
          _
        $region44: #{cross_attention_block_forward.1} parent=11 // pred_fallthru
          _
        // Predicated region
        $region45: #{cross_attention_block_forward.1} parent=11 // pred_check
          %p376 = pneg %p264
        $region46: #{cross_attention_block_forward.1} parent=11 // pred_check_branch
          %378 = sbr.rel (%p376) target = $region48
        $region47: #{cross_attention_block_forward.1} parent=11 // pred_region
          _
        $region48: #{cross_attention_block_forward.1} parent=11 // pred_fallthru
          _
        // Predicated region
        $region49: #{cross_attention_block_forward.1} parent=11 // pred_check
          %p379 = pneg %p285
        $region50: #{cross_attention_block_forward.1} parent=11 // pred_check_branch
          %381 = sbr.rel (%p379) target = $region52
        $region51: #{cross_attention_block_forward.1} parent=11 // pred_region
          _
        $region52: #{cross_attention_block_forward.1} parent=11 // pred_fallthru
          _
      $region12: #{cross_attention_block_forward.1} parent=5 // pred_fallthru
        _
      %p382 = scmp.lt.s32.totalorder %s23, 2
      // Predicated region
      $region53: #{cross_attention_block_forward.1} parent=5 // pred_check
        %p383 = pneg %p382
      $region54: #{cross_attention_block_forward.1} parent=5 // pred_check_branch
        %385 = sbr.rel (%p383) target = $region56
      $region55: #{cross_attention_block_forward.1} parent=5 // pred_region
        // Predicated region
        $region57: #{cross_attention_block_forward.1} parent=55 // pred_check
          %p386 = pneg %p43
        $region58: #{cross_attention_block_forward.1} parent=55 // pred_check_branch
          %388 = sbr.rel (%p386) target = $region60
        $region59: #{cross_attention_block_forward.1} parent=55 // pred_region
          %p389 = scmp.lt.s32.totalorder %s23, 1
          %s390 = scalar_select %p389, %s23, 1
          %s391 = smul.addr %s390, 8
          %s392 = scalar_lea.vmem %s0, %s391
        $region60: #{cross_attention_block_forward.1} parent=55 // pred_fallthru
          _
        // Predicated region
        $region61: #{cross_attention_block_forward.1} parent=55 // pred_check
          %p393 = pneg %p69
        $region62: #{cross_attention_block_forward.1} parent=55 // pred_check_branch
          %395 = sbr.rel (%p393) target = $region64
        $region63: #{cross_attention_block_forward.1} parent=55 // pred_region
          %p396 = scmp.lt.s32.totalorder %s23, 1
          %s397 = scalar_select %p396, %s23, 1
          %s398 = smul.addr %s397, 6
          %s399 = smul.addr %s398, 8
          %s400 = scalar_lea.vmem %s1, %s399
        $region64: #{cross_attention_block_forward.1} parent=55 // pred_fallthru
          _
      $region56: #{cross_attention_block_forward.1} parent=5 // pred_fallthru
        _
      %p401 = scmp.le.s32.totalorder 1, %s23
      %p402 = scmp.lt.s32.totalorder %s23, 3
      %p403 = pnand %p401, %p402
      %p404 = pneg %p403
      // Predicated region
      $region65: #{cross_attention_block_forward.1} parent=5 // pred_check
        _
      $region66: #{cross_attention_block_forward.1} parent=5 // pred_check_branch
        %406 = sbr.rel (%p403) target = $region68
      $region67: #{cross_attention_block_forward.1} parent=5 // pred_region
        %s407 = ssub.s32 %s23, 1
        %p408 = scmp.lt.s32.totalorder %s28, 1
        %s409 = scalar_select %p408, %s28, 1
        %s410 = smul.addr %s409, 8
        %s411 = scalar_lea.vmem %s0, %s410
        %p412 = pneg %p49
        %p413 = pneg %p46
        %p414 = scmp.lt.s32.totalorder %s28, 1
        %s415 = scalar_select %p414, %s28, 1
        %s416 = smul.addr %s415, 6
        %s417 = smul.addr %s416, 8
        %s418 = scalar_lea.vmem %s1, %s417
        %p419 = pneg %p75
        %p420 = pneg %p72
        %p421 = pneg %p96
        %p422 = pneg %p93
        %p423 = pneg %p117
        %p424 = pneg %p114
        %p425 = pneg %p138
        %p426 = pneg %p135
        %p427 = pneg %p159
        %p428 = pneg %p156
        %p429 = pneg %p180
        %p430 = pneg %p177
        %p431 = pneg %p201
        %p432 = pneg %p198
        %p433 = pneg %p222
        %p434 = pneg %p219
        %p435 = pneg %p243
        %p436 = pneg %p240
        %p437 = pneg %p264
        %p438 = pneg %p261
        %p439 = pneg %p285
        %p440 = pneg %p282
        %p441 = pneg %p311
        %p442 = pneg %p308
        %s443 = sand.u32 %s298, 1
        %s444 = scalar_lea.sflag [#allocation3], %s443
        %s445 = sand.u32 %s298, 1
        %s446 = smul.addr %s445, 48
        %s447 = scalar_lea.vmem [#allocation2], %s446
        %p448 = pneg %p337
        %p449 = pneg %p334
        %p450 = scmp.lt.s32.totalorder %s28, 1
        %s451 = scalar_select %p450, %s28, 1
        %s452 = smul.addr %s451, 4
        %s453 = scalar_lea.vmem %s13, %s452
        %p454 = scmp.lt.s32.totalorder %s28, 1
        %s455 = scalar_select %p454, %s28, 1
        %s456 = smul.addr %s455, 8
        %s457 = scalar_lea.vmem %s0, %s456
        %p458 = scmp.lt.s32.totalorder %s28, 1
        %s459 = scalar_select %p458, %s28, 1
        %s460 = smul.addr %s459, 6
        %s461 = smul.addr %s460, 8
        %s462 = scalar_lea.vmem %s1, %s461
        %p463 = scmp.lt.s32.totalorder %s28, 1
        %s464 = scalar_select %p463, %s28, 1
        %s465 = smul.addr %s464, 4
        %s466 = scalar_lea.vmem %s13, %s465
        %v467 = vld [vmem:[%s457] sm:$0xff]
        %v468 = vld [vmem:[%s2] sm:$0xff]
        %v469 = vld [vmem:[%s2 + $0x8] sm:$0xff]
        %v470 = vld [vmem:[%s2 + $0x10] sm:$0xff]
        %v471 = vld [vmem:[%s2 + $0x18] sm:$0xff]
        %v472 = vld [vmem:[%s2 + $0x20] sm:$0xff]
        %v473 = vld [vmem:[%s2 + $0x28] sm:$0xff]
        %v474 = vld [vmem:[%s2 + $0x30] sm:$0xff]
        %v475 = vld [vmem:[%s2 + $0x38] sm:$0xff]
        %v476 = vld [vmem:[%s2 + $0x40] sm:$0xff]
        %v477 = vld [vmem:[%s2 + $0x48] sm:$0xff]
        %v478 = vld [vmem:[%s2 + $0x50] sm:$0xff]
        %v479 = vld [vmem:[%s2 + $0x58] sm:$0xff]
        %v480 = vld [vmem:[%s3] sm:$0xff]
        %vm481 = vcmask 785408
        %v483 = vsel %vm481, %v467, 0
        %485 = vmatprep.subr.mxu0 0.0
        %486 = vmatpush1.msra.mxu0 %v468
        %487 = vmatprep.subr.mxu0 0.0
        %488 = vmatpush1.msra.mxu0 %v469
        %489 = vmatprep.subr.mxu0 0.0
        %490 = vmatpush1.msra.mxu0 %v470
        %491 = vmatprep.subr.mxu0 0.0
        %492 = vmatpush1.msra.mxu0 %v471
        %493 = vmatprep.subr.mxu0 0.0
        %494 = vmatpush1.msra.mxu0 %v472
        %495 = vmatprep.subr.mxu0 0.0
        %496 = vmatpush1.msra.mxu0 %v473
        %497 = vmatprep.subr.mxu0 0.0
        %498 = vmatpush1.msra.mxu0 %v474
        %499 = vmatprep.subr.mxu0 0.0
        %500 = vmatpush1.msra.mxu0 %v475
        %501 = vmatprep.subr.mxu0 0.0
        %502 = vmatpush1.msra.mxu0 %v476
        %503 = vmatprep.subr.mxu0 0.0
        %504 = vmatpush1.msra.mxu0 %v477
        %505 = vmatprep.subr.mxu0 0.0
        %506 = vmatpush1.msra.mxu0 %v478
        %507 = vmatprep.subr.mxu0 0.0
        %508 = vmatpush1.msra.mxu0 %v479
        %509 = vmatprep.subr.mxu0 0.0
        %510 = vmatpush1.msra.mxu0 0.0
        %511 = vmatprep.subr.mxu0 0.0
        %512 = vmatpush1.msra.mxu0 0.0
        %513 = vmatprep.subr.mxu0 0.0
        %514 = vmatpush1.msra.mxu0 0.0
        %515 = vmatprep.subr.mxu0 0.0
        %516 = vmatpush1.msra.mxu0 0.0
        %517 = vmatprep.subr.mxu0 0.0
        %518 = vmatpush1.msra.mxu0 0.0
        %519 = vmatprep.subr.mxu0 0.0
        %520 = vmatpush1.msra.mxu0 0.0
        %521 = vmatprep.subr.mxu0 0.0
        %522 = vmatpush1.msra.mxu0 0.0
        %523 = vmatprep.subr.mxu0 0.0
        %524 = vmatpush1.msra.mxu0 0.0
        %525 = vmatprep.subr.mxu0 0.0
        %526 = vmatpush1.msra.mxu0 0.0
        %527 = vmatprep.subr.mxu0 0.0
        %528 = vmatpush1.msra.mxu0 0.0
        %529 = vmatprep.subr.mxu0 0.0
        %530 = vmatpush1.msra.mxu0 0.0
        %531 = vmatprep.subr.mxu0 0.0
        %532 = vmatpush1.msra.mxu0 0.0
        %533 = vmatprep.subr.mxu0 0.0
        %534 = vmatpush1.msra.mxu0 0.0
        %535 = vmatprep.subr.mxu0 0.0
        %536 = vmatpush1.msra.mxu0 0.0
        %537 = vmatprep.subr.mxu0 0.0
        %538 = vmatpush1.msra.mxu0 0.0
        %539 = vmatprep.subr.mxu0 0.0
        %540 = vmatpush1.msra.mxu0 0.0
        %541 = vmatprep.subr.mxu0 0.0
        %542 = vmatpush1.msra.mxu0 0.0
        %543 = vmatprep.subr.mxu0 0.0
        %544 = vmatpush1.msra.mxu0 0.0
        %545 = vmatprep.subr.mxu0 0.0
        %546 = vmatpush1.msra.mxu0 0.0
        %547 = vmatprep.subr.mxu0 0.0
        %548 = vmatpush1.msra.mxu0 0.0
        %549 = vmatprep.mubr.f32.mxu0 0.0
        %550 = vmatmul.mubr.f32.gmra.mrb[0].mxu0 %v483
        %v551 = vpop.f32.mrb[0].mxu0
        %v552 = vadd.f32 %v480, %v551
        %v553 = vpop.f32.mrb[0].mxu0
        %554 = vdwg.mxu0
        %v555 = vld [vmem:[%s4] sm:$0xff]
        %v556 = vld [vmem:[%s4 + $0x8] sm:$0xff]
        %v557 = vld [vmem:[%s4 + $0x10] sm:$0xff]
        %v558 = vld [vmem:[%s4 + $0x18] sm:$0xff]
        %vm559 = vcmask 261120
        %v561 = vsel %vm559, %v552, 0
        %563 = vmatprep.subr.mxu0 0.0
        %564 = vmatpush1.msra.mxu0 %v555
        %565 = vmatprep.subr.mxu0 0.0
        %566 = vmatpush1.msra.mxu0 %v556
        %567 = vmatprep.subr.mxu0 0.0
        %568 = vmatpush1.msra.mxu0 %v557
        %569 = vmatprep.subr.mxu0 0.0
        %570 = vmatpush1.msra.mxu0 %v558
        %571 = vmatprep.subr.mxu0 0.0
        %572 = vmatpush1.msra.mxu0 0.0
        %573 = vmatprep.subr.mxu0 0.0
        %574 = vmatpush1.msra.mxu0 0.0
        %575 = vmatprep.subr.mxu0 0.0
        %576 = vmatpush1.msra.mxu0 0.0
        %577 = vmatprep.subr.mxu0 0.0
        %578 = vmatpush1.msra.mxu0 0.0
        %579 = vmatprep.subr.mxu0 0.0
        %580 = vmatpush1.msra.mxu0 0.0
        %581 = vmatprep.subr.mxu0 0.0
        %582 = vmatpush1.msra.mxu0 0.0
        %583 = vmatprep.subr.mxu0 0.0
        %584 = vmatpush1.msra.mxu0 0.0
        %585 = vmatprep.subr.mxu0 0.0
        %586 = vmatpush1.msra.mxu0 0.0
        %587 = vmatprep.subr.mxu0 0.0
        %588 = vmatpush1.msra.mxu0 0.0
        %589 = vmatprep.subr.mxu0 0.0
        %590 = vmatpush1.msra.mxu0 0.0
        %591 = vmatprep.subr.mxu0 0.0
        %592 = vmatpush1.msra.mxu0 0.0
        %593 = vmatprep.subr.mxu0 0.0
        %594 = vmatpush1.msra.mxu0 0.0
        %595 = vmatprep.subr.mxu0 0.0
        %596 = vmatpush1.msra.mxu0 0.0
        %597 = vmatprep.subr.mxu0 0.0
        %598 = vmatpush1.msra.mxu0 0.0
        %599 = vmatprep.subr.mxu0 0.0
        %600 = vmatpush1.msra.mxu0 0.0
        %601 = vmatprep.subr.mxu0 0.0
        %602 = vmatpush1.msra.mxu0 0.0
        %603 = vmatprep.subr.mxu0 0.0
        %604 = vmatpush1.msra.mxu0 0.0
        %605 = vmatprep.subr.mxu0 0.0
        %606 = vmatpush1.msra.mxu0 0.0
        %607 = vmatprep.subr.mxu0 0.0
        %608 = vmatpush1.msra.mxu0 0.0
        %609 = vmatprep.subr.mxu0 0.0
        %610 = vmatpush1.msra.mxu0 0.0
        %611 = vmatprep.subr.mxu0 0.0
        %612 = vmatpush1.msra.mxu0 0.0
        %613 = vmatprep.subr.mxu0 0.0
        %614 = vmatpush1.msra.mxu0 0.0
        %615 = vmatprep.subr.mxu0 0.0
        %616 = vmatpush1.msra.mxu0 0.0
        %617 = vmatprep.subr.mxu0 0.0
        %618 = vmatpush1.msra.mxu0 0.0
        %619 = vmatprep.subr.mxu0 0.0
        %620 = vmatpush1.msra.mxu0 0.0
        %621 = vmatprep.subr.mxu0 0.0
        %622 = vmatpush1.msra.mxu0 0.0
        %623 = vmatprep.subr.mxu0 0.0
        %624 = vmatpush1.msra.mxu0 0.0
        %625 = vmatprep.subr.mxu0 0.0
        %626 = vmatpush1.msra.mxu0 0.0
        %627 = vmatprep.mubr.f32.mxu0 0.0
        %628 = vmatmul.mubr.f32.gmra.mrb[0].mxu0 %v561
        %v629 = vpop.f32.mrb[0].mxu0
        %v630 = vadd.f32 0.0, %v629
        %v631 = vpop.f32.mrb[0].mxu0
        %632 = vdwg.mxu0
        %v633 = vmul.f32 %v630, 0.5
        %v634 = vld [vmem:[%s5] sm:$0xff]
        %v635 = vld [vmem:[%s5 + $0x8] sm:$0xff]
        %v636 = vld [vmem:[%s5 + $0x10] sm:$0xff]
        %v637 = vld [vmem:[%s5 + $0x18] sm:$0xff]
        %639 = vrot.lane.b32.xlu0 %v630, 64
        %v640 = vpop.permute.xlu0 %639
        %vm641 = vcmask 64512
        %v643 = vsel %vm641, %v633, 0
        %v645 = vsel %vm641, %v640, 0
        %647 = vmatprep.subr.mxu0 0.0
        %648 = vmatpush1.xpose.msra.mxu0 %v645
        %649 = vmatprep.subr.mxu0 0.0
        %650 = vmatpush1.xpose.msra.mxu0 0.0
        %651 = vmatprep.subr.mxu0 0.0
        %652 = vmatpush1.xpose.msra.mxu0 0.0
        %653 = vmatprep.subr.mxu0 0.0
        %654 = vmatpush1.xpose.msra.mxu0 0.0
        %655 = vmatprep.subr.mxu0 0.0
        %656 = vmatpush1.xpose.msra.mxu0 0.0
        %657 = vmatprep.subr.mxu0 0.0
        %658 = vmatpush1.xpose.msra.mxu0 0.0
        %659 = vmatprep.subr.mxu0 0.0
        %660 = vmatpush1.xpose.msra.mxu0 0.0
        %661 = vmatprep.subr.mxu0 0.0
        %662 = vmatpush1.xpose.msra.mxu0 0.0
        %663 = vmatprep.subr.mxu0 0.0
        %664 = vmatpush1.xpose.msra.mxu0 0.0
        %665 = vmatprep.subr.mxu0 0.0
        %666 = vmatpush1.xpose.msra.mxu0 0.0
        %667 = vmatprep.subr.mxu0 0.0
        %668 = vmatpush1.xpose.msra.mxu0 0.0
        %669 = vmatprep.subr.mxu0 0.0
        %670 = vmatpush1.xpose.msra.mxu0 0.0
        %671 = vmatprep.subr.mxu0 0.0
        %672 = vmatpush1.xpose.msra.mxu0 0.0
        %673 = vmatprep.subr.mxu0 0.0
        %674 = vmatpush1.xpose.msra.mxu0 0.0
        %675 = vmatprep.subr.mxu0 0.0
        %676 = vmatpush1.xpose.msra.mxu0 0.0
        %677 = vmatprep.subr.mxu0 0.0
        %678 = vmatpush1.xpose.msra.mxu0 0.0
        %679 = vmatprep.subr.mxu0 0.0
        %680 = vmatpush1.xpose.msra.mxu0 0.0
        %681 = vmatprep.subr.mxu0 0.0
        %682 = vmatpush1.xpose.msra.mxu0 0.0
        %683 = vmatprep.subr.mxu0 0.0
        %684 = vmatpush1.xpose.msra.mxu0 0.0
        %685 = vmatprep.subr.mxu0 0.0
        %686 = vmatpush1.xpose.msra.mxu0 0.0
        %687 = vmatprep.subr.mxu0 0.0
        %688 = vmatpush1.xpose.msra.mxu0 0.0
        %689 = vmatprep.subr.mxu0 0.0
        %690 = vmatpush1.xpose.msra.mxu0 0.0
        %691 = vmatprep.subr.mxu0 0.0
        %692 = vmatpush1.xpose.msra.mxu0 0.0
        %693 = vmatprep.subr.mxu0 0.0
        %694 = vmatpush1.xpose.msra.mxu0 0.0
        %695 = vmatprep.subr.mxu0 0.0
        %696 = vmatpush1.xpose.msra.mxu0 0.0
        %697 = vmatprep.subr.mxu0 0.0
        %698 = vmatpush1.xpose.msra.mxu0 0.0
        %699 = vmatprep.subr.mxu0 0.0
        %700 = vmatpush1.xpose.msra.mxu0 0.0
        %701 = vmatprep.subr.mxu0 0.0
        %702 = vmatpush1.xpose.msra.mxu0 0.0
        %703 = vmatprep.subr.mxu0 0.0
        %704 = vmatpush1.xpose.msra.mxu0 0.0
        %705 = vmatprep.subr.mxu0 0.0
        %706 = vmatpush1.xpose.msra.mxu0 0.0
        %707 = vmatprep.subr.mxu0 0.0
        %708 = vmatpush1.xpose.msra.mxu0 0.0
        %709 = vmatprep.subr.mxu0 0.0
        %710 = vmatpush1.xpose.msra.mxu0 0.0
        %711 = vmatprep.mubr.f32.mxu0 0.0
        %712 = vmatmul.mubr.f32.gmra.mrb[0].mxu0 %v643
        %v713 = vpop.f32.mrb[0].mxu0
        %v714 = vadd.f32 0.0, %v713
        %v715 = vpop.f32.mrb[0].mxu0
        %716 = vdwg.mxu0
        %vm717 = vcmask 27648
        %v718 = vsel %vm717, %v714, -inf
        %719 = vmax.xlane.f32.xlu0 %v718
        %v720 = vpop.xlane.xlu0 %719
        %v721 = vsub.f32 %v714, %v720
        %v722 = vmul.f32 %v721, 1.442695
        %v723 = vpow.pop %v722
        %v724 = vsel %vm717, %v723, 0.0
        %725 = vadd.xlane.f32.xlu0 %v724
        %v726 = vpop.xlane.xlu0 %725
        %v727 = vrcp.pop %v726
        %v728 = vmul.f32 %v723, %v727
        %729 = vst.msk [vmem:[%s466] sm:$0xf] %vm717, %v728
        %v730 = vrot.slane %v630, 4
        %731 = vrot.lane.b32.xlu0 %v730, 96
        %v732 = vpop.permute.xlu0 %731
        %vm733 = vcmask 31744
        %v735 = vsel %vm733, %v728, 0
        %vm737 = vcmask 1043456
        %v738 = vsel %vm737, %v732, 0
        %740 = vmatprep.subr.mxu0 0.0
        %741 = vmatpush1.msra.mxu0 %v738
        %742 = vmatprep.subr.mxu0 0.0
        %743 = vmatpush1.msra.mxu0 0.0
        %744 = vmatprep.subr.mxu0 0.0
        %745 = vmatpush1.msra.mxu0 0.0
        %746 = vmatprep.subr.mxu0 0.0
        %747 = vmatpush1.msra.mxu0 0.0
        %748 = vmatprep.subr.mxu0 0.0
        %749 = vmatpush1.msra.mxu0 0.0
        %750 = vmatprep.subr.mxu0 0.0
        %751 = vmatpush1.msra.mxu0 0.0
        %752 = vmatprep.subr.mxu0 0.0
        %753 = vmatpush1.msra.mxu0 0.0
        %754 = vmatprep.subr.mxu0 0.0
        %755 = vmatpush1.msra.mxu0 0.0
        %756 = vmatprep.subr.mxu0 0.0
        %757 = vmatpush1.msra.mxu0 0.0
        %758 = vmatprep.subr.mxu0 0.0
        %759 = vmatpush1.msra.mxu0 0.0
        %760 = vmatprep.subr.mxu0 0.0
        %761 = vmatpush1.msra.mxu0 0.0
        %762 = vmatprep.subr.mxu0 0.0
        %763 = vmatpush1.msra.mxu0 0.0
        %764 = vmatprep.subr.mxu0 0.0
        %765 = vmatpush1.msra.mxu0 0.0
        %766 = vmatprep.subr.mxu0 0.0
        %767 = vmatpush1.msra.mxu0 0.0
        %768 = vmatprep.subr.mxu0 0.0
        %769 = vmatpush1.msra.mxu0 0.0
        %770 = vmatprep.subr.mxu0 0.0
        %771 = vmatpush1.msra.mxu0 0.0
        %772 = vmatprep.subr.mxu0 0.0
        %773 = vmatpush1.msra.mxu0 0.0
        %774 = vmatprep.subr.mxu0 0.0
        %775 = vmatpush1.msra.mxu0 0.0
        %776 = vmatprep.subr.mxu0 0.0
        %777 = vmatpush1.msra.mxu0 0.0
        %778 = vmatprep.subr.mxu0 0.0
        %779 = vmatpush1.msra.mxu0 0.0
        %780 = vmatprep.subr.mxu0 0.0
        %781 = vmatpush1.msra.mxu0 0.0
        %782 = vmatprep.subr.mxu0 0.0
        %783 = vmatpush1.msra.mxu0 0.0
        %784 = vmatprep.subr.mxu0 0.0
        %785 = vmatpush1.msra.mxu0 0.0
        %786 = vmatprep.subr.mxu0 0.0
        %787 = vmatpush1.msra.mxu0 0.0
        %788 = vmatprep.subr.mxu0 0.0
        %789 = vmatpush1.msra.mxu0 0.0
        %790 = vmatprep.subr.mxu0 0.0
        %791 = vmatpush1.msra.mxu0 0.0
        %792 = vmatprep.subr.mxu0 0.0
        %793 = vmatpush1.msra.mxu0 0.0
        %794 = vmatprep.subr.mxu0 0.0
        %795 = vmatpush1.msra.mxu0 0.0
        %796 = vmatprep.subr.mxu0 0.0
        %797 = vmatpush1.msra.mxu0 0.0
        %798 = vmatprep.subr.mxu0 0.0
        %799 = vmatpush1.msra.mxu0 0.0
        %800 = vmatprep.subr.mxu0 0.0
        %801 = vmatpush1.msra.mxu0 0.0
        %802 = vmatprep.subr.mxu0 0.0
        %803 = vmatpush1.msra.mxu0 0.0
        %804 = vmatprep.mubr.f32.mxu0 0.0
        %805 = vmatmul.mubr.f32.gmra.mrb[0].mxu0 %v735
        %v806 = vpop.f32.mrb[0].mxu0
        %v807 = vadd.f32 0.0, %v806
        %v808 = vpop.f32.mrb[0].mxu0
        %809 = vdwg.mxu0
        %810 = vrot.lane.b32.xlu0 %v633, 120
        %v811 = vpop.permute.xlu0 %810
        %812 = vrot.lane.b32.xlu0 %v630, 56
        %v813 = vpop.permute.xlu0 %812
        %v814 = vsel %vm641, %v811, 0
        %v816 = vsel %vm641, %v813, 0
        %818 = vmatprep.subr.mxu0 0.0
        %819 = vmatpush1.xpose.msra.mxu0 %v816
        %820 = vmatprep.subr.mxu0 0.0
        %821 = vmatpush1.xpose.msra.mxu0 0.0
        %822 = vmatprep.subr.mxu0 0.0
        %823 = vmatpush1.xpose.msra.mxu0 0.0
        %824 = vmatprep.subr.mxu0 0.0
        %825 = vmatpush1.xpose.msra.mxu0 0.0
        %826 = vmatprep.subr.mxu0 0.0
        %827 = vmatpush1.xpose.msra.mxu0 0.0
        %828 = vmatprep.subr.mxu0 0.0
        %829 = vmatpush1.xpose.msra.mxu0 0.0
        %830 = vmatprep.subr.mxu0 0.0
        %831 = vmatpush1.xpose.msra.mxu0 0.0
        %832 = vmatprep.subr.mxu0 0.0
        %833 = vmatpush1.xpose.msra.mxu0 0.0
        %834 = vmatprep.subr.mxu0 0.0
        %835 = vmatpush1.xpose.msra.mxu0 0.0
        %836 = vmatprep.subr.mxu0 0.0
        %837 = vmatpush1.xpose.msra.mxu0 0.0
        %838 = vmatprep.subr.mxu0 0.0
        %839 = vmatpush1.xpose.msra.mxu0 0.0
        %840 = vmatprep.subr.mxu0 0.0
        %841 = vmatpush1.xpose.msra.mxu0 0.0
        %842 = vmatprep.subr.mxu0 0.0
        %843 = vmatpush1.xpose.msra.mxu0 0.0
        %844 = vmatprep.subr.mxu0 0.0
        %845 = vmatpush1.xpose.msra.mxu0 0.0
        %846 = vmatprep.subr.mxu0 0.0
        %847 = vmatpush1.xpose.msra.mxu0 0.0
        %848 = vmatprep.subr.mxu0 0.0
        %849 = vmatpush1.xpose.msra.mxu0 0.0
        %850 = vmatprep.subr.mxu0 0.0
        %851 = vmatpush1.xpose.msra.mxu0 0.0
        %852 = vmatprep.subr.mxu0 0.0
        %853 = vmatpush1.xpose.msra.mxu0 0.0
        %854 = vmatprep.subr.mxu0 0.0
        %855 = vmatpush1.xpose.msra.mxu0 0.0
        %856 = vmatprep.subr.mxu0 0.0
        %857 = vmatpush1.xpose.msra.mxu0 0.0
        %858 = vmatprep.subr.mxu0 0.0
        %859 = vmatpush1.xpose.msra.mxu0 0.0
        %860 = vmatprep.subr.mxu0 0.0
        %861 = vmatpush1.xpose.msra.mxu0 0.0
        %862 = vmatprep.subr.mxu0 0.0
        %863 = vmatpush1.xpose.msra.mxu0 0.0
        %864 = vmatprep.subr.mxu0 0.0
        %865 = vmatpush1.xpose.msra.mxu0 0.0
        %866 = vmatprep.subr.mxu0 0.0
        %867 = vmatpush1.xpose.msra.mxu0 0.0
        %868 = vmatprep.subr.mxu0 0.0
        %869 = vmatpush1.xpose.msra.mxu0 0.0
        %870 = vmatprep.subr.mxu0 0.0
        %871 = vmatpush1.xpose.msra.mxu0 0.0
        %872 = vmatprep.subr.mxu0 0.0
        %873 = vmatpush1.xpose.msra.mxu0 0.0
        %874 = vmatprep.subr.mxu0 0.0
        %875 = vmatpush1.xpose.msra.mxu0 0.0
        %876 = vmatprep.subr.mxu0 0.0
        %877 = vmatpush1.xpose.msra.mxu0 0.0
        %878 = vmatprep.subr.mxu0 0.0
        %879 = vmatpush1.xpose.msra.mxu0 0.0
        %880 = vmatprep.subr.mxu0 0.0
        %881 = vmatpush1.xpose.msra.mxu0 0.0
        %882 = vmatprep.mubr.f32.mxu0 0.0
        %883 = vmatmul.mubr.f32.gmra.mrb[0].mxu0 %v814
        %v884 = vpop.f32.mrb[0].mxu0
        %v885 = vadd.f32 0.0, %v884
        %v886 = vpop.f32.mrb[0].mxu0
        %887 = vdwg.mxu0
        %v888 = vsel %vm717, %v885, -inf
        %889 = vmax.xlane.f32.xlu0 %v888
        %v890 = vpop.xlane.xlu0 %889
        %v891 = vsub.f32 %v885, %v890
        %v892 = vmul.f32 %v891, 1.442695
        %v893 = vpow.pop %v892
        %v894 = vsel %vm717, %v893, 0.0
        %895 = vadd.xlane.f32.xlu0 %v894
        %v896 = vpop.xlane.xlu0 %895
        %v897 = vrcp.pop %v896
        %v898 = vmul.f32 %v893, %v897
        %900 = vrot.lane.b32.xlu0 %v898, 4
        %v901 = vpop.permute.xlu0 %900
        %vm903 = vcmask 60448
        %904 = vst.msk [vmem:[%s466] sm:$0xf] %vm903, %v901
        %905 = vrot.lane.b32.xlu0 %v730, 88
        %v906 = vpop.permute.xlu0 %905
        %v907 = vsel %vm733, %v898, 0
        %v909 = vsel %vm737, %v906, 0
        %911 = vmatprep.subr.mxu0 0.0
        %912 = vmatpush1.msra.mxu0 %v909
        %913 = vmatprep.subr.mxu0 0.0
        %914 = vmatpush1.msra.mxu0 0.0
        %915 = vmatprep.subr.mxu0 0.0
        %916 = vmatpush1.msra.mxu0 0.0
        %917 = vmatprep.subr.mxu0 0.0
        %918 = vmatpush1.msra.mxu0 0.0
        %919 = vmatprep.subr.mxu0 0.0
        %920 = vmatpush1.msra.mxu0 0.0
        %921 = vmatprep.subr.mxu0 0.0
        %922 = vmatpush1.msra.mxu0 0.0
        %923 = vmatprep.subr.mxu0 0.0
        %924 = vmatpush1.msra.mxu0 0.0
        %925 = vmatprep.subr.mxu0 0.0
        %926 = vmatpush1.msra.mxu0 0.0
        %927 = vmatprep.subr.mxu0 0.0
        %928 = vmatpush1.msra.mxu0 0.0
        %929 = vmatprep.subr.mxu0 0.0
        %930 = vmatpush1.msra.mxu0 0.0
        %931 = vmatprep.subr.mxu0 0.0
        %932 = vmatpush1.msra.mxu0 0.0
        %933 = vmatprep.subr.mxu0 0.0
        %934 = vmatpush1.msra.mxu0 0.0
        %935 = vmatprep.subr.mxu0 0.0
        %936 = vmatpush1.msra.mxu0 0.0
        %937 = vmatprep.subr.mxu0 0.0
        %938 = vmatpush1.msra.mxu0 0.0
        %939 = vmatprep.subr.mxu0 0.0
        %940 = vmatpush1.msra.mxu0 0.0
        %941 = vmatprep.subr.mxu0 0.0
        %942 = vmatpush1.msra.mxu0 0.0
        %943 = vmatprep.subr.mxu0 0.0
        %944 = vmatpush1.msra.mxu0 0.0
        %945 = vmatprep.subr.mxu0 0.0
        %946 = vmatpush1.msra.mxu0 0.0
        %947 = vmatprep.subr.mxu0 0.0
        %948 = vmatpush1.msra.mxu0 0.0
        %949 = vmatprep.subr.mxu0 0.0
        %950 = vmatpush1.msra.mxu0 0.0
        %951 = vmatprep.subr.mxu0 0.0
        %952 = vmatpush1.msra.mxu0 0.0
        %953 = vmatprep.subr.mxu0 0.0
        %954 = vmatpush1.msra.mxu0 0.0
        %955 = vmatprep.subr.mxu0 0.0
        %956 = vmatpush1.msra.mxu0 0.0
        %957 = vmatprep.subr.mxu0 0.0
        %958 = vmatpush1.msra.mxu0 0.0
        %959 = vmatprep.subr.mxu0 0.0
        %960 = vmatpush1.msra.mxu0 0.0
        %961 = vmatprep.subr.mxu0 0.0
        %962 = vmatpush1.msra.mxu0 0.0
        %963 = vmatprep.subr.mxu0 0.0
        %964 = vmatpush1.msra.mxu0 0.0
        %965 = vmatprep.subr.mxu0 0.0
        %966 = vmatpush1.msra.mxu0 0.0
        %967 = vmatprep.subr.mxu0 0.0
        %968 = vmatpush1.msra.mxu0 0.0
        %969 = vmatprep.subr.mxu0 0.0
        %970 = vmatpush1.msra.mxu0 0.0
        %971 = vmatprep.subr.mxu0 0.0
        %972 = vmatpush1.msra.mxu0 0.0
        %973 = vmatprep.subr.mxu0 0.0
        %974 = vmatpush1.msra.mxu0 0.0
        %975 = vmatprep.mubr.f32.mxu0 0.0
        %976 = vmatmul.mubr.f32.gmra.mrb[0].mxu0 %v907
        %v977 = vpop.f32.mrb[0].mxu0
        %v978 = vadd.f32 0.0, %v977
        %v979 = vpop.f32.mrb[0].mxu0
        %980 = vdwg.mxu0
        %v982 = vsel %vm641, %v978, 0
        %984 = vmatprep.subr.mxu0 0.0
        %985 = vmatpush1.msra.mxu0 %v635
        %986 = vmatprep.subr.mxu0 0.0
        %987 = vmatpush1.msra.mxu0 0.0
        %988 = vmatprep.subr.mxu0 0.0
        %989 = vmatpush1.msra.mxu0 0.0
        %990 = vmatprep.subr.mxu0 0.0
        %991 = vmatpush1.msra.mxu0 0.0
        %992 = vmatprep.subr.mxu0 0.0
        %993 = vmatpush1.msra.mxu0 0.0
        %994 = vmatprep.subr.mxu0 0.0
        %995 = vmatpush1.msra.mxu0 0.0
        %996 = vmatprep.subr.mxu0 0.0
        %997 = vmatpush1.msra.mxu0 0.0
        %998 = vmatprep.subr.mxu0 0.0
        %999 = vmatpush1.msra.mxu0 0.0
        %1000 = vmatprep.subr.mxu0 0.0
        %1001 = vmatpush1.msra.mxu0 0.0
        %1002 = vmatprep.subr.mxu0 0.0
        %1003 = vmatpush1.msra.mxu0 0.0
        %1004 = vmatprep.subr.mxu0 0.0
        %1005 = vmatpush1.msra.mxu0 0.0
        %1006 = vmatprep.subr.mxu0 0.0
        %1007 = vmatpush1.msra.mxu0 0.0
        %1008 = vmatprep.subr.mxu0 0.0
        %1009 = vmatpush1.msra.mxu0 0.0
        %1010 = vmatprep.subr.mxu0 0.0
        %1011 = vmatpush1.msra.mxu0 0.0
        %1012 = vmatprep.subr.mxu0 0.0
        %1013 = vmatpush1.msra.mxu0 0.0
        %1014 = vmatprep.subr.mxu0 0.0
        %1015 = vmatpush1.msra.mxu0 0.0
        %1016 = vmatprep.subr.mxu0 0.0
        %1017 = vmatpush1.msra.mxu0 0.0
        %1018 = vmatprep.subr.mxu0 0.0
        %1019 = vmatpush1.msra.mxu0 0.0
        %1020 = vmatprep.subr.mxu0 0.0
        %1021 = vmatpush1.msra.mxu0 0.0
        %1022 = vmatprep.subr.mxu0 0.0
        %1023 = vmatpush1.msra.mxu0 0.0
        %1024 = vmatprep.subr.mxu0 0.0
        %1025 = vmatpush1.msra.mxu0 0.0
        %1026 = vmatprep.subr.mxu0 0.0
        %1027 = vmatpush1.msra.mxu0 0.0
        %1028 = vmatprep.subr.mxu0 0.0
        %1029 = vmatpush1.msra.mxu0 0.0
        %1030 = vmatprep.subr.mxu0 0.0
        %1031 = vmatpush1.msra.mxu0 0.0
        %1032 = vmatprep.subr.mxu0 0.0
        %1033 = vmatpush1.msra.mxu0 0.0
        %1034 = vmatprep.subr.mxu0 0.0
        %1035 = vmatpush1.msra.mxu0 0.0
        %1036 = vmatprep.subr.mxu0 0.0
        %1037 = vmatpush1.msra.mxu0 0.0
        %1038 = vmatprep.subr.mxu0 0.0
        %1039 = vmatpush1.msra.mxu0 0.0
        %1040 = vmatprep.subr.mxu0 0.0
        %1041 = vmatpush1.msra.mxu0 0.0
        %1042 = vmatprep.subr.mxu0 0.0
        %1043 = vmatpush1.msra.mxu0 0.0
        %1044 = vmatprep.subr.mxu0 0.0
        %1045 = vmatpush1.msra.mxu0 0.0
        %1046 = vmatprep.subr.mxu0 0.0
        %1047 = vmatpush1.msra.mxu0 0.0
        %1048 = vmatprep.mubr.f32.mxu0 0.0
        %1049 = vmatmul.mubr.f32.gmra.mrb[0].mxu0 %v982
        %v1050 = vpop.f32.mrb[0].mxu0
        %v1051 = vadd.f32 0.0, %v1050
        %v1052 = vpop.f32.mrb[0].mxu0
        %1053 = vdwg.mxu0
        %v1055 = vsel %vm641, %v807, 0
        %1057 = vmatprep.subr.mxu0 0.0
        %1058 = vmatpush1.msra.mxu0 %v634
        %1059 = vmatprep.subr.mxu0 0.0
        %1060 = vmatpush1.msra.mxu0 0.0
        %1061 = vmatprep.subr.mxu0 0.0
        %1062 = vmatpush1.msra.mxu0 0.0
        %1063 = vmatprep.subr.mxu0 0.0
        %1064 = vmatpush1.msra.mxu0 0.0
        %1065 = vmatprep.subr.mxu0 0.0
        %1066 = vmatpush1.msra.mxu0 0.0
        %1067 = vmatprep.subr.mxu0 0.0
        %1068 = vmatpush1.msra.mxu0 0.0
        %1069 = vmatprep.subr.mxu0 0.0
        %1070 = vmatpush1.msra.mxu0 0.0
        %1071 = vmatprep.subr.mxu0 0.0
        %1072 = vmatpush1.msra.mxu0 0.0
        %1073 = vmatprep.subr.mxu0 0.0
        %1074 = vmatpush1.msra.mxu0 0.0
        %1075 = vmatprep.subr.mxu0 0.0
        %1076 = vmatpush1.msra.mxu0 0.0
        %1077 = vmatprep.subr.mxu0 0.0
        %1078 = vmatpush1.msra.mxu0 0.0
        %1079 = vmatprep.subr.mxu0 0.0
        %1080 = vmatpush1.msra.mxu0 0.0
        %1081 = vmatprep.subr.mxu0 0.0
        %1082 = vmatpush1.msra.mxu0 0.0
        %1083 = vmatprep.subr.mxu0 0.0
        %1084 = vmatpush1.msra.mxu0 0.0
        %1085 = vmatprep.subr.mxu0 0.0
        %1086 = vmatpush1.msra.mxu0 0.0
        %1087 = vmatprep.subr.mxu0 0.0
        %1088 = vmatpush1.msra.mxu0 0.0
        %1089 = vmatprep.subr.mxu0 0.0
        %1090 = vmatpush1.msra.mxu0 0.0
        %1091 = vmatprep.subr.mxu0 0.0
        %1092 = vmatpush1.msra.mxu0 0.0
        %1093 = vmatprep.subr.mxu0 0.0
        %1094 = vmatpush1.msra.mxu0 0.0
        %1095 = vmatprep.subr.mxu0 0.0
        %1096 = vmatpush1.msra.mxu0 0.0
        %1097 = vmatprep.subr.mxu0 0.0
        %1098 = vmatpush1.msra.mxu0 0.0
        %1099 = vmatprep.subr.mxu0 0.0
        %1100 = vmatpush1.msra.mxu0 0.0
        %1101 = vmatprep.subr.mxu0 0.0
        %1102 = vmatpush1.msra.mxu0 0.0
        %1103 = vmatprep.subr.mxu0 0.0
        %1104 = vmatpush1.msra.mxu0 0.0
        %1105 = vmatprep.subr.mxu0 0.0
        %1106 = vmatpush1.msra.mxu0 0.0
        %1107 = vmatprep.subr.mxu0 0.0
        %1108 = vmatpush1.msra.mxu0 0.0
        %1109 = vmatprep.subr.mxu0 0.0
        %1110 = vmatpush1.msra.mxu0 0.0
        %1111 = vmatprep.subr.mxu0 0.0
        %1112 = vmatpush1.msra.mxu0 0.0
        %1113 = vmatprep.subr.mxu0 0.0
        %1114 = vmatpush1.msra.mxu0 0.0
        %1115 = vmatprep.subr.mxu0 0.0
        %1116 = vmatpush1.msra.mxu0 0.0
        %1117 = vmatprep.subr.mxu0 0.0
        %1118 = vmatpush1.msra.mxu0 0.0
        %1119 = vmatprep.subr.mxu0 0.0
        %1120 = vmatpush1.msra.mxu0 0.0
        %1121 = vmatprep.mubr.f32.mxu0 0.0
        %1122 = vmatmul.mubr.f32.gmra.mrb[0].mxu0 %v1055
        %v1123 = vpop.f32.mrb[0].mxu0
        %v1124 = vadd.f32 %v1051, %v1123
        %v1125 = vpop.f32.mrb[0].mxu0
        %1126 = vdwg.mxu0
        %1127 = vrot.lane.b32.xlu0 %v633, 112
        %v1128 = vpop.permute.xlu0 %1127
        %1129 = vrot.lane.b32.xlu0 %v630, 48
        %v1130 = vpop.permute.xlu0 %1129
        %v1131 = vsel %vm641, %v1128, 0
        %v1133 = vsel %vm641, %v1130, 0
        %1135 = vmatprep.subr.mxu0 0.0
        %1136 = vmatpush1.xpose.msra.mxu0 %v1133
        %1137 = vmatprep.subr.mxu0 0.0
        %1138 = vmatpush1.xpose.msra.mxu0 0.0
        %1139 = vmatprep.subr.mxu0 0.0
        %1140 = vmatpush1.xpose.msra.mxu0 0.0
        %1141 = vmatprep.subr.mxu0 0.0
        %1142 = vmatpush1.xpose.msra.mxu0 0.0
        %1143 = vmatprep.subr.mxu0 0.0
        %1144 = vmatpush1.xpose.msra.mxu0 0.0
        %1145 = vmatprep.subr.mxu0 0.0
        %1146 = vmatpush1.xpose.msra.mxu0 0.0
        %1147 = vmatprep.subr.mxu0 0.0
        %1148 = vmatpush1.xpose.msra.mxu0 0.0
        %1149 = vmatprep.subr.mxu0 0.0
        %1150 = vmatpush1.xpose.msra.mxu0 0.0
        %1151 = vmatprep.subr.mxu0 0.0
        %1152 = vmatpush1.xpose.msra.mxu0 0.0
        %1153 = vmatprep.subr.mxu0 0.0
        %1154 = vmatpush1.xpose.msra.mxu0 0.0
        %1155 = vmatprep.subr.mxu0 0.0
        %1156 = vmatpush1.xpose.msra.mxu0 0.0
        %1157 = vmatprep.subr.mxu0 0.0
        %1158 = vmatpush1.xpose.msra.mxu0 0.0
        %1159 = vmatprep.subr.mxu0 0.0
        %1160 = vmatpush1.xpose.msra.mxu0 0.0
        %1161 = vmatprep.subr.mxu0 0.0
        %1162 = vmatpush1.xpose.msra.mxu0 0.0
        %1163 = vmatprep.subr.mxu0 0.0
        %1164 = vmatpush1.xpose.msra.mxu0 0.0
        %1165 = vmatprep.subr.mxu0 0.0
        %1166 = vmatpush1.xpose.msra.mxu0 0.0
        %1167 = vmatprep.subr.mxu0 0.0
        %1168 = vmatpush1.xpose.msra.mxu0 0.0
        %1169 = vmatprep.subr.mxu0 0.0
        %1170 = vmatpush1.xpose.msra.mxu0 0.0
        %1171 = vmatprep.subr.mxu0 0.0
        %1172 = vmatpush1.xpose.msra.mxu0 0.0
        %1173 = vmatprep.subr.mxu0 0.0
        %1174 = vmatpush1.xpose.msra.mxu0 0.0
        %1175 = vmatprep.subr.mxu0 0.0
        %1176 = vmatpush1.xpose.msra.mxu0 0.0
        %1177 = vmatprep.subr.mxu0 0.0
        %1178 = vmatpush1.xpose.msra.mxu0 0.0
        %1179 = vmatprep.subr.mxu0 0.0
        %1180 = vmatpush1.xpose.msra.mxu0 0.0
        %1181 = vmatprep.subr.mxu0 0.0
        %1182 = vmatpush1.xpose.msra.mxu0 0.0
        %1183 = vmatprep.subr.mxu0 0.0
        %1184 = vmatpush1.xpose.msra.mxu0 0.0
        %1185 = vmatprep.subr.mxu0 0.0
        %1186 = vmatpush1.xpose.msra.mxu0 0.0
        %1187 = vmatprep.subr.mxu0 0.0
        %1188 = vmatpush1.xpose.msra.mxu0 0.0
        %1189 = vmatprep.subr.mxu0 0.0
        %1190 = vmatpush1.xpose.msra.mxu0 0.0
        %1191 = vmatprep.subr.mxu0 0.0
        %1192 = vmatpush1.xpose.msra.mxu0 0.0
        %1193 = vmatprep.subr.mxu0 0.0
        %1194 = vmatpush1.xpose.msra.mxu0 0.0
        %1195 = vmatprep.subr.mxu0 0.0
        %1196 = vmatpush1.xpose.msra.mxu0 0.0
        %1197 = vmatprep.subr.mxu0 0.0
        %1198 = vmatpush1.xpose.msra.mxu0 0.0
        %1199 = vmatprep.mubr.f32.mxu0 0.0
        %1200 = vmatmul.mubr.f32.gmra.mrb[0].mxu0 %v1131
        %v1201 = vpop.f32.mrb[0].mxu0
        %v1202 = vadd.f32 0.0, %v1201
        %v1203 = vpop.f32.mrb[0].mxu0
        %1204 = vdwg.mxu0
        %v1205 = vsel %vm717, %v1202, -inf
        %1206 = vmax.xlane.f32.xlu0 %v1205
        %v1207 = vpop.xlane.xlu0 %1206
        %v1208 = vsub.f32 %v1202, %v1207
        %v1209 = vmul.f32 %v1208, 1.442695
        %v1210 = vpow.pop %v1209
        %v1211 = vsel %vm717, %v1210, 0.0
        %1212 = vadd.xlane.f32.xlu0 %v1211
        %v1213 = vpop.xlane.xlu0 %1212
        %v1214 = vrcp.pop %v1213
        %v1215 = vmul.f32 %v1210, %v1214
        %1217 = vrot.lane.b32.xlu0 %v1215, 8
        %v1218 = vpop.permute.xlu0 %1217
        %vm1220 = vcmask 93248
        %1221 = vst.msk [vmem:[%s466] sm:$0xf] %vm1220, %v1218
        %1222 = vrot.lane.b32.xlu0 %v730, 80
        %v1223 = vpop.permute.xlu0 %1222
        %v1224 = vsel %vm733, %v1215, 0
        %v1226 = vsel %vm737, %v1223, 0
        %1228 = vmatprep.subr.mxu0 0.0
        %1229 = vmatpush1.msra.mxu0 %v1226
        %1230 = vmatprep.subr.mxu0 0.0
        %1231 = vmatpush1.msra.mxu0 0.0
        %1232 = vmatprep.subr.mxu0 0.0
        %1233 = vmatpush1.msra.mxu0 0.0
        %1234 = vmatprep.subr.mxu0 0.0
        %1235 = vmatpush1.msra.mxu0 0.0
        %1236 = vmatprep.subr.mxu0 0.0
        %1237 = vmatpush1.msra.mxu0 0.0
        %1238 = vmatprep.subr.mxu0 0.0
        %1239 = vmatpush1.msra.mxu0 0.0
        %1240 = vmatprep.subr.mxu0 0.0
        %1241 = vmatpush1.msra.mxu0 0.0
        %1242 = vmatprep.subr.mxu0 0.0
        %1243 = vmatpush1.msra.mxu0 0.0
        %1244 = vmatprep.subr.mxu0 0.0
        %1245 = vmatpush1.msra.mxu0 0.0
        %1246 = vmatprep.subr.mxu0 0.0
        %1247 = vmatpush1.msra.mxu0 0.0
        %1248 = vmatprep.subr.mxu0 0.0
        %1249 = vmatpush1.msra.mxu0 0.0
        %1250 = vmatprep.subr.mxu0 0.0
        %1251 = vmatpush1.msra.mxu0 0.0
        %1252 = vmatprep.subr.mxu0 0.0
        %1253 = vmatpush1.msra.mxu0 0.0
        %1254 = vmatprep.subr.mxu0 0.0
        %1255 = vmatpush1.msra.mxu0 0.0
        %1256 = vmatprep.subr.mxu0 0.0
        %1257 = vmatpush1.msra.mxu0 0.0
        %1258 = vmatprep.subr.mxu0 0.0
        %1259 = vmatpush1.msra.mxu0 0.0
        %1260 = vmatprep.subr.mxu0 0.0
        %1261 = vmatpush1.msra.mxu0 0.0
        %1262 = vmatprep.subr.mxu0 0.0
        %1263 = vmatpush1.msra.mxu0 0.0
        %1264 = vmatprep.subr.mxu0 0.0
        %1265 = vmatpush1.msra.mxu0 0.0
        %1266 = vmatprep.subr.mxu0 0.0
        %1267 = vmatpush1.msra.mxu0 0.0
        %1268 = vmatprep.subr.mxu0 0.0
        %1269 = vmatpush1.msra.mxu0 0.0
        %1270 = vmatprep.subr.mxu0 0.0
        %1271 = vmatpush1.msra.mxu0 0.0
        %1272 = vmatprep.subr.mxu0 0.0
        %1273 = vmatpush1.msra.mxu0 0.0
        %1274 = vmatprep.subr.mxu0 0.0
        %1275 = vmatpush1.msra.mxu0 0.0
        %1276 = vmatprep.subr.mxu0 0.0
        %1277 = vmatpush1.msra.mxu0 0.0
        %1278 = vmatprep.subr.mxu0 0.0
        %1279 = vmatpush1.msra.mxu0 0.0
        %1280 = vmatprep.subr.mxu0 0.0
        %1281 = vmatpush1.msra.mxu0 0.0
        %1282 = vmatprep.subr.mxu0 0.0
        %1283 = vmatpush1.msra.mxu0 0.0
        %1284 = vmatprep.subr.mxu0 0.0
        %1285 = vmatpush1.msra.mxu0 0.0
        %1286 = vmatprep.subr.mxu0 0.0
        %1287 = vmatpush1.msra.mxu0 0.0
        %1288 = vmatprep.subr.mxu0 0.0
        %1289 = vmatpush1.msra.mxu0 0.0
        %1290 = vmatprep.subr.mxu0 0.0
        %1291 = vmatpush1.msra.mxu0 0.0
        %1292 = vmatprep.mubr.f32.mxu0 0.0
        %1293 = vmatmul.mubr.f32.gmra.mrb[0].mxu0 %v1224
        %v1294 = vpop.f32.mrb[0].mxu0
        %v1295 = vadd.f32 0.0, %v1294
        %v1296 = vpop.f32.mrb[0].mxu0
        %1297 = vdwg.mxu0
        %v1299 = vsel %vm641, %v1295, 0
        %1301 = vmatprep.subr.mxu0 0.0
        %1302 = vmatpush1.msra.mxu0 %v636
        %1303 = vmatprep.subr.mxu0 0.0
        %1304 = vmatpush1.msra.mxu0 0.0
        %1305 = vmatprep.subr.mxu0 0.0
        %1306 = vmatpush1.msra.mxu0 0.0
        %1307 = vmatprep.subr.mxu0 0.0
        %1308 = vmatpush1.msra.mxu0 0.0
        %1309 = vmatprep.subr.mxu0 0.0
        %1310 = vmatpush1.msra.mxu0 0.0
        %1311 = vmatprep.subr.mxu0 0.0
        %1312 = vmatpush1.msra.mxu0 0.0
        %1313 = vmatprep.subr.mxu0 0.0
        %1314 = vmatpush1.msra.mxu0 0.0
        %1315 = vmatprep.subr.mxu0 0.0
        %1316 = vmatpush1.msra.mxu0 0.0
        %1317 = vmatprep.subr.mxu0 0.0
        %1318 = vmatpush1.msra.mxu0 0.0
        %1319 = vmatprep.subr.mxu0 0.0
        %1320 = vmatpush1.msra.mxu0 0.0
        %1321 = vmatprep.subr.mxu0 0.0
        %1322 = vmatpush1.msra.mxu0 0.0
        %1323 = vmatprep.subr.mxu0 0.0
        %1324 = vmatpush1.msra.mxu0 0.0
        %1325 = vmatprep.subr.mxu0 0.0
        %1326 = vmatpush1.msra.mxu0 0.0
        %1327 = vmatprep.subr.mxu0 0.0
        %1328 = vmatpush1.msra.mxu0 0.0
        %1329 = vmatprep.subr.mxu0 0.0
        %1330 = vmatpush1.msra.mxu0 0.0
        %1331 = vmatprep.subr.mxu0 0.0
        %1332 = vmatpush1.msra.mxu0 0.0
        %1333 = vmatprep.subr.mxu0 0.0
        %1334 = vmatpush1.msra.mxu0 0.0
        %1335 = vmatprep.subr.mxu0 0.0
        %1336 = vmatpush1.msra.mxu0 0.0
        %1337 = vmatprep.subr.mxu0 0.0
        %1338 = vmatpush1.msra.mxu0 0.0
        %1339 = vmatprep.subr.mxu0 0.0
        %1340 = vmatpush1.msra.mxu0 0.0
        %1341 = vmatprep.subr.mxu0 0.0
        %1342 = vmatpush1.msra.mxu0 0.0
        %1343 = vmatprep.subr.mxu0 0.0
        %1344 = vmatpush1.msra.mxu0 0.0
        %1345 = vmatprep.subr.mxu0 0.0
        %1346 = vmatpush1.msra.mxu0 0.0
        %1347 = vmatprep.subr.mxu0 0.0
        %1348 = vmatpush1.msra.mxu0 0.0
        %1349 = vmatprep.subr.mxu0 0.0
        %1350 = vmatpush1.msra.mxu0 0.0
        %1351 = vmatprep.subr.mxu0 0.0
        %1352 = vmatpush1.msra.mxu0 0.0
        %1353 = vmatprep.subr.mxu0 0.0
        %1354 = vmatpush1.msra.mxu0 0.0
        %1355 = vmatprep.subr.mxu0 0.0
        %1356 = vmatpush1.msra.mxu0 0.0
        %1357 = vmatprep.subr.mxu0 0.0
        %1358 = vmatpush1.msra.mxu0 0.0
        %1359 = vmatprep.subr.mxu0 0.0
        %1360 = vmatpush1.msra.mxu0 0.0
        %1361 = vmatprep.subr.mxu0 0.0
        %1362 = vmatpush1.msra.mxu0 0.0
        %1363 = vmatprep.subr.mxu0 0.0
        %1364 = vmatpush1.msra.mxu0 0.0
        %1365 = vmatprep.mubr.f32.mxu0 0.0
        %1366 = vmatmul.mubr.f32.gmra.mrb[0].mxu0 %v1299
        %v1367 = vpop.f32.mrb[0].mxu0
        %v1368 = vadd.f32 0.0, %v1367
        %v1369 = vpop.f32.mrb[0].mxu0
        %1370 = vdwg.mxu0
        %v1371 = vadd.f32 %v1124, %v1368
        %1372 = vrot.lane.b32.xlu0 %v633, 104
        %v1373 = vpop.permute.xlu0 %1372
        %1374 = vrot.lane.b32.xlu0 %v630, 40
        %v1375 = vpop.permute.xlu0 %1374
        %v1376 = vsel %vm641, %v1373, 0
        %v1378 = vsel %vm641, %v1375, 0
        %1380 = vmatprep.subr.mxu0 0.0
        %1381 = vmatpush1.xpose.msra.mxu0 %v1378
        %1382 = vmatprep.subr.mxu0 0.0
        %1383 = vmatpush1.xpose.msra.mxu0 0.0
        %1384 = vmatprep.subr.mxu0 0.0
        %1385 = vmatpush1.xpose.msra.mxu0 0.0
        %1386 = vmatprep.subr.mxu0 0.0
        %1387 = vmatpush1.xpose.msra.mxu0 0.0
        %1388 = vmatprep.subr.mxu0 0.0
        %1389 = vmatpush1.xpose.msra.mxu0 0.0
        %1390 = vmatprep.subr.mxu0 0.0
        %1391 = vmatpush1.xpose.msra.mxu0 0.0
        %1392 = vmatprep.subr.mxu0 0.0
        %1393 = vmatpush1.xpose.msra.mxu0 0.0
        %1394 = vmatprep.subr.mxu0 0.0
        %1395 = vmatpush1.xpose.msra.mxu0 0.0
        %1396 = vmatprep.subr.mxu0 0.0
        %1397 = vmatpush1.xpose.msra.mxu0 0.0
        %1398 = vmatprep.subr.mxu0 0.0
        %1399 = vmatpush1.xpose.msra.mxu0 0.0
        %1400 = vmatprep.subr.mxu0 0.0
        %1401 = vmatpush1.xpose.msra.mxu0 0.0
        %1402 = vmatprep.subr.mxu0 0.0
        %1403 = vmatpush1.xpose.msra.mxu0 0.0
        %1404 = vmatprep.subr.mxu0 0.0
        %1405 = vmatpush1.xpose.msra.mxu0 0.0
        %1406 = vmatprep.subr.mxu0 0.0
        %1407 = vmatpush1.xpose.msra.mxu0 0.0
        %1408 = vmatprep.subr.mxu0 0.0
        %1409 = vmatpush1.xpose.msra.mxu0 0.0
        %1410 = vmatprep.subr.mxu0 0.0
        %1411 = vmatpush1.xpose.msra.mxu0 0.0
        %1412 = vmatprep.subr.mxu0 0.0
        %1413 = vmatpush1.xpose.msra.mxu0 0.0
        %1414 = vmatprep.subr.mxu0 0.0
        %1415 = vmatpush1.xpose.msra.mxu0 0.0
        %1416 = vmatprep.subr.mxu0 0.0
        %1417 = vmatpush1.xpose.msra.mxu0 0.0
        %1418 = vmatprep.subr.mxu0 0.0
        %1419 = vmatpush1.xpose.msra.mxu0 0.0
        %1420 = vmatprep.subr.mxu0 0.0
        %1421 = vmatpush1.xpose.msra.mxu0 0.0
        %1422 = vmatprep.subr.mxu0 0.0
        %1423 = vmatpush1.xpose.msra.mxu0 0.0
        %1424 = vmatprep.subr.mxu0 0.0
        %1425 = vmatpush1.xpose.msra.mxu0 0.0
        %1426 = vmatprep.subr.mxu0 0.0
        %1427 = vmatpush1.xpose.msra.mxu0 0.0
        %1428 = vmatprep.subr.mxu0 0.0
        %1429 = vmatpush1.xpose.msra.mxu0 0.0
        %1430 = vmatprep.subr.mxu0 0.0
        %1431 = vmatpush1.xpose.msra.mxu0 0.0
        %1432 = vmatprep.subr.mxu0 0.0
        %1433 = vmatpush1.xpose.msra.mxu0 0.0
        %1434 = vmatprep.subr.mxu0 0.0
        %1435 = vmatpush1.xpose.msra.mxu0 0.0
        %1436 = vmatprep.subr.mxu0 0.0
        %1437 = vmatpush1.xpose.msra.mxu0 0.0
        %1438 = vmatprep.subr.mxu0 0.0
        %1439 = vmatpush1.xpose.msra.mxu0 0.0
        %1440 = vmatprep.subr.mxu0 0.0
        %1441 = vmatpush1.xpose.msra.mxu0 0.0
        %1442 = vmatprep.subr.mxu0 0.0
        %1443 = vmatpush1.xpose.msra.mxu0 0.0
        %1444 = vmatprep.mubr.f32.mxu0 0.0
        %1445 = vmatmul.mubr.f32.gmra.mrb[0].mxu0 %v1376
        %v1446 = vpop.f32.mrb[0].mxu0
        %v1447 = vadd.f32 0.0, %v1446
        %v1448 = vpop.f32.mrb[0].mxu0
        %1449 = vdwg.mxu0
        %v1450 = vsel %vm717, %v1447, -inf
        %1451 = vmax.xlane.f32.xlu0 %v1450
        %v1452 = vpop.xlane.xlu0 %1451
        %v1453 = vsub.f32 %v1447, %v1452
        %v1454 = vmul.f32 %v1453, 1.442695
        %v1455 = vpow.pop %v1454
        %v1456 = vsel %vm717, %v1455, 0.0
        %1457 = vadd.xlane.f32.xlu0 %v1456
        %v1458 = vpop.xlane.xlu0 %1457
        %v1459 = vrcp.pop %v1458
        %v1460 = vmul.f32 %v1455, %v1459
        %1462 = vrot.lane.b32.xlu0 %v1460, 12
        %v1463 = vpop.permute.xlu0 %1462
        %vm1465 = vcmask 126048
        %1466 = vst.msk [vmem:[%s466] sm:$0xf] %vm1465, %v1463
        %1467 = vrot.lane.b32.xlu0 %v730, 72
        %v1468 = vpop.permute.xlu0 %1467
        %v1469 = vsel %vm733, %v1460, 0
        %v1471 = vsel %vm737, %v1468, 0
        %1473 = vmatprep.subr.mxu0 0.0
        %1474 = vmatpush1.msra.mxu0 %v1471
        %1475 = vmatprep.subr.mxu0 0.0
        %1476 = vmatpush1.msra.mxu0 0.0
        %1477 = vmatprep.subr.mxu0 0.0
        %1478 = vmatpush1.msra.mxu0 0.0
        %1479 = vmatprep.subr.mxu0 0.0
        %1480 = vmatpush1.msra.mxu0 0.0
        %1481 = vmatprep.subr.mxu0 0.0
        %1482 = vmatpush1.msra.mxu0 0.0
        %1483 = vmatprep.subr.mxu0 0.0
        %1484 = vmatpush1.msra.mxu0 0.0
        %1485 = vmatprep.subr.mxu0 0.0
        %1486 = vmatpush1.msra.mxu0 0.0
        %1487 = vmatprep.subr.mxu0 0.0
        %1488 = vmatpush1.msra.mxu0 0.0
        %1489 = vmatprep.subr.mxu0 0.0
        %1490 = vmatpush1.msra.mxu0 0.0
        %1491 = vmatprep.subr.mxu0 0.0
        %1492 = vmatpush1.msra.mxu0 0.0
        %1493 = vmatprep.subr.mxu0 0.0
        %1494 = vmatpush1.msra.mxu0 0.0
        %1495 = vmatprep.subr.mxu0 0.0
        %1496 = vmatpush1.msra.mxu0 0.0
        %1497 = vmatprep.subr.mxu0 0.0
        %1498 = vmatpush1.msra.mxu0 0.0
        %1499 = vmatprep.subr.mxu0 0.0
        %1500 = vmatpush1.msra.mxu0 0.0
        %1501 = vmatprep.subr.mxu0 0.0
        %1502 = vmatpush1.msra.mxu0 0.0
        %1503 = vmatprep.subr.mxu0 0.0
        %1504 = vmatpush1.msra.mxu0 0.0
        %1505 = vmatprep.subr.mxu0 0.0
        %1506 = vmatpush1.msra.mxu0 0.0
        %1507 = vmatprep.subr.mxu0 0.0
        %1508 = vmatpush1.msra.mxu0 0.0
        %1509 = vmatprep.subr.mxu0 0.0
        %1510 = vmatpush1.msra.mxu0 0.0
        %1511 = vmatprep.subr.mxu0 0.0
        %1512 = vmatpush1.msra.mxu0 0.0
        %1513 = vmatprep.subr.mxu0 0.0
        %1514 = vmatpush1.msra.mxu0 0.0
        %1515 = vmatprep.subr.mxu0 0.0
        %1516 = vmatpush1.msra.mxu0 0.0
        %1517 = vmatprep.subr.mxu0 0.0
        %1518 = vmatpush1.msra.mxu0 0.0
        %1519 = vmatprep.subr.mxu0 0.0
        %1520 = vmatpush1.msra.mxu0 0.0
        %1521 = vmatprep.subr.mxu0 0.0
        %1522 = vmatpush1.msra.mxu0 0.0
        %1523 = vmatprep.subr.mxu0 0.0
        %1524 = vmatpush1.msra.mxu0 0.0
        %1525 = vmatprep.subr.mxu0 0.0
        %1526 = vmatpush1.msra.mxu0 0.0
        %1527 = vmatprep.subr.mxu0 0.0
        %1528 = vmatpush1.msra.mxu0 0.0
        %1529 = vmatprep.subr.mxu0 0.0
        %1530 = vmatpush1.msra.mxu0 0.0
        %1531 = vmatprep.subr.mxu0 0.0
        %1532 = vmatpush1.msra.mxu0 0.0
        %1533 = vmatprep.subr.mxu0 0.0
        %1534 = vmatpush1.msra.mxu0 0.0
        %1535 = vmatprep.subr.mxu0 0.0
        %1536 = vmatpush1.msra.mxu0 0.0
        %1537 = vmatprep.mubr.f32.mxu0 0.0
        %1538 = vmatmul.mubr.f32.gmra.mrb[0].mxu0 %v1469
        %v1539 = vpop.f32.mrb[0].mxu0
        %v1540 = vadd.f32 0.0, %v1539
        %v1541 = vpop.f32.mrb[0].mxu0
        %1542 = vdwg.mxu0
        %v1544 = vsel %vm641, %v1540, 0
        %1546 = vmatprep.subr.mxu0 0.0
        %1547 = vmatpush1.msra.mxu0 %v637
        %1548 = vmatprep.subr.mxu0 0.0
        %1549 = vmatpush1.msra.mxu0 0.0
        %1550 = vmatprep.subr.mxu0 0.0
        %1551 = vmatpush1.msra.mxu0 0.0
        %1552 = vmatprep.subr.mxu0 0.0
        %1553 = vmatpush1.msra.mxu0 0.0
        %1554 = vmatprep.subr.mxu0 0.0
        %1555 = vmatpush1.msra.mxu0 0.0
        %1556 = vmatprep.subr.mxu0 0.0
        %1557 = vmatpush1.msra.mxu0 0.0
        %1558 = vmatprep.subr.mxu0 0.0
        %1559 = vmatpush1.msra.mxu0 0.0
        %1560 = vmatprep.subr.mxu0 0.0
        %1561 = vmatpush1.msra.mxu0 0.0
        %1562 = vmatprep.subr.mxu0 0.0
        %1563 = vmatpush1.msra.mxu0 0.0
        %1564 = vmatprep.subr.mxu0 0.0
        %1565 = vmatpush1.msra.mxu0 0.0
        %1566 = vmatprep.subr.mxu0 0.0
        %1567 = vmatpush1.msra.mxu0 0.0
        %1568 = vmatprep.subr.mxu0 0.0
        %1569 = vmatpush1.msra.mxu0 0.0
        %1570 = vmatprep.subr.mxu0 0.0
        %1571 = vmatpush1.msra.mxu0 0.0
        %1572 = vmatprep.subr.mxu0 0.0
        %1573 = vmatpush1.msra.mxu0 0.0
        %1574 = vmatprep.subr.mxu0 0.0
        %1575 = vmatpush1.msra.mxu0 0.0
        %1576 = vmatprep.subr.mxu0 0.0
        %1577 = vmatpush1.msra.mxu0 0.0
        %1578 = vmatprep.subr.mxu0 0.0
        %1579 = vmatpush1.msra.mxu0 0.0
        %1580 = vmatprep.subr.mxu0 0.0
        %1581 = vmatpush1.msra.mxu0 0.0
        %1582 = vmatprep.subr.mxu0 0.0
        %1583 = vmatpush1.msra.mxu0 0.0
        %1584 = vmatprep.subr.mxu0 0.0
        %1585 = vmatpush1.msra.mxu0 0.0
        %1586 = vmatprep.subr.mxu0 0.0
        %1587 = vmatpush1.msra.mxu0 0.0
        %1588 = vmatprep.subr.mxu0 0.0
        %1589 = vmatpush1.msra.mxu0 0.0
        %1590 = vmatprep.subr.mxu0 0.0
        %1591 = vmatpush1.msra.mxu0 0.0
        %1592 = vmatprep.subr.mxu0 0.0
        %1593 = vmatpush1.msra.mxu0 0.0
        %1594 = vmatprep.subr.mxu0 0.0
        %1595 = vmatpush1.msra.mxu0 0.0
        %1596 = vmatprep.subr.mxu0 0.0
        %1597 = vmatpush1.msra.mxu0 0.0
        %1598 = vmatprep.subr.mxu0 0.0
        %1599 = vmatpush1.msra.mxu0 0.0
        %1600 = vmatprep.subr.mxu0 0.0
        %1601 = vmatpush1.msra.mxu0 0.0
        %1602 = vmatprep.subr.mxu0 0.0
        %1603 = vmatpush1.msra.mxu0 0.0
        %1604 = vmatprep.subr.mxu0 0.0
        %1605 = vmatpush1.msra.mxu0 0.0
        %1606 = vmatprep.subr.mxu0 0.0
        %1607 = vmatpush1.msra.mxu0 0.0
        %1608 = vmatprep.subr.mxu0 0.0
        %1609 = vmatpush1.msra.mxu0 0.0
        %1610 = vmatprep.mubr.f32.mxu0 0.0
        %1611 = vmatmul.mubr.f32.gmra.mrb[0].mxu0 %v1544
        %v1612 = vpop.f32.mrb[0].mxu0
        %v1613 = vadd.f32 0.0, %v1612
        %v1614 = vpop.f32.mrb[0].mxu0
        %1615 = vdwg.mxu0
        %v1616 = vadd.f32 %v1371, %v1613
        %1617 = vrot.lane.b32.xlu0 %v633, 96
        %v1618 = vpop.permute.xlu0 %1617
        %v1619 = vsel %vm641, %v1618, 0
        %v1621 = vsel %vm641, %v730, 0
        %1623 = vmatprep.subr.mxu0 0.0
        %1624 = vmatpush1.xpose.msra.mxu0 %v1621
        %1625 = vmatprep.subr.mxu0 0.0
        %1626 = vmatpush1.xpose.msra.mxu0 0.0
        %1627 = vmatprep.subr.mxu0 0.0
        %1628 = vmatpush1.xpose.msra.mxu0 0.0
        %1629 = vmatprep.subr.mxu0 0.0
        %1630 = vmatpush1.xpose.msra.mxu0 0.0
        %1631 = vmatprep.subr.mxu0 0.0
        %1632 = vmatpush1.xpose.msra.mxu0 0.0
        %1633 = vmatprep.subr.mxu0 0.0
        %1634 = vmatpush1.xpose.msra.mxu0 0.0
        %1635 = vmatprep.subr.mxu0 0.0
        %1636 = vmatpush1.xpose.msra.mxu0 0.0
        %1637 = vmatprep.subr.mxu0 0.0
        %1638 = vmatpush1.xpose.msra.mxu0 0.0
        %1639 = vmatprep.subr.mxu0 0.0
        %1640 = vmatpush1.xpose.msra.mxu0 0.0
        %1641 = vmatprep.subr.mxu0 0.0
        %1642 = vmatpush1.xpose.msra.mxu0 0.0
        %1643 = vmatprep.subr.mxu0 0.0
        %1644 = vmatpush1.xpose.msra.mxu0 0.0
        %1645 = vmatprep.subr.mxu0 0.0
        %1646 = vmatpush1.xpose.msra.mxu0 0.0
        %1647 = vmatprep.subr.mxu0 0.0
        %1648 = vmatpush1.xpose.msra.mxu0 0.0
        %1649 = vmatprep.subr.mxu0 0.0
        %1650 = vmatpush1.xpose.msra.mxu0 0.0
        %1651 = vmatprep.subr.mxu0 0.0
        %1652 = vmatpush1.xpose.msra.mxu0 0.0
        %1653 = vmatprep.subr.mxu0 0.0
        %1654 = vmatpush1.xpose.msra.mxu0 0.0
        %1655 = vmatprep.subr.mxu0 0.0
        %1656 = vmatpush1.xpose.msra.mxu0 0.0
        %1657 = vmatprep.subr.mxu0 0.0
        %1658 = vmatpush1.xpose.msra.mxu0 0.0
        %1659 = vmatprep.subr.mxu0 0.0
        %1660 = vmatpush1.xpose.msra.mxu0 0.0
        %1661 = vmatprep.subr.mxu0 0.0
        %1662 = vmatpush1.xpose.msra.mxu0 0.0
        %1663 = vmatprep.subr.mxu0 0.0
        %1664 = vmatpush1.xpose.msra.mxu0 0.0
        %1665 = vmatprep.subr.mxu0 0.0
        %1666 = vmatpush1.xpose.msra.mxu0 0.0
        %1667 = vmatprep.subr.mxu0 0.0
        %1668 = vmatpush1.xpose.msra.mxu0 0.0
        %1669 = vmatprep.subr.mxu0 0.0
        %1670 = vmatpush1.xpose.msra.mxu0 0.0
        %1671 = vmatprep.subr.mxu0 0.0
        %1672 = vmatpush1.xpose.msra.mxu0 0.0
        %1673 = vmatprep.subr.mxu0 0.0
        %1674 = vmatpush1.xpose.msra.mxu0 0.0
        %1675 = vmatprep.subr.mxu0 0.0
        %1676 = vmatpush1.xpose.msra.mxu0 0.0
        %1677 = vmatprep.subr.mxu0 0.0
        %1678 = vmatpush1.xpose.msra.mxu0 0.0
        %1679 = vmatprep.subr.mxu0 0.0
        %1680 = vmatpush1.xpose.msra.mxu0 0.0
        %1681 = vmatprep.subr.mxu0 0.0
        %1682 = vmatpush1.xpose.msra.mxu0 0.0
        %1683 = vmatprep.subr.mxu0 0.0
        %1684 = vmatpush1.xpose.msra.mxu0 0.0
        %1685 = vmatprep.subr.mxu0 0.0
        %1686 = vmatpush1.xpose.msra.mxu0 0.0
        %1687 = vmatprep.mubr.f32.mxu0 0.0
        %1688 = vmatmul.mubr.f32.gmra.mrb[0].mxu0 %v1619
        %v1689 = vpop.f32.mrb[0].mxu0
        %v1690 = vadd.f32 0.0, %v1689
        %v1691 = vpop.f32.mrb[0].mxu0
        %1692 = vdwg.mxu0
        %v1693 = vsel %vm717, %v1690, -inf
        %1694 = vmax.xlane.f32.xlu0 %v1693
        %v1695 = vpop.xlane.xlu0 %1694
        %v1696 = vsub.f32 %v1690, %v1695
        %v1697 = vmul.f32 %v1696, 1.442695
        %v1698 = vpow.pop %v1697
        %v1699 = vsel %vm717, %v1698, 0.0
        %1700 = vadd.xlane.f32.xlu0 %v1699
        %v1701 = vpop.xlane.xlu0 %1700
        %v1702 = vrcp.pop %v1701
        %v1703 = vmul.f32 %v1698, %v1702
        %1705 = vrot.lane.b32.xlu0 %v1703, 16
        %v1706 = vpop.permute.xlu0 %1705
        %vm1708 = vcmask 158848
        %1709 = vst.msk [vmem:[%s466] sm:$0xf] %vm1708, %v1706
        %1710 = vrot.lane.b32.xlu0 %v730, 64
        %v1711 = vpop.permute.xlu0 %1710
        %v1712 = vsel %vm733, %v1703, 0
        %v1714 = vsel %vm737, %v1711, 0
        %1716 = vmatprep.subr.mxu0 0.0
        %1717 = vmatpush1.msra.mxu0 %v1714
        %1718 = vmatprep.subr.mxu0 0.0
        %1719 = vmatpush1.msra.mxu0 0.0
        %1720 = vmatprep.subr.mxu0 0.0
        %1721 = vmatpush1.msra.mxu0 0.0
        %1722 = vmatprep.subr.mxu0 0.0
        %1723 = vmatpush1.msra.mxu0 0.0
        %1724 = vmatprep.subr.mxu0 0.0
        %1725 = vmatpush1.msra.mxu0 0.0
        %1726 = vmatprep.subr.mxu0 0.0
        %1727 = vmatpush1.msra.mxu0 0.0
        %1728 = vmatprep.subr.mxu0 0.0
        %1729 = vmatpush1.msra.mxu0 0.0
        %1730 = vmatprep.subr.mxu0 0.0
        %1731 = vmatpush1.msra.mxu0 0.0
        %1732 = vmatprep.subr.mxu0 0.0
        %1733 = vmatpush1.msra.mxu0 0.0
        %1734 = vmatprep.subr.mxu0 0.0
        %1735 = vmatpush1.msra.mxu0 0.0
        %1736 = vmatprep.subr.mxu0 0.0
        %1737 = vmatpush1.msra.mxu0 0.0
        %1738 = vmatprep.subr.mxu0 0.0
        %1739 = vmatpush1.msra.mxu0 0.0
        %1740 = vmatprep.subr.mxu0 0.0
        %1741 = vmatpush1.msra.mxu0 0.0
        %1742 = vmatprep.subr.mxu0 0.0
        %1743 = vmatpush1.msra.mxu0 0.0
        %1744 = vmatprep.subr.mxu0 0.0
        %1745 = vmatpush1.msra.mxu0 0.0
        %1746 = vmatprep.subr.mxu0 0.0
        %1747 = vmatpush1.msra.mxu0 0.0
        %1748 = vmatprep.subr.mxu0 0.0
        %1749 = vmatpush1.msra.mxu0 0.0
        %1750 = vmatprep.subr.mxu0 0.0
        %1751 = vmatpush1.msra.mxu0 0.0
        %1752 = vmatprep.subr.mxu0 0.0
        %1753 = vmatpush1.msra.mxu0 0.0
        %1754 = vmatprep.subr.mxu0 0.0
        %1755 = vmatpush1.msra.mxu0 0.0
        %1756 = vmatprep.subr.mxu0 0.0
        %1757 = vmatpush1.msra.mxu0 0.0
        %1758 = vmatprep.subr.mxu0 0.0
        %1759 = vmatpush1.msra.mxu0 0.0
        %1760 = vmatprep.subr.mxu0 0.0
        %1761 = vmatpush1.msra.mxu0 0.0
        %1762 = vmatprep.subr.mxu0 0.0
        %1763 = vmatpush1.msra.mxu0 0.0
        %1764 = vmatprep.subr.mxu0 0.0
        %1765 = vmatpush1.msra.mxu0 0.0
        %1766 = vmatprep.subr.mxu0 0.0
        %1767 = vmatpush1.msra.mxu0 0.0
        %1768 = vmatprep.subr.mxu0 0.0
        %1769 = vmatpush1.msra.mxu0 0.0
        %1770 = vmatprep.subr.mxu0 0.0
        %1771 = vmatpush1.msra.mxu0 0.0
        %1772 = vmatprep.subr.mxu0 0.0
        %1773 = vmatpush1.msra.mxu0 0.0
        %1774 = vmatprep.subr.mxu0 0.0
        %1775 = vmatpush1.msra.mxu0 0.0
        %1776 = vmatprep.subr.mxu0 0.0
        %1777 = vmatpush1.msra.mxu0 0.0
        %1778 = vmatprep.subr.mxu0 0.0
        %1779 = vmatpush1.msra.mxu0 0.0
        %1780 = vmatprep.mubr.f32.mxu0 0.0
        %1781 = vmatmul.mubr.f32.gmra.mrb[0].mxu0 %v1712
        %v1782 = vpop.f32.mrb[0].mxu0
        %v1783 = vadd.f32 0.0, %v1782
        %v1784 = vpop.f32.mrb[0].mxu0
        %1785 = vdwg.mxu0
        %1786 = vrot.lane.b32.xlu0 %v633, 88
        %v1787 = vpop.permute.xlu0 %1786
        %1788 = vrot.lane.b32.xlu0 %v730, 120
        %v1789 = vpop.permute.xlu0 %1788
        %v1790 = vsel %vm641, %v1787, 0
        %v1792 = vsel %vm641, %v1789, 0
        %1794 = vmatprep.subr.mxu0 0.0
        %1795 = vmatpush1.xpose.msra.mxu0 %v1792
        %1796 = vmatprep.subr.mxu0 0.0
        %1797 = vmatpush1.xpose.msra.mxu0 0.0
        %1798 = vmatprep.subr.mxu0 0.0
        %1799 = vmatpush1.xpose.msra.mxu0 0.0
        %1800 = vmatprep.subr.mxu0 0.0
        %1801 = vmatpush1.xpose.msra.mxu0 0.0
        %1802 = vmatprep.subr.mxu0 0.0
        %1803 = vmatpush1.xpose.msra.mxu0 0.0
        %1804 = vmatprep.subr.mxu0 0.0
        %1805 = vmatpush1.xpose.msra.mxu0 0.0
        %1806 = vmatprep.subr.mxu0 0.0
        %1807 = vmatpush1.xpose.msra.mxu0 0.0
        %1808 = vmatprep.subr.mxu0 0.0
        %1809 = vmatpush1.xpose.msra.mxu0 0.0
        %1810 = vmatprep.subr.mxu0 0.0
        %1811 = vmatpush1.xpose.msra.mxu0 0.0
        %1812 = vmatprep.subr.mxu0 0.0
        %1813 = vmatpush1.xpose.msra.mxu0 0.0
        %1814 = vmatprep.subr.mxu0 0.0
        %1815 = vmatpush1.xpose.msra.mxu0 0.0
        %1816 = vmatprep.subr.mxu0 0.0
        %1817 = vmatpush1.xpose.msra.mxu0 0.0
        %1818 = vmatprep.subr.mxu0 0.0
        %1819 = vmatpush1.xpose.msra.mxu0 0.0
        %1820 = vmatprep.subr.mxu0 0.0
        %1821 = vmatpush1.xpose.msra.mxu0 0.0
        %1822 = vmatprep.subr.mxu0 0.0
        %1823 = vmatpush1.xpose.msra.mxu0 0.0
        %1824 = vmatprep.subr.mxu0 0.0
        %1825 = vmatpush1.xpose.msra.mxu0 0.0
        %1826 = vmatprep.subr.mxu0 0.0
        %1827 = vmatpush1.xpose.msra.mxu0 0.0
        %1828 = vmatprep.subr.mxu0 0.0
        %1829 = vmatpush1.xpose.msra.mxu0 0.0
        %1830 = vmatprep.subr.mxu0 0.0
        %1831 = vmatpush1.xpose.msra.mxu0 0.0
        %1832 = vmatprep.subr.mxu0 0.0
        %1833 = vmatpush1.xpose.msra.mxu0 0.0
        %1834 = vmatprep.subr.mxu0 0.0
        %1835 = vmatpush1.xpose.msra.mxu0 0.0
        %1836 = vmatprep.subr.mxu0 0.0
        %1837 = vmatpush1.xpose.msra.mxu0 0.0
        %1838 = vmatprep.subr.mxu0 0.0
        %1839 = vmatpush1.xpose.msra.mxu0 0.0
        %1840 = vmatprep.subr.mxu0 0.0
        %1841 = vmatpush1.xpose.msra.mxu0 0.0
        %1842 = vmatprep.subr.mxu0 0.0
        %1843 = vmatpush1.xpose.msra.mxu0 0.0
        %1844 = vmatprep.subr.mxu0 0.0
        %1845 = vmatpush1.xpose.msra.mxu0 0.0
        %1846 = vmatprep.subr.mxu0 0.0
        %1847 = vmatpush1.xpose.msra.mxu0 0.0
        %1848 = vmatprep.subr.mxu0 0.0
        %1849 = vmatpush1.xpose.msra.mxu0 0.0
        %1850 = vmatprep.subr.mxu0 0.0
        %1851 = vmatpush1.xpose.msra.mxu0 0.0
        %1852 = vmatprep.subr.mxu0 0.0
        %1853 = vmatpush1.xpose.msra.mxu0 0.0
        %1854 = vmatprep.subr.mxu0 0.0
        %1855 = vmatpush1.xpose.msra.mxu0 0.0
        %1856 = vmatprep.subr.mxu0 0.0
        %1857 = vmatpush1.xpose.msra.mxu0 0.0
        %1858 = vmatprep.mubr.f32.mxu0 0.0
        %1859 = vmatmul.mubr.f32.gmra.mrb[0].mxu0 %v1790
        %v1860 = vpop.f32.mrb[0].mxu0
        %v1861 = vadd.f32 0.0, %v1860
        %v1862 = vpop.f32.mrb[0].mxu0
        %1863 = vdwg.mxu0
        %v1864 = vsel %vm717, %v1861, -inf
        %1865 = vmax.xlane.f32.xlu0 %v1864
        %v1866 = vpop.xlane.xlu0 %1865
        %v1867 = vsub.f32 %v1861, %v1866
        %v1868 = vmul.f32 %v1867, 1.442695
        %v1869 = vpow.pop %v1868
        %v1870 = vsel %vm717, %v1869, 0.0
        %1871 = vadd.xlane.f32.xlu0 %v1870
        %v1872 = vpop.xlane.xlu0 %1871
        %v1873 = vrcp.pop %v1872
        %v1874 = vmul.f32 %v1869, %v1873
        %1876 = vrot.lane.b32.xlu0 %v1874, 20
        %v1877 = vpop.permute.xlu0 %1876
        %vm1879 = vcmask 191648
        %1880 = vst.msk [vmem:[%s466] sm:$0xf] %vm1879, %v1877
        %1881 = vrot.lane.b32.xlu0 %v730, 56
        %v1882 = vpop.permute.xlu0 %1881
        %v1883 = vsel %vm733, %v1874, 0
        %v1885 = vsel %vm737, %v1882, 0
        %1887 = vmatprep.subr.mxu0 0.0
        %1888 = vmatpush1.msra.mxu0 %v1885
        %1889 = vmatprep.subr.mxu0 0.0
        %1890 = vmatpush1.msra.mxu0 0.0
        %1891 = vmatprep.subr.mxu0 0.0
        %1892 = vmatpush1.msra.mxu0 0.0
        %1893 = vmatprep.subr.mxu0 0.0
        %1894 = vmatpush1.msra.mxu0 0.0
        %1895 = vmatprep.subr.mxu0 0.0
        %1896 = vmatpush1.msra.mxu0 0.0
        %1897 = vmatprep.subr.mxu0 0.0
        %1898 = vmatpush1.msra.mxu0 0.0
        %1899 = vmatprep.subr.mxu0 0.0
        %1900 = vmatpush1.msra.mxu0 0.0
        %1901 = vmatprep.subr.mxu0 0.0
        %1902 = vmatpush1.msra.mxu0 0.0
        %1903 = vmatprep.subr.mxu0 0.0
        %1904 = vmatpush1.msra.mxu0 0.0
        %1905 = vmatprep.subr.mxu0 0.0
        %1906 = vmatpush1.msra.mxu0 0.0
        %1907 = vmatprep.subr.mxu0 0.0
        %1908 = vmatpush1.msra.mxu0 0.0
        %1909 = vmatprep.subr.mxu0 0.0
        %1910 = vmatpush1.msra.mxu0 0.0
        %1911 = vmatprep.subr.mxu0 0.0
        %1912 = vmatpush1.msra.mxu0 0.0
        %1913 = vmatprep.subr.mxu0 0.0
        %1914 = vmatpush1.msra.mxu0 0.0
        %1915 = vmatprep.subr.mxu0 0.0
        %1916 = vmatpush1.msra.mxu0 0.0
        %1917 = vmatprep.subr.mxu0 0.0
        %1918 = vmatpush1.msra.mxu0 0.0
        %1919 = vmatprep.subr.mxu0 0.0
        %1920 = vmatpush1.msra.mxu0 0.0
        %1921 = vmatprep.subr.mxu0 0.0
        %1922 = vmatpush1.msra.mxu0 0.0
        %1923 = vmatprep.subr.mxu0 0.0
        %1924 = vmatpush1.msra.mxu0 0.0
        %1925 = vmatprep.subr.mxu0 0.0
        %1926 = vmatpush1.msra.mxu0 0.0
        %1927 = vmatprep.subr.mxu0 0.0
        %1928 = vmatpush1.msra.mxu0 0.0
        %1929 = vmatprep.subr.mxu0 0.0
        %1930 = vmatpush1.msra.mxu0 0.0
        %1931 = vmatprep.subr.mxu0 0.0
        %1932 = vmatpush1.msra.mxu0 0.0
        %1933 = vmatprep.subr.mxu0 0.0
        %1934 = vmatpush1.msra.mxu0 0.0
        %1935 = vmatprep.subr.mxu0 0.0
        %1936 = vmatpush1.msra.mxu0 0.0
        %1937 = vmatprep.subr.mxu0 0.0
        %1938 = vmatpush1.msra.mxu0 0.0
        %1939 = vmatprep.subr.mxu0 0.0
        %1940 = vmatpush1.msra.mxu0 0.0
        %1941 = vmatprep.subr.mxu0 0.0
        %1942 = vmatpush1.msra.mxu0 0.0
        %1943 = vmatprep.subr.mxu0 0.0
        %1944 = vmatpush1.msra.mxu0 0.0
        %1945 = vmatprep.subr.mxu0 0.0
        %1946 = vmatpush1.msra.mxu0 0.0
        %1947 = vmatprep.subr.mxu0 0.0
        %1948 = vmatpush1.msra.mxu0 0.0
        %1949 = vmatprep.subr.mxu0 0.0
        %1950 = vmatpush1.msra.mxu0 0.0
        %1951 = vmatprep.mubr.f32.mxu0 0.0
        %1952 = vmatmul.mubr.f32.gmra.mrb[0].mxu0 %v1883
        %v1953 = vpop.f32.mrb[0].mxu0
        %v1954 = vadd.f32 0.0, %v1953
        %v1955 = vpop.f32.mrb[0].mxu0
        %1956 = vdwg.mxu0
        %v1958 = vsel %vm641, %v1954, 0
        %1960 = vmatprep.subr.mxu0 0.0
        %1961 = vmatpush1.msra.mxu0 %v635
        %1962 = vmatprep.subr.mxu0 0.0
        %1963 = vmatpush1.msra.mxu0 0.0
        %1964 = vmatprep.subr.mxu0 0.0
        %1965 = vmatpush1.msra.mxu0 0.0
        %1966 = vmatprep.subr.mxu0 0.0
        %1967 = vmatpush1.msra.mxu0 0.0
        %1968 = vmatprep.subr.mxu0 0.0
        %1969 = vmatpush1.msra.mxu0 0.0
        %1970 = vmatprep.subr.mxu0 0.0
        %1971 = vmatpush1.msra.mxu0 0.0
        %1972 = vmatprep.subr.mxu0 0.0
        %1973 = vmatpush1.msra.mxu0 0.0
        %1974 = vmatprep.subr.mxu0 0.0
        %1975 = vmatpush1.msra.mxu0 0.0
        %1976 = vmatprep.subr.mxu0 0.0
        %1977 = vmatpush1.msra.mxu0 0.0
        %1978 = vmatprep.subr.mxu0 0.0
        %1979 = vmatpush1.msra.mxu0 0.0
        %1980 = vmatprep.subr.mxu0 0.0
        %1981 = vmatpush1.msra.mxu0 0.0
        %1982 = vmatprep.subr.mxu0 0.0
        %1983 = vmatpush1.msra.mxu0 0.0
        %1984 = vmatprep.subr.mxu0 0.0
        %1985 = vmatpush1.msra.mxu0 0.0
        %1986 = vmatprep.subr.mxu0 0.0
        %1987 = vmatpush1.msra.mxu0 0.0
        %1988 = vmatprep.subr.mxu0 0.0
        %1989 = vmatpush1.msra.mxu0 0.0
        %1990 = vmatprep.subr.mxu0 0.0
        %1991 = vmatpush1.msra.mxu0 0.0
        %1992 = vmatprep.subr.mxu0 0.0
        %1993 = vmatpush1.msra.mxu0 0.0
        %1994 = vmatprep.subr.mxu0 0.0
        %1995 = vmatpush1.msra.mxu0 0.0
        %1996 = vmatprep.subr.mxu0 0.0
        %1997 = vmatpush1.msra.mxu0 0.0
        %1998 = vmatprep.subr.mxu0 0.0
        %1999 = vmatpush1.msra.mxu0 0.0
        %2000 = vmatprep.subr.mxu0 0.0
        %2001 = vmatpush1.msra.mxu0 0.0
        %2002 = vmatprep.subr.mxu0 0.0
        %2003 = vmatpush1.msra.mxu0 0.0
        %2004 = vmatprep.subr.mxu0 0.0
        %2005 = vmatpush1.msra.mxu0 0.0
        %2006 = vmatprep.subr.mxu0 0.0
        %2007 = vmatpush1.msra.mxu0 0.0
        %2008 = vmatprep.subr.mxu0 0.0
        %2009 = vmatpush1.msra.mxu0 0.0
        %2010 = vmatprep.subr.mxu0 0.0
        %2011 = vmatpush1.msra.mxu0 0.0
        %2012 = vmatprep.subr.mxu0 0.0
        %2013 = vmatpush1.msra.mxu0 0.0
        %2014 = vmatprep.subr.mxu0 0.0
        %2015 = vmatpush1.msra.mxu0 0.0
        %2016 = vmatprep.subr.mxu0 0.0
        %2017 = vmatpush1.msra.mxu0 0.0
        %2018 = vmatprep.subr.mxu0 0.0
        %2019 = vmatpush1.msra.mxu0 0.0
        %2020 = vmatprep.subr.mxu0 0.0
        %2021 = vmatpush1.msra.mxu0 0.0
        %2022 = vmatprep.subr.mxu0 0.0
        %2023 = vmatpush1.msra.mxu0 0.0
        %2024 = vmatprep.mubr.f32.mxu0 0.0
        %2025 = vmatmul.mubr.f32.gmra.mrb[0].mxu0 %v1958
        %v2026 = vpop.f32.mrb[0].mxu0
        %v2027 = vadd.f32 0.0, %v2026
        %v2028 = vpop.f32.mrb[0].mxu0
        %2029 = vdwg.mxu0
        %v2031 = vsel %vm641, %v1783, 0
        %2033 = vmatprep.subr.mxu0 0.0
        %2034 = vmatpush1.msra.mxu0 %v634
        %2035 = vmatprep.subr.mxu0 0.0
        %2036 = vmatpush1.msra.mxu0 0.0
        %2037 = vmatprep.subr.mxu0 0.0
        %2038 = vmatpush1.msra.mxu0 0.0
        %2039 = vmatprep.subr.mxu0 0.0
        %2040 = vmatpush1.msra.mxu0 0.0
        %2041 = vmatprep.subr.mxu0 0.0
        %2042 = vmatpush1.msra.mxu0 0.0
        %2043 = vmatprep.subr.mxu0 0.0
        %2044 = vmatpush1.msra.mxu0 0.0
        %2045 = vmatprep.subr.mxu0 0.0
        %2046 = vmatpush1.msra.mxu0 0.0
        %2047 = vmatprep.subr.mxu0 0.0
        %2048 = vmatpush1.msra.mxu0 0.0
        %2049 = vmatprep.subr.mxu0 0.0
        %2050 = vmatpush1.msra.mxu0 0.0
        %2051 = vmatprep.subr.mxu0 0.0
        %2052 = vmatpush1.msra.mxu0 0.0
        %2053 = vmatprep.subr.mxu0 0.0
        %2054 = vmatpush1.msra.mxu0 0.0
        %2055 = vmatprep.subr.mxu0 0.0
        %2056 = vmatpush1.msra.mxu0 0.0
        %2057 = vmatprep.subr.mxu0 0.0
        %2058 = vmatpush1.msra.mxu0 0.0
        %2059 = vmatprep.subr.mxu0 0.0
        %2060 = vmatpush1.msra.mxu0 0.0
        %2061 = vmatprep.subr.mxu0 0.0
        %2062 = vmatpush1.msra.mxu0 0.0
        %2063 = vmatprep.subr.mxu0 0.0
        %2064 = vmatpush1.msra.mxu0 0.0
        %2065 = vmatprep.subr.mxu0 0.0
        %2066 = vmatpush1.msra.mxu0 0.0
        %2067 = vmatprep.subr.mxu0 0.0
        %2068 = vmatpush1.msra.mxu0 0.0
        %2069 = vmatprep.subr.mxu0 0.0
        %2070 = vmatpush1.msra.mxu0 0.0
        %2071 = vmatprep.subr.mxu0 0.0
        %2072 = vmatpush1.msra.mxu0 0.0
        %2073 = vmatprep.subr.mxu0 0.0
        %2074 = vmatpush1.msra.mxu0 0.0
        %2075 = vmatprep.subr.mxu0 0.0
        %2076 = vmatpush1.msra.mxu0 0.0
        %2077 = vmatprep.subr.mxu0 0.0
        %2078 = vmatpush1.msra.mxu0 0.0
        %2079 = vmatprep.subr.mxu0 0.0
        %2080 = vmatpush1.msra.mxu0 0.0
        %2081 = vmatprep.subr.mxu0 0.0
        %2082 = vmatpush1.msra.mxu0 0.0
        %2083 = vmatprep.subr.mxu0 0.0
        %2084 = vmatpush1.msra.mxu0 0.0
        %2085 = vmatprep.subr.mxu0 0.0
        %2086 = vmatpush1.msra.mxu0 0.0
        %2087 = vmatprep.subr.mxu0 0.0
        %2088 = vmatpush1.msra.mxu0 0.0
        %2089 = vmatprep.subr.mxu0 0.0
        %2090 = vmatpush1.msra.mxu0 0.0
        %2091 = vmatprep.subr.mxu0 0.0
        %2092 = vmatpush1.msra.mxu0 0.0
        %2093 = vmatprep.subr.mxu0 0.0
        %2094 = vmatpush1.msra.mxu0 0.0
        %2095 = vmatprep.subr.mxu0 0.0
        %2096 = vmatpush1.msra.mxu0 0.0
        %2097 = vmatprep.mubr.f32.mxu0 0.0
        %2098 = vmatmul.mubr.f32.gmra.mrb[0].mxu0 %v2031
        %v2099 = vpop.f32.mrb[0].mxu0
        %v2100 = vadd.f32 %v2027, %v2099
        %v2101 = vpop.f32.mrb[0].mxu0
        %2102 = vdwg.mxu0
        %2103 = vrot.lane.b32.xlu0 %v633, 80
        %v2104 = vpop.permute.xlu0 %2103
        %2105 = vrot.lane.b32.xlu0 %v730, 112
        %v2106 = vpop.permute.xlu0 %2105
        %v2107 = vsel %vm641, %v2104, 0
        %v2109 = vsel %vm641, %v2106, 0
        %2111 = vmatprep.subr.mxu0 0.0
        %2112 = vmatpush1.xpose.msra.mxu0 %v2109
        %2113 = vmatprep.subr.mxu0 0.0
        %2114 = vmatpush1.xpose.msra.mxu0 0.0
        %2115 = vmatprep.subr.mxu0 0.0
        %2116 = vmatpush1.xpose.msra.mxu0 0.0
        %2117 = vmatprep.subr.mxu0 0.0
        %2118 = vmatpush1.xpose.msra.mxu0 0.0
        %2119 = vmatprep.subr.mxu0 0.0
        %2120 = vmatpush1.xpose.msra.mxu0 0.0
        %2121 = vmatprep.subr.mxu0 0.0
        %2122 = vmatpush1.xpose.msra.mxu0 0.0
        %2123 = vmatprep.subr.mxu0 0.0
        %2124 = vmatpush1.xpose.msra.mxu0 0.0
        %2125 = vmatprep.subr.mxu0 0.0
        %2126 = vmatpush1.xpose.msra.mxu0 0.0
        %2127 = vmatprep.subr.mxu0 0.0
        %2128 = vmatpush1.xpose.msra.mxu0 0.0
        %2129 = vmatprep.subr.mxu0 0.0
        %2130 = vmatpush1.xpose.msra.mxu0 0.0
        %2131 = vmatprep.subr.mxu0 0.0
        %2132 = vmatpush1.xpose.msra.mxu0 0.0
        %2133 = vmatprep.subr.mxu0 0.0
        %2134 = vmatpush1.xpose.msra.mxu0 0.0
        %2135 = vmatprep.subr.mxu0 0.0
        %2136 = vmatpush1.xpose.msra.mxu0 0.0
        %2137 = vmatprep.subr.mxu0 0.0
        %2138 = vmatpush1.xpose.msra.mxu0 0.0
        %2139 = vmatprep.subr.mxu0 0.0
        %2140 = vmatpush1.xpose.msra.mxu0 0.0
        %2141 = vmatprep.subr.mxu0 0.0
        %2142 = vmatpush1.xpose.msra.mxu0 0.0
        %2143 = vmatprep.subr.mxu0 0.0
        %2144 = vmatpush1.xpose.msra.mxu0 0.0
        %2145 = vmatprep.subr.mxu0 0.0
        %2146 = vmatpush1.xpose.msra.mxu0 0.0
        %2147 = vmatprep.subr.mxu0 0.0
        %2148 = vmatpush1.xpose.msra.mxu0 0.0
        %2149 = vmatprep.subr.mxu0 0.0
        %2150 = vmatpush1.xpose.msra.mxu0 0.0
        %2151 = vmatprep.subr.mxu0 0.0
        %2152 = vmatpush1.xpose.msra.mxu0 0.0
        %2153 = vmatprep.subr.mxu0 0.0
        %2154 = vmatpush1.xpose.msra.mxu0 0.0
        %2155 = vmatprep.subr.mxu0 0.0
        %2156 = vmatpush1.xpose.msra.mxu0 0.0
        %2157 = vmatprep.subr.mxu0 0.0
        %2158 = vmatpush1.xpose.msra.mxu0 0.0
        %2159 = vmatprep.subr.mxu0 0.0
        %2160 = vmatpush1.xpose.msra.mxu0 0.0
        %2161 = vmatprep.subr.mxu0 0.0
        %2162 = vmatpush1.xpose.msra.mxu0 0.0
        %2163 = vmatprep.subr.mxu0 0.0
        %2164 = vmatpush1.xpose.msra.mxu0 0.0
        %2165 = vmatprep.subr.mxu0 0.0
        %2166 = vmatpush1.xpose.msra.mxu0 0.0
        %2167 = vmatprep.subr.mxu0 0.0
        %2168 = vmatpush1.xpose.msra.mxu0 0.0
        %2169 = vmatprep.subr.mxu0 0.0
        %2170 = vmatpush1.xpose.msra.mxu0 0.0
        %2171 = vmatprep.subr.mxu0 0.0
        %2172 = vmatpush1.xpose.msra.mxu0 0.0
        %2173 = vmatprep.subr.mxu0 0.0
        %2174 = vmatpush1.xpose.msra.mxu0 0.0
        %2175 = vmatprep.mubr.f32.mxu0 0.0
        %2176 = vmatmul.mubr.f32.gmra.mrb[0].mxu0 %v2107
        %v2177 = vpop.f32.mrb[0].mxu0
        %v2178 = vadd.f32 0.0, %v2177
        %v2179 = vpop.f32.mrb[0].mxu0
        %2180 = vdwg.mxu0
        %v2181 = vsel %vm717, %v2178, -inf
        %2182 = vmax.xlane.f32.xlu0 %v2181
        %v2183 = vpop.xlane.xlu0 %2182
        %v2184 = vsub.f32 %v2178, %v2183
        %v2185 = vmul.f32 %v2184, 1.442695
        %v2186 = vpow.pop %v2185
        %v2187 = vsel %vm717, %v2186, 0.0
        %2188 = vadd.xlane.f32.xlu0 %v2187
        %v2189 = vpop.xlane.xlu0 %2188
        %v2190 = vrcp.pop %v2189
        %v2191 = vmul.f32 %v2186, %v2190
        %2193 = vrot.lane.b32.xlu0 %v2191, 24
        %v2194 = vpop.permute.xlu0 %2193
        %vm2196 = vcmask 224448
        %2197 = vst.msk [vmem:[%s466] sm:$0xf] %vm2196, %v2194
        %2198 = vrot.lane.b32.xlu0 %v730, 48
        %v2199 = vpop.permute.xlu0 %2198
        %v2200 = vsel %vm733, %v2191, 0
        %v2202 = vsel %vm737, %v2199, 0
        %2204 = vmatprep.subr.mxu0 0.0
        %2205 = vmatpush1.msra.mxu0 %v2202
        %2206 = vmatprep.subr.mxu0 0.0
        %2207 = vmatpush1.msra.mxu0 0.0
        %2208 = vmatprep.subr.mxu0 0.0
        %2209 = vmatpush1.msra.mxu0 0.0
        %2210 = vmatprep.subr.mxu0 0.0
        %2211 = vmatpush1.msra.mxu0 0.0
        %2212 = vmatprep.subr.mxu0 0.0
        %2213 = vmatpush1.msra.mxu0 0.0
        %2214 = vmatprep.subr.mxu0 0.0
        %2215 = vmatpush1.msra.mxu0 0.0
        %2216 = vmatprep.subr.mxu0 0.0
        %2217 = vmatpush1.msra.mxu0 0.0
        %2218 = vmatprep.subr.mxu0 0.0
        %2219 = vmatpush1.msra.mxu0 0.0
        %2220 = vmatprep.subr.mxu0 0.0
        %2221 = vmatpush1.msra.mxu0 0.0
        %2222 = vmatprep.subr.mxu0 0.0
        %2223 = vmatpush1.msra.mxu0 0.0
        %2224 = vmatprep.subr.mxu0 0.0
        %2225 = vmatpush1.msra.mxu0 0.0
        %2226 = vmatprep.subr.mxu0 0.0
        %2227 = vmatpush1.msra.mxu0 0.0
        %2228 = vmatprep.subr.mxu0 0.0
        %2229 = vmatpush1.msra.mxu0 0.0
        %2230 = vmatprep.subr.mxu0 0.0
        %2231 = vmatpush1.msra.mxu0 0.0
        %2232 = vmatprep.subr.mxu0 0.0
        %2233 = vmatpush1.msra.mxu0 0.0
        %2234 = vmatprep.subr.mxu0 0.0
        %2235 = vmatpush1.msra.mxu0 0.0
        %2236 = vmatprep.subr.mxu0 0.0
        %2237 = vmatpush1.msra.mxu0 0.0
        %2238 = vmatprep.subr.mxu0 0.0
        %2239 = vmatpush1.msra.mxu0 0.0
        %2240 = vmatprep.subr.mxu0 0.0
        %2241 = vmatpush1.msra.mxu0 0.0
        %2242 = vmatprep.subr.mxu0 0.0
        %2243 = vmatpush1.msra.mxu0 0.0
        %2244 = vmatprep.subr.mxu0 0.0
        %2245 = vmatpush1.msra.mxu0 0.0
        %2246 = vmatprep.subr.mxu0 0.0
        %2247 = vmatpush1.msra.mxu0 0.0
        %2248 = vmatprep.subr.mxu0 0.0
        %2249 = vmatpush1.msra.mxu0 0.0
        %2250 = vmatprep.subr.mxu0 0.0
        %2251 = vmatpush1.msra.mxu0 0.0
        %2252 = vmatprep.subr.mxu0 0.0
        %2253 = vmatpush1.msra.mxu0 0.0
        %2254 = vmatprep.subr.mxu0 0.0
        %2255 = vmatpush1.msra.mxu0 0.0
        %2256 = vmatprep.subr.mxu0 0.0
        %2257 = vmatpush1.msra.mxu0 0.0
        %2258 = vmatprep.subr.mxu0 0.0
        %2259 = vmatpush1.msra.mxu0 0.0
        %2260 = vmatprep.subr.mxu0 0.0
        %2261 = vmatpush1.msra.mxu0 0.0
        %2262 = vmatprep.subr.mxu0 0.0
        %2263 = vmatpush1.msra.mxu0 0.0
        %2264 = vmatprep.subr.mxu0 0.0
        %2265 = vmatpush1.msra.mxu0 0.0
        %2266 = vmatprep.subr.mxu0 0.0
        %2267 = vmatpush1.msra.mxu0 0.0
        %2268 = vmatprep.mubr.f32.mxu0 0.0
        %2269 = vmatmul.mubr.f32.gmra.mrb[0].mxu0 %v2200
        %v2270 = vpop.f32.mrb[0].mxu0
        %v2271 = vadd.f32 0.0, %v2270
        %v2272 = vpop.f32.mrb[0].mxu0
        %2273 = vdwg.mxu0
        %v2275 = vsel %vm641, %v2271, 0
        %2277 = vmatprep.subr.mxu0 0.0
        %2278 = vmatpush1.msra.mxu0 %v636
        %2279 = vmatprep.subr.mxu0 0.0
        %2280 = vmatpush1.msra.mxu0 0.0
        %2281 = vmatprep.subr.mxu0 0.0
        %2282 = vmatpush1.msra.mxu0 0.0
        %2283 = vmatprep.subr.mxu0 0.0
        %2284 = vmatpush1.msra.mxu0 0.0
        %2285 = vmatprep.subr.mxu0 0.0
        %2286 = vmatpush1.msra.mxu0 0.0
        %2287 = vmatprep.subr.mxu0 0.0
        %2288 = vmatpush1.msra.mxu0 0.0
        %2289 = vmatprep.subr.mxu0 0.0
        %2290 = vmatpush1.msra.mxu0 0.0
        %2291 = vmatprep.subr.mxu0 0.0
        %2292 = vmatpush1.msra.mxu0 0.0
        %2293 = vmatprep.subr.mxu0 0.0
        %2294 = vmatpush1.msra.mxu0 0.0
        %2295 = vmatprep.subr.mxu0 0.0
        %2296 = vmatpush1.msra.mxu0 0.0
        %2297 = vmatprep.subr.mxu0 0.0
        %2298 = vmatpush1.msra.mxu0 0.0
        %2299 = vmatprep.subr.mxu0 0.0
        %2300 = vmatpush1.msra.mxu0 0.0
        %2301 = vmatprep.subr.mxu0 0.0
        %2302 = vmatpush1.msra.mxu0 0.0
        %2303 = vmatprep.subr.mxu0 0.0
        %2304 = vmatpush1.msra.mxu0 0.0
        %2305 = vmatprep.subr.mxu0 0.0
        %2306 = vmatpush1.msra.mxu0 0.0
        %2307 = vmatprep.subr.mxu0 0.0
        %2308 = vmatpush1.msra.mxu0 0.0
        %2309 = vmatprep.subr.mxu0 0.0
        %2310 = vmatpush1.msra.mxu0 0.0
        %2311 = vmatprep.subr.mxu0 0.0
        %2312 = vmatpush1.msra.mxu0 0.0
        %2313 = vmatprep.subr.mxu0 0.0
        %2314 = vmatpush1.msra.mxu0 0.0
        %2315 = vmatprep.subr.mxu0 0.0
        %2316 = vmatpush1.msra.mxu0 0.0
        %2317 = vmatprep.subr.mxu0 0.0
        %2318 = vmatpush1.msra.mxu0 0.0
        %2319 = vmatprep.subr.mxu0 0.0
        %2320 = vmatpush1.msra.mxu0 0.0
        %2321 = vmatprep.subr.mxu0 0.0
        %2322 = vmatpush1.msra.mxu0 0.0
        %2323 = vmatprep.subr.mxu0 0.0
        %2324 = vmatpush1.msra.mxu0 0.0
        %2325 = vmatprep.subr.mxu0 0.0
        %2326 = vmatpush1.msra.mxu0 0.0
        %2327 = vmatprep.subr.mxu0 0.0
        %2328 = vmatpush1.msra.mxu0 0.0
        %2329 = vmatprep.subr.mxu0 0.0
        %2330 = vmatpush1.msra.mxu0 0.0
        %2331 = vmatprep.subr.mxu0 0.0
        %2332 = vmatpush1.msra.mxu0 0.0
        %2333 = vmatprep.subr.mxu0 0.0
        %2334 = vmatpush1.msra.mxu0 0.0
        %2335 = vmatprep.subr.mxu0 0.0
        %2336 = vmatpush1.msra.mxu0 0.0
        %2337 = vmatprep.subr.mxu0 0.0
        %2338 = vmatpush1.msra.mxu0 0.0
        %2339 = vmatprep.subr.mxu0 0.0
        %2340 = vmatpush1.msra.mxu0 0.0
        %2341 = vmatprep.mubr.f32.mxu0 0.0
        %2342 = vmatmul.mubr.f32.gmra.mrb[0].mxu0 %v2275
        %v2343 = vpop.f32.mrb[0].mxu0
        %v2344 = vadd.f32 0.0, %v2343
        %v2345 = vpop.f32.mrb[0].mxu0
        %2346 = vdwg.mxu0
        %v2347 = vadd.f32 %v2100, %v2344
        %2348 = vrot.lane.b32.xlu0 %v633, 72
        %v2349 = vpop.permute.xlu0 %2348
        %2350 = vrot.lane.b32.xlu0 %v730, 104
        %v2351 = vpop.permute.xlu0 %2350
        %v2352 = vsel %vm641, %v2349, 0
        %v2354 = vsel %vm641, %v2351, 0
        %2356 = vmatprep.subr.mxu0 0.0
        %2357 = vmatpush1.xpose.msra.mxu0 %v2354
        %2358 = vmatprep.subr.mxu0 0.0
        %2359 = vmatpush1.xpose.msra.mxu0 0.0
        %2360 = vmatprep.subr.mxu0 0.0
        %2361 = vmatpush1.xpose.msra.mxu0 0.0
        %2362 = vmatprep.subr.mxu0 0.0
        %2363 = vmatpush1.xpose.msra.mxu0 0.0
        %2364 = vmatprep.subr.mxu0 0.0
        %2365 = vmatpush1.xpose.msra.mxu0 0.0
        %2366 = vmatprep.subr.mxu0 0.0
        %2367 = vmatpush1.xpose.msra.mxu0 0.0
        %2368 = vmatprep.subr.mxu0 0.0
        %2369 = vmatpush1.xpose.msra.mxu0 0.0
        %2370 = vmatprep.subr.mxu0 0.0
        %2371 = vmatpush1.xpose.msra.mxu0 0.0
        %2372 = vmatprep.subr.mxu0 0.0
        %2373 = vmatpush1.xpose.msra.mxu0 0.0
        %2374 = vmatprep.subr.mxu0 0.0
        %2375 = vmatpush1.xpose.msra.mxu0 0.0
        %2376 = vmatprep.subr.mxu0 0.0
        %2377 = vmatpush1.xpose.msra.mxu0 0.0
        %2378 = vmatprep.subr.mxu0 0.0
        %2379 = vmatpush1.xpose.msra.mxu0 0.0
        %2380 = vmatprep.subr.mxu0 0.0
        %2381 = vmatpush1.xpose.msra.mxu0 0.0
        %2382 = vmatprep.subr.mxu0 0.0
        %2383 = vmatpush1.xpose.msra.mxu0 0.0
        %2384 = vmatprep.subr.mxu0 0.0
        %2385 = vmatpush1.xpose.msra.mxu0 0.0
        %2386 = vmatprep.subr.mxu0 0.0
        %2387 = vmatpush1.xpose.msra.mxu0 0.0
        %2388 = vmatprep.subr.mxu0 0.0
        %2389 = vmatpush1.xpose.msra.mxu0 0.0
        %2390 = vmatprep.subr.mxu0 0.0
        %2391 = vmatpush1.xpose.msra.mxu0 0.0
        %2392 = vmatprep.subr.mxu0 0.0
        %2393 = vmatpush1.xpose.msra.mxu0 0.0
        %2394 = vmatprep.subr.mxu0 0.0
        %2395 = vmatpush1.xpose.msra.mxu0 0.0
        %2396 = vmatprep.subr.mxu0 0.0
        %2397 = vmatpush1.xpose.msra.mxu0 0.0
        %2398 = vmatprep.subr.mxu0 0.0
        %2399 = vmatpush1.xpose.msra.mxu0 0.0
        %2400 = vmatprep.subr.mxu0 0.0
        %2401 = vmatpush1.xpose.msra.mxu0 0.0
        %2402 = vmatprep.subr.mxu0 0.0
        %2403 = vmatpush1.xpose.msra.mxu0 0.0
        %2404 = vmatprep.subr.mxu0 0.0
        %2405 = vmatpush1.xpose.msra.mxu0 0.0
        %2406 = vmatprep.subr.mxu0 0.0
        %2407 = vmatpush1.xpose.msra.mxu0 0.0
        %2408 = vmatprep.subr.mxu0 0.0
        %2409 = vmatpush1.xpose.msra.mxu0 0.0
        %2410 = vmatprep.subr.mxu0 0.0
        %2411 = vmatpush1.xpose.msra.mxu0 0.0
        %2412 = vmatprep.subr.mxu0 0.0
        %2413 = vmatpush1.xpose.msra.mxu0 0.0
        %2414 = vmatprep.subr.mxu0 0.0
        %2415 = vmatpush1.xpose.msra.mxu0 0.0
        %2416 = vmatprep.subr.mxu0 0.0
        %2417 = vmatpush1.xpose.msra.mxu0 0.0
        %2418 = vmatprep.subr.mxu0 0.0
        %2419 = vmatpush1.xpose.msra.mxu0 0.0
        %2420 = vmatprep.mubr.f32.mxu0 0.0
        %2421 = vmatmul.mubr.f32.gmra.mrb[0].mxu0 %v2352
        %v2422 = vpop.f32.mrb[0].mxu0
        %v2423 = vadd.f32 0.0, %v2422
        %v2424 = vpop.f32.mrb[0].mxu0
        %2425 = vdwg.mxu0
        %v2426 = vsel %vm717, %v2423, -inf
        %2427 = vmax.xlane.f32.xlu0 %v2426
        %v2428 = vpop.xlane.xlu0 %2427
        %v2429 = vsub.f32 %v2423, %v2428
        %v2430 = vmul.f32 %v2429, 1.442695
        %v2431 = vpow.pop %v2430
        %v2432 = vsel %vm717, %v2431, 0.0
        %2433 = vadd.xlane.f32.xlu0 %v2432
        %v2434 = vpop.xlane.xlu0 %2433
        %v2435 = vrcp.pop %v2434
        %v2436 = vmul.f32 %v2431, %v2435
        %2438 = vrot.lane.b32.xlu0 %v2436, 28
        %v2439 = vpop.permute.xlu0 %2438
        %vm2441 = vcmask 257248
        %2442 = vst.msk [vmem:[%s466] sm:$0xf] %vm2441, %v2439
        %2443 = vrot.lane.b32.xlu0 %v730, 40
        %v2444 = vpop.permute.xlu0 %2443
        %v2445 = vsel %vm733, %v2436, 0
        %v2447 = vsel %vm737, %v2444, 0
        %2449 = vmatprep.subr.mxu0 0.0
        %2450 = vmatpush1.msra.mxu0 %v2447
        %2451 = vmatprep.subr.mxu0 0.0
        %2452 = vmatpush1.msra.mxu0 0.0
        %2453 = vmatprep.subr.mxu0 0.0
        %2454 = vmatpush1.msra.mxu0 0.0
        %2455 = vmatprep.subr.mxu0 0.0
        %2456 = vmatpush1.msra.mxu0 0.0
        %2457 = vmatprep.subr.mxu0 0.0
        %2458 = vmatpush1.msra.mxu0 0.0
        %2459 = vmatprep.subr.mxu0 0.0
        %2460 = vmatpush1.msra.mxu0 0.0
        %2461 = vmatprep.subr.mxu0 0.0
        %2462 = vmatpush1.msra.mxu0 0.0
        %2463 = vmatprep.subr.mxu0 0.0
        %2464 = vmatpush1.msra.mxu0 0.0
        %2465 = vmatprep.subr.mxu0 0.0
        %2466 = vmatpush1.msra.mxu0 0.0
        %2467 = vmatprep.subr.mxu0 0.0
        %2468 = vmatpush1.msra.mxu0 0.0
        %2469 = vmatprep.subr.mxu0 0.0
        %2470 = vmatpush1.msra.mxu0 0.0
        %2471 = vmatprep.subr.mxu0 0.0
        %2472 = vmatpush1.msra.mxu0 0.0
        %2473 = vmatprep.subr.mxu0 0.0
        %2474 = vmatpush1.msra.mxu0 0.0
        %2475 = vmatprep.subr.mxu0 0.0
        %2476 = vmatpush1.msra.mxu0 0.0
        %2477 = vmatprep.subr.mxu0 0.0
        %2478 = vmatpush1.msra.mxu0 0.0
        %2479 = vmatprep.subr.mxu0 0.0
        %2480 = vmatpush1.msra.mxu0 0.0
        %2481 = vmatprep.subr.mxu0 0.0
        %2482 = vmatpush1.msra.mxu0 0.0
        %2483 = vmatprep.subr.mxu0 0.0
        %2484 = vmatpush1.msra.mxu0 0.0
        %2485 = vmatprep.subr.mxu0 0.0
        %2486 = vmatpush1.msra.mxu0 0.0
        %2487 = vmatprep.subr.mxu0 0.0
        %2488 = vmatpush1.msra.mxu0 0.0
        %2489 = vmatprep.subr.mxu0 0.0
        %2490 = vmatpush1.msra.mxu0 0.0
        %2491 = vmatprep.subr.mxu0 0.0
        %2492 = vmatpush1.msra.mxu0 0.0
        %2493 = vmatprep.subr.mxu0 0.0
        %2494 = vmatpush1.msra.mxu0 0.0
        %2495 = vmatprep.subr.mxu0 0.0
        %2496 = vmatpush1.msra.mxu0 0.0
        %2497 = vmatprep.subr.mxu0 0.0
        %2498 = vmatpush1.msra.mxu0 0.0
        %2499 = vmatprep.subr.mxu0 0.0
        %2500 = vmatpush1.msra.mxu0 0.0
        %2501 = vmatprep.subr.mxu0 0.0
        %2502 = vmatpush1.msra.mxu0 0.0
        %2503 = vmatprep.subr.mxu0 0.0
        %2504 = vmatpush1.msra.mxu0 0.0
        %2505 = vmatprep.subr.mxu0 0.0
        %2506 = vmatpush1.msra.mxu0 0.0
        %2507 = vmatprep.subr.mxu0 0.0
        %2508 = vmatpush1.msra.mxu0 0.0
        %2509 = vmatprep.subr.mxu0 0.0
        %2510 = vmatpush1.msra.mxu0 0.0
        %2511 = vmatprep.subr.mxu0 0.0
        %2512 = vmatpush1.msra.mxu0 0.0
        %2513 = vmatprep.mubr.f32.mxu0 0.0
        %2514 = vmatmul.mubr.f32.gmra.mrb[0].mxu0 %v2445
        %v2515 = vpop.f32.mrb[0].mxu0
        %v2516 = vadd.f32 0.0, %v2515
        %v2517 = vpop.f32.mrb[0].mxu0
        %2518 = vdwg.mxu0
        %v2520 = vsel %vm641, %v2516, 0
        %2522 = vmatprep.subr.mxu0 0.0
        %2523 = vmatpush1.msra.mxu0 %v637
        %2524 = vmatprep.subr.mxu0 0.0
        %2525 = vmatpush1.msra.mxu0 0.0
        %2526 = vmatprep.subr.mxu0 0.0
        %2527 = vmatpush1.msra.mxu0 0.0
        %2528 = vmatprep.subr.mxu0 0.0
        %2529 = vmatpush1.msra.mxu0 0.0
        %2530 = vmatprep.subr.mxu0 0.0
        %2531 = vmatpush1.msra.mxu0 0.0
        %2532 = vmatprep.subr.mxu0 0.0
        %2533 = vmatpush1.msra.mxu0 0.0
        %2534 = vmatprep.subr.mxu0 0.0
        %2535 = vmatpush1.msra.mxu0 0.0
        %2536 = vmatprep.subr.mxu0 0.0
        %2537 = vmatpush1.msra.mxu0 0.0
        %2538 = vmatprep.subr.mxu0 0.0
        %2539 = vmatpush1.msra.mxu0 0.0
        %2540 = vmatprep.subr.mxu0 0.0
        %2541 = vmatpush1.msra.mxu0 0.0
        %2542 = vmatprep.subr.mxu0 0.0
        %2543 = vmatpush1.msra.mxu0 0.0
        %2544 = vmatprep.subr.mxu0 0.0
        %2545 = vmatpush1.msra.mxu0 0.0
        %2546 = vmatprep.subr.mxu0 0.0
        %2547 = vmatpush1.msra.mxu0 0.0
        %2548 = vmatprep.subr.mxu0 0.0
        %2549 = vmatpush1.msra.mxu0 0.0
        %2550 = vmatprep.subr.mxu0 0.0
        %2551 = vmatpush1.msra.mxu0 0.0
        %2552 = vmatprep.subr.mxu0 0.0
        %2553 = vmatpush1.msra.mxu0 0.0
        %2554 = vmatprep.subr.mxu0 0.0
        %2555 = vmatpush1.msra.mxu0 0.0
        %2556 = vmatprep.subr.mxu0 0.0
        %2557 = vmatpush1.msra.mxu0 0.0
        %2558 = vmatprep.subr.mxu0 0.0
        %2559 = vmatpush1.msra.mxu0 0.0
        %2560 = vmatprep.subr.mxu0 0.0
        %2561 = vmatpush1.msra.mxu0 0.0
        %2562 = vmatprep.subr.mxu0 0.0
        %2563 = vmatpush1.msra.mxu0 0.0
        %2564 = vmatprep.subr.mxu0 0.0
        %2565 = vmatpush1.msra.mxu0 0.0
        %2566 = vmatprep.subr.mxu0 0.0
        %2567 = vmatpush1.msra.mxu0 0.0
        %2568 = vmatprep.subr.mxu0 0.0
        %2569 = vmatpush1.msra.mxu0 0.0
        %2570 = vmatprep.subr.mxu0 0.0
        %2571 = vmatpush1.msra.mxu0 0.0
        %2572 = vmatprep.subr.mxu0 0.0
        %2573 = vmatpush1.msra.mxu0 0.0
        %2574 = vmatprep.subr.mxu0 0.0
        %2575 = vmatpush1.msra.mxu0 0.0
        %2576 = vmatprep.subr.mxu0 0.0
        %2577 = vmatpush1.msra.mxu0 0.0
        %2578 = vmatprep.subr.mxu0 0.0
        %2579 = vmatpush1.msra.mxu0 0.0
        %2580 = vmatprep.subr.mxu0 0.0
        %2581 = vmatpush1.msra.mxu0 0.0
        %2582 = vmatprep.subr.mxu0 0.0
        %2583 = vmatpush1.msra.mxu0 0.0
        %2584 = vmatprep.subr.mxu0 0.0
        %2585 = vmatpush1.msra.mxu0 0.0
        %2586 = vmatprep.mubr.f32.mxu0 0.0
        %2587 = vmatmul.mubr.f32.gmra.mrb[0].mxu0 %v2520
        %v2588 = vpop.f32.mrb[0].mxu0
        %v2589 = vadd.f32 0.0, %v2588
        %v2590 = vpop.f32.mrb[0].mxu0
        %2591 = vdwg.mxu0
        %v2592 = vadd.f32 %v2347, %v2589
        %v2593 = vld [vmem:[%s6] sm:$0xff]
        %v2594 = vld [vmem:[%s6 + $0x8] sm:$0xff]
        %v2595 = vld [vmem:[%s6 + $0x10] sm:$0xff]
        %v2596 = vld [vmem:[%s7] sm:$0xff]
        %v2597 = vld [vmem:[%s7 + $0x8] sm:$0xff]
        %v2598 = vld [vmem:[%s7 + $0x10] sm:$0xff]
        %v2600 = vsel %vm733, %v2596, 0
        %v2603 = vsel %vm733, %v2597, 0
        %v2606 = vsel %vm733, %v2598, 0
        %v2609 = vsel %vm737, %v2592, 0
        %2611 = vmatprep.subr.mxu0 0.0
        %2612 = vmatpush1.msra.mxu0 %v2609
        %2613 = vmatprep.subr.mxu0 0.0
        %2614 = vmatpush1.msra.mxu0 0.0
        %2615 = vmatprep.subr.mxu0 0.0
        %2616 = vmatpush1.msra.mxu0 0.0
        %2617 = vmatprep.subr.mxu0 0.0
        %2618 = vmatpush1.msra.mxu0 0.0
        %2619 = vmatprep.subr.mxu0 0.0
        %2620 = vmatpush1.msra.mxu0 0.0
        %2621 = vmatprep.subr.mxu0 0.0
        %2622 = vmatpush1.msra.mxu0 0.0
        %2623 = vmatprep.subr.mxu0 0.0
        %2624 = vmatpush1.msra.mxu0 0.0
        %2625 = vmatprep.subr.mxu0 0.0
        %2626 = vmatpush1.msra.mxu0 0.0
        %2627 = vmatprep.subr.mxu0 0.0
        %2628 = vmatpush1.msra.mxu0 0.0
        %2629 = vmatprep.subr.mxu0 0.0
        %2630 = vmatpush1.msra.mxu0 0.0
        %2631 = vmatprep.subr.mxu0 0.0
        %2632 = vmatpush1.msra.mxu0 0.0
        %2633 = vmatprep.subr.mxu0 0.0
        %2634 = vmatpush1.msra.mxu0 0.0
        %2635 = vmatprep.subr.mxu0 0.0
        %2636 = vmatpush1.msra.mxu0 0.0
        %2637 = vmatprep.subr.mxu0 0.0
        %2638 = vmatpush1.msra.mxu0 0.0
        %2639 = vmatprep.subr.mxu0 0.0
        %2640 = vmatpush1.msra.mxu0 0.0
        %2641 = vmatprep.subr.mxu0 0.0
        %2642 = vmatpush1.msra.mxu0 0.0
        %2643 = vmatprep.subr.mxu0 0.0
        %2644 = vmatpush1.msra.mxu0 0.0
        %2645 = vmatprep.subr.mxu0 0.0
        %2646 = vmatpush1.msra.mxu0 0.0
        %2647 = vmatprep.subr.mxu0 0.0
        %2648 = vmatpush1.msra.mxu0 0.0
        %2649 = vmatprep.subr.mxu0 0.0
        %2650 = vmatpush1.msra.mxu0 0.0
        %2651 = vmatprep.subr.mxu0 0.0
        %2652 = vmatpush1.msra.mxu0 0.0
        %2653 = vmatprep.subr.mxu0 0.0
        %2654 = vmatpush1.msra.mxu0 0.0
        %2655 = vmatprep.subr.mxu0 0.0
        %2656 = vmatpush1.msra.mxu0 0.0
        %2657 = vmatprep.subr.mxu0 0.0
        %2658 = vmatpush1.msra.mxu0 0.0
        %2659 = vmatprep.subr.mxu0 0.0
        %2660 = vmatpush1.msra.mxu0 0.0
        %2661 = vmatprep.subr.mxu0 0.0
        %2662 = vmatpush1.msra.mxu0 0.0
        %2663 = vmatprep.subr.mxu0 0.0
        %2664 = vmatpush1.msra.mxu0 0.0
        %2665 = vmatprep.subr.mxu0 0.0
        %2666 = vmatpush1.msra.mxu0 0.0
        %2667 = vmatprep.subr.mxu0 0.0
        %2668 = vmatpush1.msra.mxu0 0.0
        %2669 = vmatprep.subr.mxu0 0.0
        %2670 = vmatpush1.msra.mxu0 0.0
        %2671 = vmatprep.subr.mxu0 0.0
        %2672 = vmatpush1.msra.mxu0 0.0
        %2673 = vmatprep.subr.mxu0 0.0
        %2674 = vmatpush1.msra.mxu0 0.0
        %2675 = vmatprep.mubr.f32.mxu0 0.0
        %2676 = vmatmul.mubr.f32.gmra.mrb[0].mxu0 %v2600
        %v2677 = vpop.f32.mrb[0].mxu0
        %v2678 = vadd.f32 0.0, %v2677
        %v2679 = vpop.f32.mrb[0].mxu0
        %2680 = vmatprep.mubr.f32.mxu0 0.0
        %2681 = vmatmul.mubr.f32.gmra.mrb[0].mxu0 %v2603
        %v2682 = vpop.f32.mrb[0].mxu0
        %v2683 = vadd.f32 0.0, %v2682
        %v2684 = vpop.f32.mrb[0].mxu0
        %2685 = vmatprep.mubr.f32.mxu0 0.0
        %2686 = vmatmul.mubr.f32.gmra.mrb[0].mxu0 %v2606
        %v2687 = vpop.f32.mrb[0].mxu0
        %v2688 = vadd.f32 0.0, %v2687
        %v2689 = vpop.f32.mrb[0].mxu0
        %2690 = vdwg.mxu0
        %v2692 = vsel %vm733, %v2593, 0
        %v2695 = vsel %vm733, %v2594, 0
        %v2698 = vsel %vm733, %v2595, 0
        %v2701 = vsel %vm737, %v1616, 0
        %2703 = vmatprep.subr.mxu0 0.0
        %2704 = vmatpush1.msra.mxu0 %v2701
        %2705 = vmatprep.subr.mxu0 0.0
        %2706 = vmatpush1.msra.mxu0 0.0
        %2707 = vmatprep.subr.mxu0 0.0
        %2708 = vmatpush1.msra.mxu0 0.0
        %2709 = vmatprep.subr.mxu0 0.0
        %2710 = vmatpush1.msra.mxu0 0.0
        %2711 = vmatprep.subr.mxu0 0.0
        %2712 = vmatpush1.msra.mxu0 0.0
        %2713 = vmatprep.subr.mxu0 0.0
        %2714 = vmatpush1.msra.mxu0 0.0
        %2715 = vmatprep.subr.mxu0 0.0
        %2716 = vmatpush1.msra.mxu0 0.0
        %2717 = vmatprep.subr.mxu0 0.0
        %2718 = vmatpush1.msra.mxu0 0.0
        %2719 = vmatprep.subr.mxu0 0.0
        %2720 = vmatpush1.msra.mxu0 0.0
        %2721 = vmatprep.subr.mxu0 0.0
        %2722 = vmatpush1.msra.mxu0 0.0
        %2723 = vmatprep.subr.mxu0 0.0
        %2724 = vmatpush1.msra.mxu0 0.0
        %2725 = vmatprep.subr.mxu0 0.0
        %2726 = vmatpush1.msra.mxu0 0.0
        %2727 = vmatprep.subr.mxu0 0.0
        %2728 = vmatpush1.msra.mxu0 0.0
        %2729 = vmatprep.subr.mxu0 0.0
        %2730 = vmatpush1.msra.mxu0 0.0
        %2731 = vmatprep.subr.mxu0 0.0
        %2732 = vmatpush1.msra.mxu0 0.0
        %2733 = vmatprep.subr.mxu0 0.0
        %2734 = vmatpush1.msra.mxu0 0.0
        %2735 = vmatprep.subr.mxu0 0.0
        %2736 = vmatpush1.msra.mxu0 0.0
        %2737 = vmatprep.subr.mxu0 0.0
        %2738 = vmatpush1.msra.mxu0 0.0
        %2739 = vmatprep.subr.mxu0 0.0
        %2740 = vmatpush1.msra.mxu0 0.0
        %2741 = vmatprep.subr.mxu0 0.0
        %2742 = vmatpush1.msra.mxu0 0.0
        %2743 = vmatprep.subr.mxu0 0.0
        %2744 = vmatpush1.msra.mxu0 0.0
        %2745 = vmatprep.subr.mxu0 0.0
        %2746 = vmatpush1.msra.mxu0 0.0
        %2747 = vmatprep.subr.mxu0 0.0
        %2748 = vmatpush1.msra.mxu0 0.0
        %2749 = vmatprep.subr.mxu0 0.0
        %2750 = vmatpush1.msra.mxu0 0.0
        %2751 = vmatprep.subr.mxu0 0.0
        %2752 = vmatpush1.msra.mxu0 0.0
        %2753 = vmatprep.subr.mxu0 0.0
        %2754 = vmatpush1.msra.mxu0 0.0
        %2755 = vmatprep.subr.mxu0 0.0
        %2756 = vmatpush1.msra.mxu0 0.0
        %2757 = vmatprep.subr.mxu0 0.0
        %2758 = vmatpush1.msra.mxu0 0.0
        %2759 = vmatprep.subr.mxu0 0.0
        %2760 = vmatpush1.msra.mxu0 0.0
        %2761 = vmatprep.subr.mxu0 0.0
        %2762 = vmatpush1.msra.mxu0 0.0
        %2763 = vmatprep.subr.mxu0 0.0
        %2764 = vmatpush1.msra.mxu0 0.0
        %2765 = vmatprep.subr.mxu0 0.0
        %2766 = vmatpush1.msra.mxu0 0.0
        %2767 = vmatprep.mubr.f32.mxu0 0.0
        %2768 = vmatmul.mubr.f32.gmra.mrb[0].mxu0 %v2692
        %v2769 = vpop.f32.mrb[0].mxu0
        %v2770 = vadd.f32 %v2678, %v2769
        %v2771 = vpop.f32.mrb[0].mxu0
        %2772 = vmatprep.mubr.f32.mxu0 0.0
        %2773 = vmatmul.mubr.f32.gmra.mrb[0].mxu0 %v2695
        %v2774 = vpop.f32.mrb[0].mxu0
        %v2775 = vadd.f32 %v2683, %v2774
        %v2776 = vpop.f32.mrb[0].mxu0
        %2777 = vmatprep.mubr.f32.mxu0 0.0
        %2778 = vmatmul.mubr.f32.gmra.mrb[0].mxu0 %v2698
        %v2779 = vpop.f32.mrb[0].mxu0
        %v2780 = vadd.f32 %v2688, %v2779
        %v2781 = vpop.f32.mrb[0].mxu0
        %2782 = vdwg.mxu0
        %v2783 = vld [vmem:[%s8] sm:$0xff]
        %v2784 = vld [vmem:[%s8 + $0x8] sm:$0xff]
        %v2785 = vld [vmem:[%s8 + $0x10] sm:$0xff]
        %2787 = vset.pattern.permute.xlu0 0
        %2788 = vperm.xlu0 %2787, %v2783
        %v2789 = vpop.permute.xlu0 %2788
        %2792 = vset.pattern.permute.xlu0 0
        %2793 = vperm.xlu0 %2792, %v2784
        %v2794 = vpop.permute.xlu0 %2793
        %2797 = vset.pattern.permute.xlu0 0
        %2798 = vperm.xlu0 %2797, %v2785
        %v2799 = vpop.permute.xlu0 %2798
        %v2801 = vmul.f32 %v2789, %v2770
        %v2802 = vmul.f32 %v2794, %v2775
        %v2803 = vmul.f32 %v2799, %v2780
        %2804 = vset.pattern.permute.xlu0 1
        %2805 = vperm.xlu0 %2804, %v2783
        %v2806 = vpop.permute.xlu0 %2805
        %2808 = vset.pattern.permute.xlu0 1
        %2809 = vperm.xlu0 %2808, %v2784
        %v2810 = vpop.permute.xlu0 %2809
        %2812 = vset.pattern.permute.xlu0 1
        %2813 = vperm.xlu0 %2812, %v2785
        %v2814 = vpop.permute.xlu0 %2813
        %v2816 = vmul.f32 %v2806, %v2770
        %v2817 = vmul.f32 %v2810, %v2775
        %v2818 = vmul.f32 %v2814, %v2780
        %2822 = vrot.lane.b32.xlu0 %v2816, 120
        %v2823 = vpop.permute.xlu0 %2822
        %2824 = vrot.lane.b32.xlu0 %v2817, 120
        %v2825 = vpop.permute.xlu0 %2824
        %2826 = vrot.lane.b32.xlu0 %v2818, 120
        %v2827 = vpop.permute.xlu0 %2826
        %v2831 = vadd.f32 %v2801, %v2823
        %v2832 = vadd.f32 %v2802, %v2825
        %v2833 = vadd.f32 %v2803, %v2827
        %2834 = vset.pattern.permute.xlu0 2
        %2835 = vperm.xlu0 %2834, %v2783
        %v2836 = vpop.permute.xlu0 %2835
        %2838 = vset.pattern.permute.xlu0 2
        %2839 = vperm.xlu0 %2838, %v2784
        %v2840 = vpop.permute.xlu0 %2839
        %2842 = vset.pattern.permute.xlu0 2
        %2843 = vperm.xlu0 %2842, %v2785
        %v2844 = vpop.permute.xlu0 %2843
        %v2846 = vmul.f32 %v2836, %v2770
        %v2847 = vmul.f32 %v2840, %v2775
        %v2848 = vmul.f32 %v2844, %v2780
        %2852 = vrot.lane.b32.xlu0 %v2846, 112
        %v2853 = vpop.permute.xlu0 %2852
        %2854 = vrot.lane.b32.xlu0 %v2847, 112
        %v2855 = vpop.permute.xlu0 %2854
        %2856 = vrot.lane.b32.xlu0 %v2848, 112
        %v2857 = vpop.permute.xlu0 %2856
        %v2861 = vadd.f32 %v2831, %v2853
        %v2862 = vadd.f32 %v2832, %v2855
        %v2863 = vadd.f32 %v2833, %v2857
        %v2864 = vld [vmem:[%s9] sm:$0xff]
        %v2865 = vld [vmem:[%s9 + $0x8] sm:$0xff]
        %v2866 = vld [vmem:[%s9 + $0x10] sm:$0xff]
        %v2867 = vld [vmem:[%s9 + $0x18] sm:$0xff]
        %v2868 = vld [vmem:[%s9 + $0x20] sm:$0xff]
        %v2869 = vld [vmem:[%s9 + $0x28] sm:$0xff]
        %vm2870 = vcmask 195584
        %v2872 = vsel %vm2870, %v2864, 0
        %v2875 = vsel %vm2870, %v2865, 0
        %v2878 = vsel %vm2870, %v2866, 0
        %v2881 = vsel %vm2870, %v2867, 0
        %v2884 = vsel %vm2870, %v2868, 0
        %v2887 = vsel %vm2870, %v2869, 0
        %2889 = vmatprep.subr.mxu0 0.0
        %2890 = vmatpush1.msra.mxu0 %v2861
        %2891 = vmatprep.subr.mxu0 0.0
        %2892 = vmatpush1.msra.mxu0 %v2862
        %2893 = vmatprep.subr.mxu0 0.0
        %2894 = vmatpush1.msra.mxu0 %v2863
        %2895 = vmatprep.subr.mxu0 0.0
        %2896 = vmatpush1.msra.mxu0 0.0
        %2897 = vmatprep.subr.mxu0 0.0
        %2898 = vmatpush1.msra.mxu0 0.0
        %2899 = vmatprep.subr.mxu0 0.0
        %2900 = vmatpush1.msra.mxu0 0.0
        %2901 = vmatprep.subr.mxu0 0.0
        %2902 = vmatpush1.msra.mxu0 0.0
        %2903 = vmatprep.subr.mxu0 0.0
        %2904 = vmatpush1.msra.mxu0 0.0
        %2905 = vmatprep.subr.mxu0 0.0
        %2906 = vmatpush1.msra.mxu0 0.0
        %2907 = vmatprep.subr.mxu0 0.0
        %2908 = vmatpush1.msra.mxu0 0.0
        %2909 = vmatprep.subr.mxu0 0.0
        %2910 = vmatpush1.msra.mxu0 0.0
        %2911 = vmatprep.subr.mxu0 0.0
        %2912 = vmatpush1.msra.mxu0 0.0
        %2913 = vmatprep.subr.mxu0 0.0
        %2914 = vmatpush1.msra.mxu0 0.0
        %2915 = vmatprep.subr.mxu0 0.0
        %2916 = vmatpush1.msra.mxu0 0.0
        %2917 = vmatprep.subr.mxu0 0.0
        %2918 = vmatpush1.msra.mxu0 0.0
        %2919 = vmatprep.subr.mxu0 0.0
        %2920 = vmatpush1.msra.mxu0 0.0
        %2921 = vmatprep.subr.mxu0 0.0
        %2922 = vmatpush1.msra.mxu0 0.0
        %2923 = vmatprep.subr.mxu0 0.0
        %2924 = vmatpush1.msra.mxu0 0.0
        %2925 = vmatprep.subr.mxu0 0.0
        %2926 = vmatpush1.msra.mxu0 0.0
        %2927 = vmatprep.subr.mxu0 0.0
        %2928 = vmatpush1.msra.mxu0 0.0
        %2929 = vmatprep.subr.mxu0 0.0
        %2930 = vmatpush1.msra.mxu0 0.0
        %2931 = vmatprep.subr.mxu0 0.0
        %2932 = vmatpush1.msra.mxu0 0.0
        %2933 = vmatprep.subr.mxu0 0.0
        %2934 = vmatpush1.msra.mxu0 0.0
        %2935 = vmatprep.subr.mxu0 0.0
        %2936 = vmatpush1.msra.mxu0 0.0
        %2937 = vmatprep.subr.mxu0 0.0
        %2938 = vmatpush1.msra.mxu0 0.0
        %2939 = vmatprep.subr.mxu0 0.0
        %2940 = vmatpush1.msra.mxu0 0.0
        %2941 = vmatprep.subr.mxu0 0.0
        %2942 = vmatpush1.msra.mxu0 0.0
        %2943 = vmatprep.subr.mxu0 0.0
        %2944 = vmatpush1.msra.mxu0 0.0
        %2945 = vmatprep.subr.mxu0 0.0
        %2946 = vmatpush1.msra.mxu0 0.0
        %2947 = vmatprep.subr.mxu0 0.0
        %2948 = vmatpush1.msra.mxu0 0.0
        %2949 = vmatprep.subr.mxu0 0.0
        %2950 = vmatpush1.msra.mxu0 0.0
        %2951 = vmatprep.subr.mxu0 0.0
        %2952 = vmatpush1.msra.mxu0 0.0
        %2953 = vmatprep.mubr.f32.mxu0 0.0
        %2954 = vmatmul.mubr.f32.gmra.mrb[0].mxu0 %v2872
        %v2955 = vpop.f32.mrb[0].mxu0
        %v2956 = vadd.f32 0.0, %v2955
        %v2957 = vpop.f32.mrb[0].mxu0
        %2958 = vmatprep.mubr.f32.mxu0 0.0
        %2959 = vmatmul.mubr.f32.gmra.mrb[0].mxu0 %v2875
        %v2960 = vpop.f32.mrb[0].mxu0
        %v2961 = vadd.f32 0.0, %v2960
        %v2962 = vpop.f32.mrb[0].mxu0
        %2963 = vmatprep.mubr.f32.mxu0 0.0
        %2964 = vmatmul.mubr.f32.gmra.mrb[0].mxu0 %v2878
        %v2965 = vpop.f32.mrb[0].mxu0
        %v2966 = vadd.f32 0.0, %v2965
        %v2967 = vpop.f32.mrb[0].mxu0
        %2968 = vmatprep.mubr.f32.mxu0 0.0
        %2969 = vmatmul.mubr.f32.gmra.mrb[0].mxu0 %v2881
        %v2970 = vpop.f32.mrb[0].mxu0
        %v2971 = vadd.f32 0.0, %v2970
        %v2972 = vpop.f32.mrb[0].mxu0
        %2973 = vmatprep.mubr.f32.mxu0 0.0
        %2974 = vmatmul.mubr.f32.gmra.mrb[0].mxu0 %v2884
        %v2975 = vpop.f32.mrb[0].mxu0
        %v2976 = vadd.f32 0.0, %v2975
        %v2977 = vpop.f32.mrb[0].mxu0
        %2978 = vmatprep.mubr.f32.mxu0 0.0
        %2979 = vmatmul.mubr.f32.gmra.mrb[0].mxu0 %v2887
        %v2980 = vpop.f32.mrb[0].mxu0
        %v2981 = vadd.f32 0.0, %v2980
        %v2982 = vpop.f32.mrb[0].mxu0
        %2983 = vdwg.mxu0
        %v2984 = vld [vmem:[%s10] sm:$0xff]
        %v2985 = vld [vmem:[%s11] sm:$0xff]
        %v2986 = vld [vmem:[%s11 + $0x8] sm:$0xff]
        %v2987 = vld [vmem:[%s11 + $0x10] sm:$0xff]
        %v2988 = vld [vmem:[%s11 + $0x18] sm:$0xff]
        %v2989 = vld [vmem:[%s11 + $0x20] sm:$0xff]
        %v2990 = vld [vmem:[%s11 + $0x28] sm:$0xff]
        %v2992 = vsel %vm641, %v2956, 0
        %v2995 = vsel %vm641, %v2961, 0
        %v2998 = vsel %vm641, %v2966, 0
        %v3001 = vsel %vm641, %v2971, 0
        %v3004 = vsel %vm641, %v2976, 0
        %v3007 = vsel %vm641, %v2981, 0
        %3009 = vmatprep.subr.mxu0 0.0
        %3010 = vmatpush1.msra.mxu0 %v2984
        %3011 = vmatprep.subr.mxu0 0.0
        %3012 = vmatpush1.msra.mxu0 0.0
        %3013 = vmatprep.subr.mxu0 0.0
        %3014 = vmatpush1.msra.mxu0 0.0
        %3015 = vmatprep.subr.mxu0 0.0
        %3016 = vmatpush1.msra.mxu0 0.0
        %3017 = vmatprep.subr.mxu0 0.0
        %3018 = vmatpush1.msra.mxu0 0.0
        %3019 = vmatprep.subr.mxu0 0.0
        %3020 = vmatpush1.msra.mxu0 0.0
        %3021 = vmatprep.subr.mxu0 0.0
        %3022 = vmatpush1.msra.mxu0 0.0
        %3023 = vmatprep.subr.mxu0 0.0
        %3024 = vmatpush1.msra.mxu0 0.0
        %3025 = vmatprep.subr.mxu0 0.0
        %3026 = vmatpush1.msra.mxu0 0.0
        %3027 = vmatprep.subr.mxu0 0.0
        %3028 = vmatpush1.msra.mxu0 0.0
        %3029 = vmatprep.subr.mxu0 0.0
        %3030 = vmatpush1.msra.mxu0 0.0
        %3031 = vmatprep.subr.mxu0 0.0
        %3032 = vmatpush1.msra.mxu0 0.0
        %3033 = vmatprep.subr.mxu0 0.0
        %3034 = vmatpush1.msra.mxu0 0.0
        %3035 = vmatprep.subr.mxu0 0.0
        %3036 = vmatpush1.msra.mxu0 0.0
        %3037 = vmatprep.subr.mxu0 0.0
        %3038 = vmatpush1.msra.mxu0 0.0
        %3039 = vmatprep.subr.mxu0 0.0
        %3040 = vmatpush1.msra.mxu0 0.0
        %3041 = vmatprep.subr.mxu0 0.0
        %3042 = vmatpush1.msra.mxu0 0.0
        %3043 = vmatprep.subr.mxu0 0.0
        %3044 = vmatpush1.msra.mxu0 0.0
        %3045 = vmatprep.subr.mxu0 0.0
        %3046 = vmatpush1.msra.mxu0 0.0
        %3047 = vmatprep.subr.mxu0 0.0
        %3048 = vmatpush1.msra.mxu0 0.0
        %3049 = vmatprep.subr.mxu0 0.0
        %3050 = vmatpush1.msra.mxu0 0.0
        %3051 = vmatprep.subr.mxu0 0.0
        %3052 = vmatpush1.msra.mxu0 0.0
        %3053 = vmatprep.subr.mxu0 0.0
        %3054 = vmatpush1.msra.mxu0 0.0
        %3055 = vmatprep.subr.mxu0 0.0
        %3056 = vmatpush1.msra.mxu0 0.0
        %3057 = vmatprep.subr.mxu0 0.0
        %3058 = vmatpush1.msra.mxu0 0.0
        %3059 = vmatprep.subr.mxu0 0.0
        %3060 = vmatpush1.msra.mxu0 0.0
        %3061 = vmatprep.subr.mxu0 0.0
        %3062 = vmatpush1.msra.mxu0 0.0
        %3063 = vmatprep.subr.mxu0 0.0
        %3064 = vmatpush1.msra.mxu0 0.0
        %3065 = vmatprep.subr.mxu0 0.0
        %3066 = vmatpush1.msra.mxu0 0.0
        %3067 = vmatprep.subr.mxu0 0.0
        %3068 = vmatpush1.msra.mxu0 0.0
        %3069 = vmatprep.subr.mxu0 0.0
        %3070 = vmatpush1.msra.mxu0 0.0
        %3071 = vmatprep.subr.mxu0 0.0
        %3072 = vmatpush1.msra.mxu0 0.0
        %3073 = vmatprep.mubr.f32.mxu0 0.0
        %3074 = vmatmul.mubr.f32.gmra.mrb[0].mxu0 %v2992
        %v3075 = vpop.f32.mrb[0].mxu0
        %v3076 = vadd.f32 %v2985, %v3075
        %v3077 = vpop.f32.mrb[0].mxu0
        %3078 = vmatprep.mubr.f32.mxu0 0.0
        %3079 = vmatmul.mubr.f32.gmra.mrb[0].mxu0 %v2995
        %v3080 = vpop.f32.mrb[0].mxu0
        %v3081 = vadd.f32 %v2986, %v3080
        %v3082 = vpop.f32.mrb[0].mxu0
        %3083 = vmatprep.mubr.f32.mxu0 0.0
        %3084 = vmatmul.mubr.f32.gmra.mrb[0].mxu0 %v2998
        %v3085 = vpop.f32.mrb[0].mxu0
        %v3086 = vadd.f32 %v2987, %v3085
        %v3087 = vpop.f32.mrb[0].mxu0
        %3088 = vmatprep.mubr.f32.mxu0 0.0
        %3089 = vmatmul.mubr.f32.gmra.mrb[0].mxu0 %v3001
        %v3090 = vpop.f32.mrb[0].mxu0
        %v3091 = vadd.f32 %v2988, %v3090
        %v3092 = vpop.f32.mrb[0].mxu0
        %3093 = vmatprep.mubr.f32.mxu0 0.0
        %3094 = vmatmul.mubr.f32.gmra.mrb[0].mxu0 %v3004
        %v3095 = vpop.f32.mrb[0].mxu0
        %v3096 = vadd.f32 %v2989, %v3095
        %v3097 = vpop.f32.mrb[0].mxu0
        %3098 = vmatprep.mubr.f32.mxu0 0.0
        %3099 = vmatmul.mubr.f32.gmra.mrb[0].mxu0 %v3007
        %v3100 = vpop.f32.mrb[0].mxu0
        %v3101 = vadd.f32 %v2990, %v3100
        %v3102 = vpop.f32.mrb[0].mxu0
        %3103 = vdwg.mxu0
        %v3104 = vand.u32 2147483647, %v3076
        %v3105 = vand.u32 2147483647, %v3081
        %v3106 = vand.u32 2147483647, %v3086
        %v3107 = vand.u32 2147483647, %v3091
        %v3108 = vand.u32 2147483647, %v3096
        %v3109 = vand.u32 2147483647, %v3101
        %v3110 = vsub.f32 0.0, %v3104
        %v3111 = vsub.f32 0.0, %v3105
        %v3112 = vsub.f32 0.0, %v3106
        %v3113 = vsub.f32 0.0, %v3107
        %v3114 = vsub.f32 0.0, %v3108
        %v3115 = vsub.f32 0.0, %v3109
        %v3116 = vmul.f32 %v3110, 1.442695
        %v3117 = vpow.pop %v3116
        %v3118 = vmul.f32 %v3111, 1.442695
        %v3119 = vpow.pop %v3118
        %v3120 = vmul.f32 %v3112, 1.442695
        %v3121 = vpow.pop %v3120
        %v3122 = vmul.f32 %v3113, 1.442695
        %v3123 = vpow.pop %v3122
        %v3124 = vmul.f32 %v3114, 1.442695
        %v3125 = vpow.pop %v3124
        %v3126 = vmul.f32 %v3115, 1.442695
        %v3127 = vpow.pop %v3126
        %v3128 = vadd.f32 %v3117, 1.0
        %v3129 = vadd.f32 %v3119, 1.0
        %v3130 = vadd.f32 %v3121, 1.0
        %v3131 = vadd.f32 %v3123, 1.0
        %v3132 = vadd.f32 %v3125, 1.0
        %v3133 = vadd.f32 %v3127, 1.0
        %v3134 = vrcp.pop %v3128
        %v3135 = vrcp.pop %v3129
        %v3136 = vrcp.pop %v3130
        %v3137 = vrcp.pop %v3131
        %v3138 = vrcp.pop %v3132
        %v3139 = vrcp.pop %v3133
        %vm3140 = vcmp.ge.f32.partialorder %v3076, 0.0
        %vm3141 = vcmp.ge.f32.partialorder %v3081, 0.0
        %vm3142 = vcmp.ge.f32.partialorder %v3086, 0.0
        %vm3143 = vcmp.ge.f32.partialorder %v3091, 0.0
        %vm3144 = vcmp.ge.f32.partialorder %v3096, 0.0
        %vm3145 = vcmp.ge.f32.partialorder %v3101, 0.0
        %v3146 = vmul.f32 %v3117, %v3134
        %v3147 = vmul.f32 %v3119, %v3135
        %v3148 = vmul.f32 %v3121, %v3136
        %v3149 = vmul.f32 %v3123, %v3137
        %v3150 = vmul.f32 %v3125, %v3138
        %v3151 = vmul.f32 %v3127, %v3139
        %v3152 = vsel %vm3140, %v3134, %v3146
        %v3153 = vsel %vm3141, %v3135, %v3147
        %v3154 = vsel %vm3142, %v3136, %v3148
        %v3155 = vsel %vm3143, %v3137, %v3149
        %v3156 = vsel %vm3144, %v3138, %v3150
        %v3157 = vsel %vm3145, %v3139, %v3151
        %v3158 = vld [vmem:[%s462] sm:$0xff]
        %v3159 = vld [vmem:[%s462 + $0x8] sm:$0xff]
        %v3160 = vld [vmem:[%s462 + $0x10] sm:$0xff]
        %v3161 = vld [vmem:[%s462 + $0x18] sm:$0xff]
        %v3162 = vld [vmem:[%s462 + $0x20] sm:$0xff]
        %v3163 = vld [vmem:[%s462 + $0x28] sm:$0xff]
        %v3164 = vmul.f32 %v3152, %v3158
        %v3165 = vmul.f32 %v3153, %v3159
        %v3166 = vmul.f32 %v3154, %v3160
        %v3167 = vmul.f32 %v3155, %v3161
        %v3168 = vmul.f32 %v3156, %v3162
        %v3169 = vmul.f32 %v3157, %v3163
        %vm3170 = vcmask 130048
        %3171 = vst.msk [vmem:[%s447] sm:$0xff] %vm3170, %v3164
        %3172 = vst.msk [vmem:[%s447 + $0x8] sm:$0xff] %vm3170, %v3165
        %3173 = vst.msk [vmem:[%s447 + $0x10] sm:$0xff] %vm3170, %v3166
        %3174 = vst.msk [vmem:[%s447 + $0x18] sm:$0xff] %vm3170, %v3167
        %3175 = vst.msk [vmem:[%s447 + $0x20] sm:$0xff] %vm3170, %v3168
        %3176 = vst.msk [vmem:[%s447 + $0x28] sm:$0xff] %vm3170, %v3169
        %s3177 = sand.u32 %s298, 1
        %s3178 = scalar_lea.sflag [#allocation3], %s3177
        %s3179 = sand.u32 %s298, 1
        %s3180 = smul.addr %s3179, 48
        %s3181 = scalar_lea.vmem [#allocation2], %s3180
        %p3182 = scmp.lt.s32.totalorder %s28, 1
        %s3183 = scalar_select %p3182, %s28, 1
        %s3184 = smul.addr %s3183, 4
        %s3185 = scalar_lea.vmem %s13, %s3184
        // Predicated region
        $region69: #{cross_attention_block_forward.1} parent=67 // pred_check
          %p3186 = pneg %p308
        $region70: #{cross_attention_block_forward.1} parent=67 // pred_check_branch
          %3188 = sbr.rel (%p3186) target = $region72
        $region71: #{cross_attention_block_forward.1} parent=67 // pred_region
          %s3190 = ssub.s32 768, 768
          %3191 = vsyncadd %s3178, %s3190
          %s3192 = smul.addr %s28, 6
          %s3193 = smul.addr %s3192, 128
          %s3194 = scalar_lea.hbm %s12, %s3193
          %s3195 = sshll.u32 %s3181, 4
          %s3196 = int_to_ptr.vmem [resolvable:$true] %s3195
          %3201 = dma.vmem_to_hbm [thread:$0]  %s3196, 768, %s3194, %s3178, 128, 128, 8
        $region72: #{cross_attention_block_forward.1} parent=67 // pred_fallthru
          _
        // Predicated region
        $region73: #{cross_attention_block_forward.1} parent=67 // pred_check
          %p3202 = pneg %p334
        $region74: #{cross_attention_block_forward.1} parent=67 // pred_check_branch
          %3204 = sbr.rel (%p3202) target = $region76
        $region75: #{cross_attention_block_forward.1} parent=67 // pred_region
          _
        $region76: #{cross_attention_block_forward.1} parent=67 // pred_fallthru
          _
      $region68: #{cross_attention_block_forward.1} parent=5 // pred_fallthru
        _
      %p3205 = scmp.le.s32.totalorder 2, %s23
      // Predicated region
      $region77: #{cross_attention_block_forward.1} parent=5 // pred_check
        %p3206 = pneg %p3205
      $region78: #{cross_attention_block_forward.1} parent=5 // pred_check_branch
        %3208 = sbr.rel (%p3206) target = $region80
      $region79: #{cross_attention_block_forward.1} parent=5 // pred_region
        %s3209 = ssub.s32 %s23, 2
        // Predicated region
        $region81: #{cross_attention_block_forward.1} parent=79 // pred_check
          %p3210 = pneg %p314
        $region82: #{cross_attention_block_forward.1} parent=79 // pred_check_branch
          %3212 = sbr.rel (%p3210) target = $region84
        $region83: #{cross_attention_block_forward.1} parent=79 // pred_region
          %s3213 = sand.u32 %s299, 1
          %s3214 = scalar_lea.sflag [#allocation3], %s3213
          %s3215 = sand.u32 %s299, 1
          %s3216 = smul.addr %s3215, 48
          %s3217 = scalar_lea.vmem [#allocation2], %s3216
          %3218 = dma.done %s3214, 768
        $region84: #{cross_attention_block_forward.1} parent=79 // pred_fallthru
          _
        // Predicated region
        $region85: #{cross_attention_block_forward.1} parent=79 // pred_check
          %p3219 = pneg %p340
        $region86: #{cross_attention_block_forward.1} parent=79 // pred_check_branch
          %3221 = sbr.rel (%p3219) target = $region88
        $region87: #{cross_attention_block_forward.1} parent=79 // pred_region
          %p3222 = scmp.lt.s32.totalorder %s29, 1
          %s3223 = scalar_select %p3222, %s29, 1
          %s3224 = smul.addr %s3223, 4
          %s3225 = scalar_lea.vmem %s13, %s3224
        $region88: #{cross_attention_block_forward.1} parent=79 // pred_fallthru
          _
      $region80: #{cross_attention_block_forward.1} parent=5 // pred_fallthru
        _
    $region6: #{cross_attention_block_forward.1} parent=1 // loop_footer
      %s27 = sadd.s32 1, %s23
    $region7: #{cross_attention_block_forward.1} parent=1 // loop_footer_branch
      %22 = sbr.rel target = $region3
    $region8: #{cross_attention_block_forward.1} parent=1 // loop_exit
      _
    %3226 = vsyncpa [#allocation3], 1
    %s3227 = scalar_lea.sflag [#allocation3], 1
    %3228 = vsyncpa %s3227, 1

</llo_original>
